<compile_context>
chip_gen: v5e
topology: v5e:2x2
jax: 0.10.0
libtpu: 0.0.40
codegen_flags: <defaults>
</compile_context>

<pallas_src>
import jax
import jax.numpy as jnp
from jax import lax
from jax.experimental import pallas as pl
from jax.experimental.pallas import tpu as pltpu


_EPS = 1e-5
_LANE = 128        # output-channel padding target (lane-dense stores)
_K_ALIGN = 256     # contraction-dim alignment (clean MXU passes on all gens)
_BLOCK_M = 256     # row tile for the pipelined path
_SMALL_M = 512     # at/below this, single VMEM-resident block (no grid)


def _round_up(x, m):
    return (x + m - 1) // m * m


def _cat_fuse_kernel(xcol_ref, w_ref, shift_ref, o_ref):
    # xcol_ref:  (tm, Kp)  bf16 im2col activations
    # w_ref:     (Kp, Cp)  bf16 weights, BN scale folded in, Cp = 128 lane-dense
    # shift_ref: (1,  Cp)  f32 folded conv-bias + BN shift
    # o_ref:     (tm, Cp)  f32 output (channels padded to 128; wrapper slices)
    acc = jnp.dot(xcol_ref[...], w_ref[...],
                  preferred_element_type=jnp.float32)          # single MXU push
    o_ref[...] = jnp.maximum(acc + shift_ref[...], 0.0).astype(o_ref.dtype)


@jax.jit
def cat_fuse_forward(rgb_fea, dep_fea, params):
    """cat_fuse forward. rgb_fea, dep_fea: (N, C, H, W) float32 (NCHW)."""
    w = params["w"]              # (3, 3, 2C, C)  HWIO
    b = params["b"]              # (C,)
    gamma = params["gamma"]      # (C,)
    beta = params["beta"]        # (C,)
    mean = params["running_mean"]
    var = params["running_var"]

    N, C, H, W = rgb_fea.shape
    Cin, Cout = 2 * C, C
    M = N * H * W
    K = 9 * Cin
    Kp = _round_up(K, _K_ALIGN)
    Cp = _LANE

    # ---- im2col glue (fused by jit); bf16 right after the concat -----------
    x = jnp.concatenate([rgb_fea, dep_fea], axis=1).astype(jnp.bfloat16)
    x = jnp.transpose(x, (0, 2, 3, 1))                         # (N, H, W, 2C)
    x = jnp.pad(x, ((0, 0), (1, 1), (1, 1), (0, 0)))           # spatial pad=1
    patches = [x[:, ky:ky + H, kx:kx + W, :]
               for ky in range(3) for kx in range(3)]          # (ky,kx,ci) order
    x_col = jnp.concatenate(patches, axis=-1).reshape(M, K)    # (M, K) bf16
    x_col = jnp.pad(x_col, ((0, 0), (0, Kp - K)))              # lane-aligned K

    # ---- fold BN (eval) into conv weights / one additive shift (f32 math) ---
    scale = gamma / jnp.sqrt(var + _EPS)                       # (C,)
    shift = (b - mean) * scale + beta                          # (C,)
    w_mat = w.reshape(K, Cout) * scale[None, :]                # (K, C)
    w_mat = jnp.pad(w_mat, ((0, Kp - K), (0, Cp - Cout))).astype(jnp.bfloat16)
    shift_p = jnp.pad(shift, (0, Cp - Cout)).reshape(1, Cp).astype(jnp.float32)

    if M <= _SMALL_M:
        # Single-block path: whole problem lives in VMEM, no grid, so no
        # pointless double-buffering / pipeline prologue for a 1-step kernel.
        Mp = _round_up(M, 8)
        x_col = jnp.pad(x_col, ((0, Mp - M), (0, 0)))
        vmem_spec = pl.BlockSpec(memory_space=pltpu.MemorySpace.VMEM)
        out_mat = pl.pallas_call(
            _cat_fuse_kernel,
            out_shape=jax.ShapeDtypeStruct((Mp, Cp), jnp.float32),
            in_specs=[vmem_spec, vmem_spec, vmem_spec],
            out_specs=vmem_spec,
            compiler_params=pltpu.CompilerParams(
                allow_input_fusion=[True, True, True],
                vmem_limit_bytes=32 * 1024 * 1024),
        )(x_col, w_mat, shift_p)
    else:
        # Tiled path: M blocked and marked "parallel" (both TensorCores on v7x),
        # keeps VMEM bounded as N/H/W grow on any generation.
        Mp = _round_up(M, _BLOCK_M)
        x_col = jnp.pad(x_col, ((0, Mp - M), (0, 0)))
        out_mat = pl.pallas_call(
            _cat_fuse_kernel,
            out_shape=jax.ShapeDtypeStruct((Mp, Cp), jnp.float32),
            grid=(Mp // _BLOCK_M,),
            in_specs=[
                pl.BlockSpec((_BLOCK_M, Kp), lambda i: (i, 0)),
                pl.BlockSpec((Kp, Cp), lambda i: (0, 0)),
                pl.BlockSpec((1, Cp), lambda i: (0, 0)),
            ],
            out_specs=pl.BlockSpec((_BLOCK_M, Cp), lambda i: (i, 0)),
            compiler_params=pltpu.CompilerParams(
                dimension_semantics=("parallel",),
                allow_input_fusion=[True, True, True],
                vmem_limit_bytes=32 * 1024 * 1024),
        )(x_col, w_mat, shift_p)

    # Slice padded rows/channels, back to NCHW (fuses with the kernel output
    # copy under jit) to match the PyTorch convention.
    out_nhwc = out_mat[:M, :Cout].reshape(N, H, W, Cout)
    return jnp.transpose(out_nhwc, (0, 3, 1, 2))


def _reference_forward(rgb_fea, dep_fea, params):
    """Pure-JAX reference (same math, XLA conv, f32) for a correctness check."""
    w, b = params["w"], params["b"]
    gamma, beta = params["gamma"], params["beta"]
    mean, var = params["running_mean"], params["running_var"]
    x = jnp.concatenate([rgb_fea, dep_fea], axis=1)
    x = jnp.transpose(x, (0, 2, 3, 1))
    y = lax.conv_general_dilated(
        x, w, window_strides=(1, 1), padding="SAME",
        dimension_numbers=("NHWC", "HWIO", "NHWC"))
    y = y + b
    y = gamma * (y - mean) / jnp.sqrt(var + _EPS) + beta
    y = jnp.maximum(y, 0.0)
    return jnp.transpose(y, (0, 3, 1, 2))


if __name__ == "__main__":
    # channel must be 48: the module hardcodes BatchNorm2d(48).
    C, H, W = 48, 8, 8
    key = jax.random.PRNGKey(0)
    k_rgb, k_dep, k_w, k_b, k_g, k_be, k_m, k_v = jax.random.split(key, 8)

    params = {
        "w": jax.random.normal(k_w, (3, 3, 2 * C, C), jnp.float32) * 0.05,
        "b": jax.random.normal(k_b, (C,), jnp.float32) * 0.1,
        "gamma": 1.0 + 0.1 * jax.random.normal(k_g, (C,), jnp.float32),
        "beta": 0.1 * jax.random.normal(k_be, (C,), jnp.float32),
        "running_mean": 0.1 * jax.random.normal(k_m, (C,), jnp.float32),
        "running_var": 1.0 + 0.1 * jax.nn.softplus(
            jax.random.normal(k_v, (C,), jnp.float32)),
    }

    # Small case (M = N*H*W = 128): exercises the single-block (no-grid) path.
    N = 2
    rgb_fea = jax.random.normal(k_rgb, (N, C, H, W), jnp.float32)
    dep_fea = jax.random.normal(k_dep, (N, C, H, W), jnp.float32)
    out = jax.block_until_ready(cat_fuse_forward(rgb_fea, dep_fea, params))
    ref = jax.block_until_ready(_reference_forward(rgb_fea, dep_fea, params))
    assert out.shape == (N, C, H, W)
    # bf16 MXU inputs with f32 accumulation -> slightly loosened tolerance.
    assert jnp.allclose(out, ref, atol=3e-2, rtol=3e-2), "small-case mismatch"

    # Larger batch (M = 1024): exercises the tiled / parallel-grid path.
    N2 = 16
    rgb2 = jax.random.normal(k_rgb, (N2, C, H, W), jnp.float32)
    dep2 = jax.random.normal(k_dep, (N2, C, H, W), jnp.float32)
    out2 = jax.block_until_ready(cat_fuse_forward(rgb2, dep2, params))
    ref2 = jax.block_until_ready(_reference_forward(rgb2, dep2, params))
    assert out2.shape == (N2, C, H, W)
    assert jnp.allclose(out2, ref2, atol=3e-2, rtol=3e-2), "tiled-case mismatch"

    print("KERNEL_OK")
</pallas_src>

<mosaic_0001>
module attributes {stable_mosaic.version = 11 : i64} {
  func.func @_cat_fuse_kernel(%arg0: memref<128x1024xbf16, #tpu.memory_space<vmem>>, %arg1: memref<1024x128xbf16, #tpu.memory_space<vmem>>, %arg2: memref<1x128xf32, #tpu.memory_space<vmem>>, %arg3: memref<128x128xf32, #tpu.memory_space<vmem>>) attributes {dimension_semantics = [], scalar_prefetch = 0 : i64, scratch_operands = 0 : i64, tpu.core_type = #tpu.core_type<tc>} {
    %c0 = arith.constant 0 : index
    %c0_0 = arith.constant 0 : index
    %0 = vector.load %arg0[%c0, %c0_0] : memref<128x1024xbf16, #tpu.memory_space<vmem>>, vector<128x1024xbf16>
    %c0_1 = arith.constant 0 : index
    %c0_2 = arith.constant 0 : index
    %1 = vector.load %arg1[%c0_1, %c0_2] : memref<1024x128xbf16, #tpu.memory_space<vmem>>, vector<1024x128xbf16>
    %cst = arith.constant dense<0.000000e+00> : vector<128x128xf32>
    %2 = tpu.matmul %0, %1, %cst {dimension_numbers = #tpu.dot_dimension_numbers<[1], [0], [0], [1], [0, 0, 1, 1], [], []>} : vector<128x1024xbf16>, vector<1024x128xbf16>, vector<128x128xf32> -> vector<128x128xf32>
    %c0_3 = arith.constant 0 : index
    %c0_4 = arith.constant 0 : index
    %3 = vector.load %arg2[%c0_3, %c0_4] : memref<1x128xf32, #tpu.memory_space<vmem>>, vector<1x128xf32>
    %4 = vector.broadcast %3 : vector<1x128xf32> to vector<128x128xf32>
    %5 = arith.addf %2, %4 : vector<128x128xf32>
    %cst_5 = arith.constant 0.000000e+00 : f32
    %6 = vector.broadcast %cst_5 : f32 to vector<128x128xf32>
    %7 = arith.maximumf %5, %6 : vector<128x128xf32>
    %c0_6 = arith.constant 0 : index
    %c0_7 = arith.constant 0 : index
    %8 = vector.load %arg3[%c0_6, %c0_7] : memref<128x128xf32, #tpu.memory_space<vmem>>, vector<128x128xf32>
    tpu.vector_store %arg3[%c0_6, %c0_7], %7 {strides = array<i32>} : memref<128x128xf32, #tpu.memory_space<vmem>>, vector<128x128xf32>,
    return
  }
}

</mosaic_0001>

<llo_original>
// kernel: cat_fuse_forward.2
$region0: #{cat_fuse_forward.2}
  #allocation0 [shape = 'u32[]', space=smem, size = 0x4, offset = 0x4, fixed_abs, tag = 'smem constant byte address 0x4 - core index']
  #allocation1 [shape = 'u32[72,128]{1,0:T(1,128)}', space=vmem, size = 0x9000, scoped, tag = 'internal scratch']
  #allocation2 [shape = 'u32[2048]{0}', space=vmem, size = 0x2000, scoped, tag = 'scoped memory for cat_fuse_forward.2']
  #allocation3 [shape = 'u32[2048]{0}', space=vmem, size = 0x2000, scoped, tag = 'scoped memory for cat_fuse_forward.2']
  #allocation4 [shape = 'u32[2048]{0}', space=vmem, size = 0x2000, scoped, tag = 'scoped memory for cat_fuse_forward.2']
  #allocation5 [shape = 'u32[2048]{0}', space=vmem, size = 0x2000, scoped, tag = 'scoped memory for cat_fuse_forward.2']
  #allocation6 [shape = 'u32[2048]{0}', space=vmem, size = 0x2000, scoped, tag = 'scoped memory for cat_fuse_forward.2']
  #allocation7 [shape = 'u32[2048]{0}', space=vmem, size = 0x2000, scoped, tag = 'scoped memory for cat_fuse_forward.2']
  #allocation8 [shape = 'u32[2048]{0}', space=vmem, size = 0x2000, scoped, tag = 'scoped memory for cat_fuse_forward.2']
  #allocation9 [shape = 'u32[2048]{0}', space=vmem, size = 0x2000, scoped, tag = 'scoped memory for cat_fuse_forward.2']
  #allocation10 [shape = 'u32[2048]{0}', space=vmem, size = 0x2000, scoped, tag = 'scoped memory for cat_fuse_forward.2']
  #allocation11 [shape = 'u32[2048]{0}', space=vmem, size = 0x2000, scoped, tag = 'scoped memory for cat_fuse_forward.2']
  #allocation12 [shape = 'u32[2048]{0}', space=vmem, size = 0x2000, scoped, tag = 'scoped memory for cat_fuse_forward.2']
  #allocation13 [shape = 'u32[2048]{0}', space=vmem, size = 0x2000, scoped, tag = 'scoped memory for cat_fuse_forward.2']
  #allocation14 [shape = 'u32[2048]{0}', space=vmem, size = 0x2000, scoped, tag = 'scoped memory for cat_fuse_forward.2']
  #allocation15 [shape = 'u32[2048]{0}', space=vmem, size = 0x2000, scoped, tag = 'scoped memory for cat_fuse_forward.2']
  #allocation16 [shape = 'u32[2048]{0}', space=vmem, size = 0x2000, scoped, tag = 'scoped memory for cat_fuse_forward.2']
  %s0 = inlined_call_operand.vmem [shape: bf16[864,48], index: 0, kind: input, shape index: {}]
  %s1 = inlined_call_operand.<no memory space> [shape: bf16[], index: 1, kind: input, shape index: {}]
  %s2 = inlined_call_operand.vmem [shape: bf16[128,864], index: 2, kind: input, shape index: {}]
  %s3 = inlined_call_operand.vmem [shape: f32[48], index: 3, kind: input, shape index: {}]
  %s4 = inlined_call_operand.<no memory space> [shape: f32[], index: 4, kind: input, shape index: {}]
  %s5 = inlined_call_operand.hbm [shape: f32[128,128], index: 5, kind: output, shape index: {}]
  %s6 = sld [smem:[#allocation0]]
  $region22: #{cat_fuse_forward.2} parent=0
    _
  %s8 = ssub.s32 1, %s6
  %s9 = scalar_select 0, %s8, %s6
  %v10 = vstv %s1
  %v11 = vunpack.i.l.bf16 %v10
  %v13 = vunpack.i.h.bf16 %v10
  %v15 = vstv %s1
  %v16 = vunpack.i.l.bf16 %v15
  %v18 = vunpack.i.h.bf16 %v15
  %v20 = vstv %s4
  $region1: #{cat_fuse_forward.2} parent=0
    #allocation17 [shape = 'u8[65536]{0}', space=vmem, size = 0x10000, scoped, tag = 'output window, operand 0, single buffered']
    #allocation18 [shape = 's32[1]{0}', space=sflag, size = 0x4, scoped, tag = 'scoped memory for cat_fuse_forward.2']
    #allocation19 [shape = 'u8[262144]{0}', space=vmem, size = 0x40000, dematerialized = true, scoped, tag = 'FusionAdapter Buffer %fusion.2 = bf16[128,1024]{1,0:T(8,128)(2,1)} fusion(%param_2.5, %param_1.18), kind=kLoop, calls=%fused_computation.3.clone, metadata={op_name="jit(cat_fuse_forward)/jit(_pad)/pad" stack_frame_id=13}']
    #allocation20 [shape = 'u8[262144]{0}', space=vmem, size = 0x40000, dematerialized = true, scoped, tag = 'FusionAdapter Buffer %fusion.1 = bf16[1024,128]{1,0:T(8,128)(2,1)} fusion(%param_0.25, %param_1.18), kind=kLoop, calls=%fused_computation.2.clone, metadata={op_name="jit(cat_fuse_forward)/jit(_pad)/pad" stack_frame_id=20}']
    #allocation21 [shape = 'u8[512]{0}', space=vmem, size = 0x400, dematerialized = true, scoped, tag = 'FusionAdapter Buffer %fusion.3 = f32[1,128]{1,0:T(1,128)} fusion(%param_3.3, %param_4), kind=kLoop, calls=%fused_computation.13.clone, metadata={op_name="jit(cat_fuse_forward)/reshape" stack_frame_id=23}']
    %21 = vsyncpa [#allocation18], 0
    // Predicated region
    $region2: #{cat_fuse_forward.2} parent=1 // pred_check
      _
    $region3: #{cat_fuse_forward.2} parent=1 // pred_check_branch
      %23 = sbr.rel (0) target = $region5
    $region4: #{cat_fuse_forward.2} parent=1 // pred_region
      _
    $region5: #{cat_fuse_forward.2} parent=1 // pred_fallthru
      _
    // Predicated region
    $region6: #{cat_fuse_forward.2} parent=1 // pred_check
      _
    $region7: #{cat_fuse_forward.2} parent=1 // pred_check_branch
      %25 = sbr.rel (0) target = $region9
    $region8: #{cat_fuse_forward.2} parent=1 // pred_region
      _
    $region9: #{cat_fuse_forward.2} parent=1 // pred_fallthru
      _
    // Predicated region
    $region10: #{cat_fuse_forward.2} parent=1 // pred_check
      _
    $region11: #{cat_fuse_forward.2} parent=1 // pred_check_branch
      %27 = sbr.rel (0) target = $region13
    $region12: #{cat_fuse_forward.2} parent=1 // pred_region
      _
    $region13: #{cat_fuse_forward.2} parent=1 // pred_fallthru
      _
    %v28 = vld [vmem:[%s2] sm:$0xf]
    %v29 = vunpack.c.l.bf16 %v28
    %v30 = vunpack.c.h.bf16 %v28
    %v31 = vlaneseq
    %v32 = vand.u32 %v31, 127
    %vm34 = vcmp.lt.s32.totalorder %v32, 864
    %v35 = vsel %vm34, %v29, %v11
    %v36 = vpack.c.bf16 0.0, %v35
    %s38 = ssub.s32 16, 1
    %39 = vst [vmem:[#allocation19] sm:%s38] %v36
    %s40 = scalar_lea.vmem %s2, 4
    %v41 = vld [vmem:[%s40] sm:$0xf]
    %v42 = vunpack.c.l.bf16 %v41
    %v43 = vunpack.c.h.bf16 %v41
    %v44 = vlaneseq
    %v45 = vand.u32 %v44, 127
    %v46 = vadd.s32 %v45, 128
    %vm47 = vcmp.lt.s32.totalorder %v46, 864
    %v48 = vsel %vm47, %v42, %v11
    %s49 = scalar_lea.vmem [#allocation19], 4
    %v50 = vpack.c.bf16 0.0, %v48
    %s52 = ssub.s32 16, 1
    %53 = vst [vmem:[%s49] sm:%s52] %v50
    %s54 = scalar_lea.vmem %s2, 8
    %v55 = vld [vmem:[%s54] sm:$0xf]
    %v56 = vunpack.c.l.bf16 %v55
    %v57 = vunpack.c.h.bf16 %v55
    %v58 = vlaneseq
    %v59 = vand.u32 %v58, 127
    %v60 = vadd.s32 %v59, 256
    %vm61 = vcmp.lt.s32.totalorder %v60, 864
    %v62 = vsel %vm61, %v56, %v11
    %s63 = scalar_lea.vmem [#allocation19], 8
    %v64 = vpack.c.bf16 0.0, %v62
    %s66 = ssub.s32 16, 1
    %67 = vst [vmem:[%s63] sm:%s66] %v64
    %s68 = scalar_lea.vmem %s2, 12
    %v69 = vld [vmem:[%s68] sm:$0xf]
    %v70 = vunpack.c.l.bf16 %v69
    %v71 = vunpack.c.h.bf16 %v69
    %v72 = vlaneseq
    %v73 = vand.u32 %v72, 127
    %v74 = vadd.s32 %v73, 384
    %vm75 = vcmp.lt.s32.totalorder %v74, 864
    %v76 = vsel %vm75, %v70, %v11
    %s77 = scalar_lea.vmem [#allocation19], 12
    %v78 = vpack.c.bf16 0.0, %v76
    %s80 = ssub.s32 16, 1
    %81 = vst [vmem:[%s77] sm:%s80] %v78
    %s82 = scalar_lea.vmem %s2, 16
    %v83 = vld [vmem:[%s82] sm:$0xf]
    %v84 = vunpack.c.l.bf16 %v83
    %v85 = vunpack.c.h.bf16 %v83
    %v86 = vlaneseq
    %v87 = vand.u32 %v86, 127
    %v88 = vadd.s32 %v87, 512
    %vm89 = vcmp.lt.s32.totalorder %v88, 864
    %v90 = vsel %vm89, %v84, %v11
    %s91 = scalar_lea.vmem [#allocation19], 16
    %v92 = vpack.c.bf16 0.0, %v90
    %s94 = ssub.s32 16, 1
    %95 = vst [vmem:[%s91] sm:%s94] %v92
    %s96 = scalar_lea.vmem %s2, 20
    %s98 = sor.u32 255, 127
    %s99 = sand.u32 %s98, 85
    %s100 = sshrl.u32 %s99, 1
    %s101 = sor.u32 %s99, %s100
    %s102 = sand.u32 51, %s101
    %s103 = sshrl.u32 %s102, 2
    %s104 = sor.u32 %s102, %s103
    %s105 = sand.u32 15, %s104
    %v106 = vld [vmem:[%s96] sm:%s105]
    %v107 = vunpack.c.l.bf16 %v106
    %v108 = vunpack.c.h.bf16 %v106
    %v109 = vlaneseq
    %v110 = vand.u32 %v109, 127
    %v111 = vadd.s32 %v110, 640
    %vm112 = vcmp.lt.s32.totalorder %v111, 864
    %v113 = vsel %vm112, %v107, %v11
    %s114 = scalar_lea.vmem [#allocation19], 20
    %v115 = vpack.c.bf16 0.0, %v113
    %s117 = ssub.s32 16, 1
    %118 = vst [vmem:[%s114] sm:%s117] %v115
    %s119 = scalar_lea.vmem %s2, 24
    %s121 = sor.u32 255, 127
    %s122 = sand.u32 %s121, 85
    %s123 = sshrl.u32 %s122, 1
    %s124 = sor.u32 %s122, %s123
    %s125 = sand.u32 51, %s124
    %s126 = sshrl.u32 %s125, 2
    %s127 = sor.u32 %s125, %s126
    %s128 = sand.u32 15, %s127
    %v129 = vld [vmem:[%s119] sm:%s128]
    %v130 = vunpack.c.l.bf16 %v129
    %v131 = vunpack.c.h.bf16 %v129
    %v132 = vlaneseq
    %v133 = vand.u32 %v132, 127
    %v134 = vadd.s32 %v133, 768
    %vm135 = vcmp.lt.s32.totalorder %v134, 864
    %v136 = vsel %vm135, %v130, %v11
    %s137 = scalar_lea.vmem [#allocation19], 24
    %v138 = vpack.c.bf16 0.0, %v136
    %s140 = ssub.s32 16, 1
    %141 = vst [vmem:[%s137] sm:%s140] %v138
    %s142 = scalar_lea.vmem [#allocation19], 28
    %v143 = vpack.c.bf16 0.0, %v11
    %s145 = ssub.s32 16, 1
    %146 = vst [vmem:[%s142] sm:%s145] %v143
    %s147 = scalar_lea.vmem %s2, 28
    %v148 = vld [vmem:[%s147] sm:$0xf]
    %v149 = vunpack.c.l.bf16 %v148
    %v150 = vunpack.c.h.bf16 %v148
    %v151 = vlaneseq
    %v152 = vand.u32 %v151, 127
    %vm154 = vcmp.lt.s32.totalorder %v152, 864
    %v155 = vsel %vm154, %v149, %v11
    %s156 = scalar_lea.vmem [#allocation19], 32
    %v157 = vpack.c.bf16 0.0, %v155
    %s159 = ssub.s32 16, 1
    %160 = vst [vmem:[%s156] sm:%s159] %v157
    %s161 = scalar_lea.vmem %s2, 32
    %v162 = vld [vmem:[%s161] sm:$0xf]
    %v163 = vunpack.c.l.bf16 %v162
    %v164 = vunpack.c.h.bf16 %v162
    %v165 = vlaneseq
    %v166 = vand.u32 %v165, 127
    %v167 = vadd.s32 %v166, 128
    %vm168 = vcmp.lt.s32.totalorder %v167, 864
    %v169 = vsel %vm168, %v163, %v11
    %s170 = scalar_lea.vmem [#allocation19], 36
    %v171 = vpack.c.bf16 0.0, %v169
    %s173 = ssub.s32 16, 1
    %174 = vst [vmem:[%s170] sm:%s173] %v171
    %s175 = scalar_lea.vmem %s2, 36
    %v176 = vld [vmem:[%s175] sm:$0xf]
    %v177 = vunpack.c.l.bf16 %v176
    %v178 = vunpack.c.h.bf16 %v176
    %v179 = vlaneseq
    %v180 = vand.u32 %v179, 127
    %v181 = vadd.s32 %v180, 256
    %vm182 = vcmp.lt.s32.totalorder %v181, 864
    %v183 = vsel %vm182, %v177, %v11
    %s184 = scalar_lea.vmem [#allocation19], 40
    %v185 = vpack.c.bf16 0.0, %v183
    %s187 = ssub.s32 16, 1
    %188 = vst [vmem:[%s184] sm:%s187] %v185
    %s189 = scalar_lea.vmem %s2, 40
    %v190 = vld [vmem:[%s189] sm:$0xf]
    %v191 = vunpack.c.l.bf16 %v190
    %v192 = vunpack.c.h.bf16 %v190
    %v193 = vlaneseq
    %v194 = vand.u32 %v193, 127
    %v195 = vadd.s32 %v194, 384
    %vm196 = vcmp.lt.s32.totalorder %v195, 864
    %v197 = vsel %vm196, %v191, %v11
    %s198 = scalar_lea.vmem [#allocation19], 44
    %v199 = vpack.c.bf16 0.0, %v197
    %s201 = ssub.s32 16, 1
    %202 = vst [vmem:[%s198] sm:%s201] %v199
    %s203 = scalar_lea.vmem %s2, 44
    %v204 = vld [vmem:[%s203] sm:$0xf]
    %v205 = vunpack.c.l.bf16 %v204
    %v206 = vunpack.c.h.bf16 %v204
    %v207 = vlaneseq
    %v208 = vand.u32 %v207, 127
    %v209 = vadd.s32 %v208, 512
    %vm210 = vcmp.lt.s32.totalorder %v209, 864
    %v211 = vsel %vm210, %v205, %v11
    %s212 = scalar_lea.vmem [#allocation19], 48
    %v213 = vpack.c.bf16 0.0, %v211
    %s215 = ssub.s32 16, 1
    %216 = vst [vmem:[%s212] sm:%s215] %v213
    %s217 = scalar_lea.vmem %s2, 48
    %s219 = sor.u32 255, 127
    %s220 = sand.u32 %s219, 85
    %s221 = sshrl.u32 %s220, 1
    %s222 = sor.u32 %s220, %s221
    %s223 = sand.u32 51, %s222
    %s224 = sshrl.u32 %s223, 2
    %s225 = sor.u32 %s223, %s224
    %s226 = sand.u32 15, %s225
    %v227 = vld [vmem:[%s217] sm:%s226]
    %v228 = vunpack.c.l.bf16 %v227
    %v229 = vunpack.c.h.bf16 %v227
    %v230 = vlaneseq
    %v231 = vand.u32 %v230, 127
    %v232 = vadd.s32 %v231, 640
    %vm233 = vcmp.lt.s32.totalorder %v232, 864
    %v234 = vsel %vm233, %v228, %v11
    %s235 = scalar_lea.vmem [#allocation19], 52
    %v236 = vpack.c.bf16 0.0, %v234
    %s238 = ssub.s32 16, 1
    %239 = vst [vmem:[%s235] sm:%s238] %v236
    %s240 = scalar_lea.vmem %s2, 52
    %s242 = sor.u32 255, 127
    %s243 = sand.u32 %s242, 85
    %s244 = sshrl.u32 %s243, 1
    %s245 = sor.u32 %s243, %s244
    %s246 = sand.u32 51, %s245
    %s247 = sshrl.u32 %s246, 2
    %s248 = sor.u32 %s246, %s247
    %s249 = sand.u32 15, %s248
    %v250 = vld [vmem:[%s240] sm:%s249]
    %v251 = vunpack.c.l.bf16 %v250
    %v252 = vunpack.c.h.bf16 %v250
    %v253 = vlaneseq
    %v254 = vand.u32 %v253, 127
    %v255 = vadd.s32 %v254, 768
    %vm256 = vcmp.lt.s32.totalorder %v255, 864
    %v257 = vsel %vm256, %v251, %v11
    %s258 = scalar_lea.vmem [#allocation19], 56
    %v259 = vpack.c.bf16 0.0, %v257
    %s261 = ssub.s32 16, 1
    %262 = vst [vmem:[%s258] sm:%s261] %v259
    %s263 = scalar_lea.vmem [#allocation19], 60
    %v264 = vpack.c.bf16 0.0, %v11
    %s266 = ssub.s32 16, 1
    %267 = vst [vmem:[%s263] sm:%s266] %v264
    %s268 = scalar_lea.vmem %s2, 56
    %v269 = vld [vmem:[%s268] sm:$0xf]
    %v270 = vunpack.c.l.bf16 %v269
    %v271 = vunpack.c.h.bf16 %v269
    %v272 = vlaneseq
    %v273 = vand.u32 %v272, 127
    %vm275 = vcmp.lt.s32.totalorder %v273, 864
    %v276 = vsel %vm275, %v270, %v11
    %s277 = scalar_lea.vmem [#allocation19], 64
    %v278 = vpack.c.bf16 0.0, %v276
    %s280 = ssub.s32 16, 1
    %281 = vst [vmem:[%s277] sm:%s280] %v278
    %s282 = scalar_lea.vmem %s2, 60
    %v283 = vld [vmem:[%s282] sm:$0xf]
    %v284 = vunpack.c.l.bf16 %v283
    %v285 = vunpack.c.h.bf16 %v283
    %v286 = vlaneseq
    %v287 = vand.u32 %v286, 127
    %v288 = vadd.s32 %v287, 128
    %vm289 = vcmp.lt.s32.totalorder %v288, 864
    %v290 = vsel %vm289, %v284, %v11
    %s291 = scalar_lea.vmem [#allocation19], 68
    %v292 = vpack.c.bf16 0.0, %v290
    %s294 = ssub.s32 16, 1
    %295 = vst [vmem:[%s291] sm:%s294] %v292
    %s296 = scalar_lea.vmem %s2, 64
    %v297 = vld [vmem:[%s296] sm:$0xf]
    %v298 = vunpack.c.l.bf16 %v297
    %v299 = vunpack.c.h.bf16 %v297
    %v300 = vlaneseq
    %v301 = vand.u32 %v300, 127
    %v302 = vadd.s32 %v301, 256
    %vm303 = vcmp.lt.s32.totalorder %v302, 864
    %v304 = vsel %vm303, %v298, %v11
    %s305 = scalar_lea.vmem [#allocation19], 72
    %v306 = vpack.c.bf16 0.0, %v304
    %s308 = ssub.s32 16, 1
    %309 = vst [vmem:[%s305] sm:%s308] %v306
    %s310 = scalar_lea.vmem %s2, 68
    %v311 = vld [vmem:[%s310] sm:$0xf]
    %v312 = vunpack.c.l.bf16 %v311
    %v313 = vunpack.c.h.bf16 %v311
    %v314 = vlaneseq
    %v315 = vand.u32 %v314, 127
    %v316 = vadd.s32 %v315, 384
    %vm317 = vcmp.lt.s32.totalorder %v316, 864
    %v318 = vsel %vm317, %v312, %v11
    %s319 = scalar_lea.vmem [#allocation19], 76
    %v320 = vpack.c.bf16 0.0, %v318
    %s322 = ssub.s32 16, 1
    %323 = vst [vmem:[%s319] sm:%s322] %v320
    %s324 = scalar_lea.vmem %s2, 72
    %v325 = vld [vmem:[%s324] sm:$0xf]
    %v326 = vunpack.c.l.bf16 %v325
    %v327 = vunpack.c.h.bf16 %v325
    %v328 = vlaneseq
    %v329 = vand.u32 %v328, 127
    %v330 = vadd.s32 %v329, 512
    %vm331 = vcmp.lt.s32.totalorder %v330, 864
    %v332 = vsel %vm331, %v326, %v11
    %s333 = scalar_lea.vmem [#allocation19], 80
    %v334 = vpack.c.bf16 0.0, %v332
    %s336 = ssub.s32 16, 1
    %337 = vst [vmem:[%s333] sm:%s336] %v334
    %s338 = scalar_lea.vmem %s2, 76
    %s340 = sor.u32 255, 127
    %s341 = sand.u32 %s340, 85
    %s342 = sshrl.u32 %s341, 1
    %s343 = sor.u32 %s341, %s342
    %s344 = sand.u32 51, %s343
    %s345 = sshrl.u32 %s344, 2
    %s346 = sor.u32 %s344, %s345
    %s347 = sand.u32 15, %s346
    %v348 = vld [vmem:[%s338] sm:%s347]
    %v349 = vunpack.c.l.bf16 %v348
    %v350 = vunpack.c.h.bf16 %v348
    %v351 = vlaneseq
    %v352 = vand.u32 %v351, 127
    %v353 = vadd.s32 %v352, 640
    %vm354 = vcmp.lt.s32.totalorder %v353, 864
    %v355 = vsel %vm354, %v349, %v11
    %s356 = scalar_lea.vmem [#allocation19], 84
    %v357 = vpack.c.bf16 0.0, %v355
    %s359 = ssub.s32 16, 1
    %360 = vst [vmem:[%s356] sm:%s359] %v357
    %s361 = scalar_lea.vmem %s2, 80
    %s363 = sor.u32 255, 127
    %s364 = sand.u32 %s363, 85
    %s365 = sshrl.u32 %s364, 1
    %s366 = sor.u32 %s364, %s365
    %s367 = sand.u32 51, %s366
    %s368 = sshrl.u32 %s367, 2
    %s369 = sor.u32 %s367, %s368
    %s370 = sand.u32 15, %s369
    %v371 = vld [vmem:[%s361] sm:%s370]
    %v372 = vunpack.c.l.bf16 %v371
    %v373 = vunpack.c.h.bf16 %v371
    %v374 = vlaneseq
    %v375 = vand.u32 %v374, 127
    %v376 = vadd.s32 %v375, 768
    %vm377 = vcmp.lt.s32.totalorder %v376, 864
    %v378 = vsel %vm377, %v372, %v11
    %s379 = scalar_lea.vmem [#allocation19], 88
    %v380 = vpack.c.bf16 0.0, %v378
    %s382 = ssub.s32 16, 1
    %383 = vst [vmem:[%s379] sm:%s382] %v380
    %s384 = scalar_lea.vmem [#allocation19], 92
    %v385 = vpack.c.bf16 0.0, %v11
    %s387 = ssub.s32 16, 1
    %388 = vst [vmem:[%s384] sm:%s387] %v385
    %s389 = scalar_lea.vmem %s2, 84
    %v390 = vld [vmem:[%s389] sm:$0xf]
    %v391 = vunpack.c.l.bf16 %v390
    %v392 = vunpack.c.h.bf16 %v390
    %v393 = vlaneseq
    %v394 = vand.u32 %v393, 127
    %vm396 = vcmp.lt.s32.totalorder %v394, 864
    %v397 = vsel %vm396, %v391, %v11
    %s398 = scalar_lea.vmem [#allocation19], 96
    %v399 = vpack.c.bf16 0.0, %v397
    %s401 = ssub.s32 16, 1
    %402 = vst [vmem:[%s398] sm:%s401] %v399
    %s403 = scalar_lea.vmem %s2, 88
    %v404 = vld [vmem:[%s403] sm:$0xf]
    %v405 = vunpack.c.l.bf16 %v404
    %v406 = vunpack.c.h.bf16 %v404
    %v407 = vlaneseq
    %v408 = vand.u32 %v407, 127
    %v409 = vadd.s32 %v408, 128
    %vm410 = vcmp.lt.s32.totalorder %v409, 864
    %v411 = vsel %vm410, %v405, %v11
    %s412 = scalar_lea.vmem [#allocation19], 100
    %v413 = vpack.c.bf16 0.0, %v411
    %s415 = ssub.s32 16, 1
    %416 = vst [vmem:[%s412] sm:%s415] %v413
    %s417 = scalar_lea.vmem %s2, 92
    %v418 = vld [vmem:[%s417] sm:$0xf]
    %v419 = vunpack.c.l.bf16 %v418
    %v420 = vunpack.c.h.bf16 %v418
    %v421 = vlaneseq
    %v422 = vand.u32 %v421, 127
    %v423 = vadd.s32 %v422, 256
    %vm424 = vcmp.lt.s32.totalorder %v423, 864
    %v425 = vsel %vm424, %v419, %v11
    %s426 = scalar_lea.vmem [#allocation19], 104
    %v427 = vpack.c.bf16 0.0, %v425
    %s429 = ssub.s32 16, 1
    %430 = vst [vmem:[%s426] sm:%s429] %v427
    %s431 = scalar_lea.vmem %s2, 96
    %v432 = vld [vmem:[%s431] sm:$0xf]
    %v433 = vunpack.c.l.bf16 %v432
    %v434 = vunpack.c.h.bf16 %v432
    %v435 = vlaneseq
    %v436 = vand.u32 %v435, 127
    %v437 = vadd.s32 %v436, 384
    %vm438 = vcmp.lt.s32.totalorder %v437, 864
    %v439 = vsel %vm438, %v433, %v11
    %s440 = scalar_lea.vmem [#allocation19], 108
    %v441 = vpack.c.bf16 0.0, %v439
    %s443 = ssub.s32 16, 1
    %444 = vst [vmem:[%s440] sm:%s443] %v441
    %s445 = scalar_lea.vmem %s2, 100
    %v446 = vld [vmem:[%s445] sm:$0xf]
    %v447 = vunpack.c.l.bf16 %v446
    %v448 = vunpack.c.h.bf16 %v446
    %v449 = vlaneseq
    %v450 = vand.u32 %v449, 127
    %v451 = vadd.s32 %v450, 512
    %vm452 = vcmp.lt.s32.totalorder %v451, 864
    %v453 = vsel %vm452, %v447, %v11
    %s454 = scalar_lea.vmem [#allocation19], 112
    %v455 = vpack.c.bf16 0.0, %v453
    %s457 = ssub.s32 16, 1
    %458 = vst [vmem:[%s454] sm:%s457] %v455
    %s459 = scalar_lea.vmem %s2, 104
    %s461 = sor.u32 255, 127
    %s462 = sand.u32 %s461, 85
    %s463 = sshrl.u32 %s462, 1
    %s464 = sor.u32 %s462, %s463
    %s465 = sand.u32 51, %s464
    %s466 = sshrl.u32 %s465, 2
    %s467 = sor.u32 %s465, %s466
    %s468 = sand.u32 15, %s467
    %v469 = vld [vmem:[%s459] sm:%s468]
    %v470 = vunpack.c.l.bf16 %v469
    %v471 = vunpack.c.h.bf16 %v469
    %v472 = vlaneseq
    %v473 = vand.u32 %v472, 127
    %v474 = vadd.s32 %v473, 640
    %vm475 = vcmp.lt.s32.totalorder %v474, 864
    %v476 = vsel %vm475, %v470, %v11
    %s477 = scalar_lea.vmem [#allocation19], 116
    %v478 = vpack.c.bf16 0.0, %v476
    %s480 = ssub.s32 16, 1
    %481 = vst [vmem:[%s477] sm:%s480] %v478
    %s482 = scalar_lea.vmem %s2, 108
    %s484 = sor.u32 255, 127
    %s485 = sand.u32 %s484, 85
    %s486 = sshrl.u32 %s485, 1
    %s487 = sor.u32 %s485, %s486
    %s488 = sand.u32 51, %s487
    %s489 = sshrl.u32 %s488, 2
    %s490 = sor.u32 %s488, %s489
    %s491 = sand.u32 15, %s490
    %v492 = vld [vmem:[%s482] sm:%s491]
    %v493 = vunpack.c.l.bf16 %v492
    %v494 = vunpack.c.h.bf16 %v492
    %v495 = vlaneseq
    %v496 = vand.u32 %v495, 127
    %v497 = vadd.s32 %v496, 768
    %vm498 = vcmp.lt.s32.totalorder %v497, 864
    %v499 = vsel %vm498, %v493, %v11
    %s500 = scalar_lea.vmem [#allocation19], 120
    %v501 = vpack.c.bf16 0.0, %v499
    %s503 = ssub.s32 16, 1
    %504 = vst [vmem:[%s500] sm:%s503] %v501
    %s505 = scalar_lea.vmem [#allocation19], 124
    %v506 = vpack.c.bf16 0.0, %v11
    %s508 = ssub.s32 16, 1
    %509 = vst [vmem:[%s505] sm:%s508] %v506
    %s510 = scalar_lea.vmem %s2, 112
    %v511 = vld [vmem:[%s510] sm:$0xf]
    %v512 = vunpack.c.l.bf16 %v511
    %v513 = vunpack.c.h.bf16 %v511
    %v514 = vlaneseq
    %v515 = vand.u32 %v514, 127
    %vm517 = vcmp.lt.s32.totalorder %v515, 864
    %v518 = vsel %vm517, %v512, %v11
    %s519 = scalar_lea.vmem [#allocation19], 128
    %v520 = vpack.c.bf16 0.0, %v518
    %s522 = ssub.s32 16, 1
    %523 = vst [vmem:[%s519] sm:%s522] %v520
    %s524 = scalar_lea.vmem %s2, 116
    %v525 = vld [vmem:[%s524] sm:$0xf]
    %v526 = vunpack.c.l.bf16 %v525
    %v527 = vunpack.c.h.bf16 %v525
    %v528 = vlaneseq
    %v529 = vand.u32 %v528, 127
    %v530 = vadd.s32 %v529, 128
    %vm531 = vcmp.lt.s32.totalorder %v530, 864
    %v532 = vsel %vm531, %v526, %v11
    %s533 = scalar_lea.vmem [#allocation19], 132
    %v534 = vpack.c.bf16 0.0, %v532
    %s536 = ssub.s32 16, 1
    %537 = vst [vmem:[%s533] sm:%s536] %v534
    %s538 = scalar_lea.vmem %s2, 120
    %v539 = vld [vmem:[%s538] sm:$0xf]
    %v540 = vunpack.c.l.bf16 %v539
    %v541 = vunpack.c.h.bf16 %v539
    %v542 = vlaneseq
    %v543 = vand.u32 %v542, 127
    %v544 = vadd.s32 %v543, 256
    %vm545 = vcmp.lt.s32.totalorder %v544, 864
    %v546 = vsel %vm545, %v540, %v11
    %s547 = scalar_lea.vmem [#allocation19], 136
    %v548 = vpack.c.bf16 0.0, %v546
    %s550 = ssub.s32 16, 1
    %551 = vst [vmem:[%s547] sm:%s550] %v548
    %s552 = scalar_lea.vmem %s2, 124
    %v553 = vld [vmem:[%s552] sm:$0xf]
    %v554 = vunpack.c.l.bf16 %v553
    %v555 = vunpack.c.h.bf16 %v553
    %v556 = vlaneseq
    %v557 = vand.u32 %v556, 127
    %v558 = vadd.s32 %v557, 384
    %vm559 = vcmp.lt.s32.totalorder %v558, 864
    %v560 = vsel %vm559, %v554, %v11
    %s561 = scalar_lea.vmem [#allocation19], 140
    %v562 = vpack.c.bf16 0.0, %v560
    %s564 = ssub.s32 16, 1
    %565 = vst [vmem:[%s561] sm:%s564] %v562
    %s566 = scalar_lea.vmem %s2, 128
    %v567 = vld [vmem:[%s566] sm:$0xf]
    %v568 = vunpack.c.l.bf16 %v567
    %v569 = vunpack.c.h.bf16 %v567
    %v570 = vlaneseq
    %v571 = vand.u32 %v570, 127
    %v572 = vadd.s32 %v571, 512
    %vm573 = vcmp.lt.s32.totalorder %v572, 864
    %v574 = vsel %vm573, %v568, %v11
    %s575 = scalar_lea.vmem [#allocation19], 144
    %v576 = vpack.c.bf16 0.0, %v574
    %s578 = ssub.s32 16, 1
    %579 = vst [vmem:[%s575] sm:%s578] %v576
    %s580 = scalar_lea.vmem %s2, 132
    %s582 = sor.u32 255, 127
    %s583 = sand.u32 %s582, 85
    %s584 = sshrl.u32 %s583, 1
    %s585 = sor.u32 %s583, %s584
    %s586 = sand.u32 51, %s585
    %s587 = sshrl.u32 %s586, 2
    %s588 = sor.u32 %s586, %s587
    %s589 = sand.u32 15, %s588
    %v590 = vld [vmem:[%s580] sm:%s589]
    %v591 = vunpack.c.l.bf16 %v590
    %v592 = vunpack.c.h.bf16 %v590
    %v593 = vlaneseq
    %v594 = vand.u32 %v593, 127
    %v595 = vadd.s32 %v594, 640
    %vm596 = vcmp.lt.s32.totalorder %v595, 864
    %v597 = vsel %vm596, %v591, %v11
    %s598 = scalar_lea.vmem [#allocation19], 148
    %v599 = vpack.c.bf16 0.0, %v597
    %s601 = ssub.s32 16, 1
    %602 = vst [vmem:[%s598] sm:%s601] %v599
    %s603 = scalar_lea.vmem %s2, 136
    %s605 = sor.u32 255, 127
    %s606 = sand.u32 %s605, 85
    %s607 = sshrl.u32 %s606, 1
    %s608 = sor.u32 %s606, %s607
    %s609 = sand.u32 51, %s608
    %s610 = sshrl.u32 %s609, 2
    %s611 = sor.u32 %s609, %s610
    %s612 = sand.u32 15, %s611
    %v613 = vld [vmem:[%s603] sm:%s612]
    %v614 = vunpack.c.l.bf16 %v613
    %v615 = vunpack.c.h.bf16 %v613
    %v616 = vlaneseq
    %v617 = vand.u32 %v616, 127
    %v618 = vadd.s32 %v617, 768
    %vm619 = vcmp.lt.s32.totalorder %v618, 864
    %v620 = vsel %vm619, %v614, %v11
    %s621 = scalar_lea.vmem [#allocation19], 152
    %v622 = vpack.c.bf16 0.0, %v620
    %s624 = ssub.s32 16, 1
    %625 = vst [vmem:[%s621] sm:%s624] %v622
    %s626 = scalar_lea.vmem [#allocation19], 156
    %v627 = vpack.c.bf16 0.0, %v11
    %s629 = ssub.s32 16, 1
    %630 = vst [vmem:[%s626] sm:%s629] %v627
    %s631 = scalar_lea.vmem %s2, 140
    %v632 = vld [vmem:[%s631] sm:$0xf]
    %v633 = vunpack.c.l.bf16 %v632
    %v634 = vunpack.c.h.bf16 %v632
    %v635 = vlaneseq
    %v636 = vand.u32 %v635, 127
    %vm638 = vcmp.lt.s32.totalorder %v636, 864
    %v639 = vsel %vm638, %v633, %v11
    %s640 = scalar_lea.vmem [#allocation19], 160
    %v641 = vpack.c.bf16 0.0, %v639
    %s643 = ssub.s32 16, 1
    %644 = vst [vmem:[%s640] sm:%s643] %v641
    %s645 = scalar_lea.vmem %s2, 144
    %v646 = vld [vmem:[%s645] sm:$0xf]
    %v647 = vunpack.c.l.bf16 %v646
    %v648 = vunpack.c.h.bf16 %v646
    %v649 = vlaneseq
    %v650 = vand.u32 %v649, 127
    %v651 = vadd.s32 %v650, 128
    %vm652 = vcmp.lt.s32.totalorder %v651, 864
    %v653 = vsel %vm652, %v647, %v11
    %s654 = scalar_lea.vmem [#allocation19], 164
    %v655 = vpack.c.bf16 0.0, %v653
    %s657 = ssub.s32 16, 1
    %658 = vst [vmem:[%s654] sm:%s657] %v655
    %s659 = scalar_lea.vmem %s2, 148
    %v660 = vld [vmem:[%s659] sm:$0xf]
    %v661 = vunpack.c.l.bf16 %v660
    %v662 = vunpack.c.h.bf16 %v660
    %v663 = vlaneseq
    %v664 = vand.u32 %v663, 127
    %v665 = vadd.s32 %v664, 256
    %vm666 = vcmp.lt.s32.totalorder %v665, 864
    %v667 = vsel %vm666, %v661, %v11
    %s668 = scalar_lea.vmem [#allocation19], 168
    %v669 = vpack.c.bf16 0.0, %v667
    %s671 = ssub.s32 16, 1
    %672 = vst [vmem:[%s668] sm:%s671] %v669
    %s673 = scalar_lea.vmem %s2, 152
    %v674 = vld [vmem:[%s673] sm:$0xf]
    %v675 = vunpack.c.l.bf16 %v674
    %v676 = vunpack.c.h.bf16 %v674
    %v677 = vlaneseq
    %v678 = vand.u32 %v677, 127
    %v679 = vadd.s32 %v678, 384
    %vm680 = vcmp.lt.s32.totalorder %v679, 864
    %v681 = vsel %vm680, %v675, %v11
    %s682 = scalar_lea.vmem [#allocation19], 172
    %v683 = vpack.c.bf16 0.0, %v681
    %s685 = ssub.s32 16, 1
    %686 = vst [vmem:[%s682] sm:%s685] %v683
    %s687 = scalar_lea.vmem %s2, 156
    %v688 = vld [vmem:[%s687] sm:$0xf]
    %v689 = vunpack.c.l.bf16 %v688
    %v690 = vunpack.c.h.bf16 %v688
    %v691 = vlaneseq
    %v692 = vand.u32 %v691, 127
    %v693 = vadd.s32 %v692, 512
    %vm694 = vcmp.lt.s32.totalorder %v693, 864
    %v695 = vsel %vm694, %v689, %v11
    %s696 = scalar_lea.vmem [#allocation19], 176
    %v697 = vpack.c.bf16 0.0, %v695
    %s699 = ssub.s32 16, 1
    %700 = vst [vmem:[%s696] sm:%s699] %v697
    %s701 = scalar_lea.vmem %s2, 160
    %s703 = sor.u32 255, 127
    %s704 = sand.u32 %s703, 85
    %s705 = sshrl.u32 %s704, 1
    %s706 = sor.u32 %s704, %s705
    %s707 = sand.u32 51, %s706
    %s708 = sshrl.u32 %s707, 2
    %s709 = sor.u32 %s707, %s708
    %s710 = sand.u32 15, %s709
    %v711 = vld [vmem:[%s701] sm:%s710]
    %v712 = vunpack.c.l.bf16 %v711
    %v713 = vunpack.c.h.bf16 %v711
    %v714 = vlaneseq
    %v715 = vand.u32 %v714, 127
    %v716 = vadd.s32 %v715, 640
    %vm717 = vcmp.lt.s32.totalorder %v716, 864
    %v718 = vsel %vm717, %v712, %v11
    %s719 = scalar_lea.vmem [#allocation19], 180
    %v720 = vpack.c.bf16 0.0, %v718
    %s722 = ssub.s32 16, 1
    %723 = vst [vmem:[%s719] sm:%s722] %v720
    %s724 = scalar_lea.vmem %s2, 164
    %s726 = sor.u32 255, 127
    %s727 = sand.u32 %s726, 85
    %s728 = sshrl.u32 %s727, 1
    %s729 = sor.u32 %s727, %s728
    %s730 = sand.u32 51, %s729
    %s731 = sshrl.u32 %s730, 2
    %s732 = sor.u32 %s730, %s731
    %s733 = sand.u32 15, %s732
    %v734 = vld [vmem:[%s724] sm:%s733]
    %v735 = vunpack.c.l.bf16 %v734
    %v736 = vunpack.c.h.bf16 %v734
    %v737 = vlaneseq
    %v738 = vand.u32 %v737, 127
    %v739 = vadd.s32 %v738, 768
    %vm740 = vcmp.lt.s32.totalorder %v739, 864
    %v741 = vsel %vm740, %v735, %v11
    %s742 = scalar_lea.vmem [#allocation19], 184
    %v743 = vpack.c.bf16 0.0, %v741
    %s745 = ssub.s32 16, 1
    %746 = vst [vmem:[%s742] sm:%s745] %v743
    %s747 = scalar_lea.vmem [#allocation19], 188
    %v748 = vpack.c.bf16 0.0, %v11
    %s750 = ssub.s32 16, 1
    %751 = vst [vmem:[%s747] sm:%s750] %v748
    %s752 = scalar_lea.vmem %s2, 168
    %v753 = vld [vmem:[%s752] sm:$0xf]
    %v754 = vunpack.c.l.bf16 %v753
    %v755 = vunpack.c.h.bf16 %v753
    %v756 = vlaneseq
    %v757 = vand.u32 %v756, 127
    %vm759 = vcmp.lt.s32.totalorder %v757, 864
    %v760 = vsel %vm759, %v754, %v11
    %s761 = scalar_lea.vmem [#allocation19], 192
    %v762 = vpack.c.bf16 0.0, %v760
    %s764 = ssub.s32 16, 1
    %765 = vst [vmem:[%s761] sm:%s764] %v762
    %s766 = scalar_lea.vmem %s2, 172
    %v767 = vld [vmem:[%s766] sm:$0xf]
    %v768 = vunpack.c.l.bf16 %v767
    %v769 = vunpack.c.h.bf16 %v767
    %v770 = vlaneseq
    %v771 = vand.u32 %v770, 127
    %v772 = vadd.s32 %v771, 128
    %vm773 = vcmp.lt.s32.totalorder %v772, 864
    %v774 = vsel %vm773, %v768, %v11
    %s775 = scalar_lea.vmem [#allocation19], 196
    %v776 = vpack.c.bf16 0.0, %v774
    %s778 = ssub.s32 16, 1
    %779 = vst [vmem:[%s775] sm:%s778] %v776
    %s780 = scalar_lea.vmem %s2, 176
    %v781 = vld [vmem:[%s780] sm:$0xf]
    %v782 = vunpack.c.l.bf16 %v781
    %v783 = vunpack.c.h.bf16 %v781
    %v784 = vlaneseq
    %v785 = vand.u32 %v784, 127
    %v786 = vadd.s32 %v785, 256
    %vm787 = vcmp.lt.s32.totalorder %v786, 864
    %v788 = vsel %vm787, %v782, %v11
    %s789 = scalar_lea.vmem [#allocation19], 200
    %v790 = vpack.c.bf16 0.0, %v788
    %s792 = ssub.s32 16, 1
    %793 = vst [vmem:[%s789] sm:%s792] %v790
    %s794 = scalar_lea.vmem %s2, 180
    %v795 = vld [vmem:[%s794] sm:$0xf]
    %v796 = vunpack.c.l.bf16 %v795
    %v797 = vunpack.c.h.bf16 %v795
    %v798 = vlaneseq
    %v799 = vand.u32 %v798, 127
    %v800 = vadd.s32 %v799, 384
    %vm801 = vcmp.lt.s32.totalorder %v800, 864
    %v802 = vsel %vm801, %v796, %v11
    %s803 = scalar_lea.vmem [#allocation19], 204
    %v804 = vpack.c.bf16 0.0, %v802
    %s806 = ssub.s32 16, 1
    %807 = vst [vmem:[%s803] sm:%s806] %v804
    %s808 = scalar_lea.vmem %s2, 184
    %v809 = vld [vmem:[%s808] sm:$0xf]
    %v810 = vunpack.c.l.bf16 %v809
    %v811 = vunpack.c.h.bf16 %v809
    %v812 = vlaneseq
    %v813 = vand.u32 %v812, 127
    %v814 = vadd.s32 %v813, 512
    %vm815 = vcmp.lt.s32.totalorder %v814, 864
    %v816 = vsel %vm815, %v810, %v11
    %s817 = scalar_lea.vmem [#allocation19], 208
    %v818 = vpack.c.bf16 0.0, %v816
    %s820 = ssub.s32 16, 1
    %821 = vst [vmem:[%s817] sm:%s820] %v818
    %s822 = scalar_lea.vmem %s2, 188
    %s824 = sor.u32 255, 127
    %s825 = sand.u32 %s824, 85
    %s826 = sshrl.u32 %s825, 1
    %s827 = sor.u32 %s825, %s826
    %s828 = sand.u32 51, %s827
    %s829 = sshrl.u32 %s828, 2
    %s830 = sor.u32 %s828, %s829
    %s831 = sand.u32 15, %s830
    %v832 = vld [vmem:[%s822] sm:%s831]
    %v833 = vunpack.c.l.bf16 %v832
    %v834 = vunpack.c.h.bf16 %v832
    %v835 = vlaneseq
    %v836 = vand.u32 %v835, 127
    %v837 = vadd.s32 %v836, 640
    %vm838 = vcmp.lt.s32.totalorder %v837, 864
    %v839 = vsel %vm838, %v833, %v11
    %s840 = scalar_lea.vmem [#allocation19], 212
    %v841 = vpack.c.bf16 0.0, %v839
    %s843 = ssub.s32 16, 1
    %844 = vst [vmem:[%s840] sm:%s843] %v841
    %s845 = scalar_lea.vmem %s2, 192
    %s847 = sor.u32 255, 127
    %s848 = sand.u32 %s847, 85
    %s849 = sshrl.u32 %s848, 1
    %s850 = sor.u32 %s848, %s849
    %s851 = sand.u32 51, %s850
    %s852 = sshrl.u32 %s851, 2
    %s853 = sor.u32 %s851, %s852
    %s854 = sand.u32 15, %s853
    %v855 = vld [vmem:[%s845] sm:%s854]
    %v856 = vunpack.c.l.bf16 %v855
    %v857 = vunpack.c.h.bf16 %v855
    %v858 = vlaneseq
    %v859 = vand.u32 %v858, 127
    %v860 = vadd.s32 %v859, 768
    %vm861 = vcmp.lt.s32.totalorder %v860, 864
    %v862 = vsel %vm861, %v856, %v11
    %s863 = scalar_lea.vmem [#allocation19], 216
    %v864 = vpack.c.bf16 0.0, %v862
    %s866 = ssub.s32 16, 1
    %867 = vst [vmem:[%s863] sm:%s866] %v864
    %s868 = scalar_lea.vmem [#allocation19], 220
    %v869 = vpack.c.bf16 0.0, %v11
    %s871 = ssub.s32 16, 1
    %872 = vst [vmem:[%s868] sm:%s871] %v869
    %s873 = scalar_lea.vmem %s2, 196
    %v874 = vld [vmem:[%s873] sm:$0xf]
    %v875 = vunpack.c.l.bf16 %v874
    %v876 = vunpack.c.h.bf16 %v874
    %v877 = vlaneseq
    %v878 = vand.u32 %v877, 127
    %vm880 = vcmp.lt.s32.totalorder %v878, 864
    %v881 = vsel %vm880, %v875, %v11
    %s882 = scalar_lea.vmem [#allocation19], 224
    %v883 = vpack.c.bf16 0.0, %v881
    %s885 = ssub.s32 16, 1
    %886 = vst [vmem:[%s882] sm:%s885] %v883
    %s887 = scalar_lea.vmem %s2, 200
    %v888 = vld [vmem:[%s887] sm:$0xf]
    %v889 = vunpack.c.l.bf16 %v888
    %v890 = vunpack.c.h.bf16 %v888
    %v891 = vlaneseq
    %v892 = vand.u32 %v891, 127
    %v893 = vadd.s32 %v892, 128
    %vm894 = vcmp.lt.s32.totalorder %v893, 864
    %v895 = vsel %vm894, %v889, %v11
    %s896 = scalar_lea.vmem [#allocation19], 228
    %v897 = vpack.c.bf16 0.0, %v895
    %s899 = ssub.s32 16, 1
    %900 = vst [vmem:[%s896] sm:%s899] %v897
    %s901 = scalar_lea.vmem %s2, 204
    %v902 = vld [vmem:[%s901] sm:$0xf]
    %v903 = vunpack.c.l.bf16 %v902
    %v904 = vunpack.c.h.bf16 %v902
    %v905 = vlaneseq
    %v906 = vand.u32 %v905, 127
    %v907 = vadd.s32 %v906, 256
    %vm908 = vcmp.lt.s32.totalorder %v907, 864
    %v909 = vsel %vm908, %v903, %v11
    %s910 = scalar_lea.vmem [#allocation19], 232
    %v911 = vpack.c.bf16 0.0, %v909
    %s913 = ssub.s32 16, 1
    %914 = vst [vmem:[%s910] sm:%s913] %v911
    %s915 = scalar_lea.vmem %s2, 208
    %v916 = vld [vmem:[%s915] sm:$0xf]
    %v917 = vunpack.c.l.bf16 %v916
    %v918 = vunpack.c.h.bf16 %v916
    %v919 = vlaneseq
    %v920 = vand.u32 %v919, 127
    %v921 = vadd.s32 %v920, 384
    %vm922 = vcmp.lt.s32.totalorder %v921, 864
    %v923 = vsel %vm922, %v917, %v11
    %s924 = scalar_lea.vmem [#allocation19], 236
    %v925 = vpack.c.bf16 0.0, %v923
    %s927 = ssub.s32 16, 1
    %928 = vst [vmem:[%s924] sm:%s927] %v925
    %s929 = scalar_lea.vmem %s2, 212
    %v930 = vld [vmem:[%s929] sm:$0xf]
    %v931 = vunpack.c.l.bf16 %v930
    %v932 = vunpack.c.h.bf16 %v930
    %v933 = vlaneseq
    %v934 = vand.u32 %v933, 127
    %v935 = vadd.s32 %v934, 512
    %vm936 = vcmp.lt.s32.totalorder %v935, 864
    %v937 = vsel %vm936, %v931, %v11
    %s938 = scalar_lea.vmem [#allocation19], 240
    %v939 = vpack.c.bf16 0.0, %v937
    %s941 = ssub.s32 16, 1
    %942 = vst [vmem:[%s938] sm:%s941] %v939
    %s943 = scalar_lea.vmem %s2, 216
    %s945 = sor.u32 255, 127
    %s946 = sand.u32 %s945, 85
    %s947 = sshrl.u32 %s946, 1
    %s948 = sor.u32 %s946, %s947
    %s949 = sand.u32 51, %s948
    %s950 = sshrl.u32 %s949, 2
    %s951 = sor.u32 %s949, %s950
    %s952 = sand.u32 15, %s951
    %v953 = vld [vmem:[%s943] sm:%s952]
    %v954 = vunpack.c.l.bf16 %v953
    %v955 = vunpack.c.h.bf16 %v953
    %v956 = vlaneseq
    %v957 = vand.u32 %v956, 127
    %v958 = vadd.s32 %v957, 640
    %vm959 = vcmp.lt.s32.totalorder %v958, 864
    %v960 = vsel %vm959, %v954, %v11
    %s961 = scalar_lea.vmem [#allocation19], 244
    %v962 = vpack.c.bf16 0.0, %v960
    %s964 = ssub.s32 16, 1
    %965 = vst [vmem:[%s961] sm:%s964] %v962
    %s966 = scalar_lea.vmem %s2, 220
    %s968 = sor.u32 255, 127
    %s969 = sand.u32 %s968, 85
    %s970 = sshrl.u32 %s969, 1
    %s971 = sor.u32 %s969, %s970
    %s972 = sand.u32 51, %s971
    %s973 = sshrl.u32 %s972, 2
    %s974 = sor.u32 %s972, %s973
    %s975 = sand.u32 15, %s974
    %v976 = vld [vmem:[%s966] sm:%s975]
    %v977 = vunpack.c.l.bf16 %v976
    %v978 = vunpack.c.h.bf16 %v976
    %v979 = vlaneseq
    %v980 = vand.u32 %v979, 127
    %v981 = vadd.s32 %v980, 768
    %vm982 = vcmp.lt.s32.totalorder %v981, 864
    %v983 = vsel %vm982, %v977, %v11
    %s984 = scalar_lea.vmem [#allocation19], 248
    %v985 = vpack.c.bf16 0.0, %v983
    %s987 = ssub.s32 16, 1
    %988 = vst [vmem:[%s984] sm:%s987] %v985
    %s989 = scalar_lea.vmem [#allocation19], 252
    %v990 = vpack.c.bf16 0.0, %v11
    %s992 = ssub.s32 16, 1
    %993 = vst [vmem:[%s989] sm:%s992] %v990
    %s994 = scalar_lea.vmem %s2, 224
    %v995 = vld [vmem:[%s994] sm:$0xf]
    %v996 = vunpack.c.l.bf16 %v995
    %v997 = vunpack.c.h.bf16 %v995
    %v998 = vlaneseq
    %v999 = vand.u32 %v998, 127
    %vm1001 = vcmp.lt.s32.totalorder %v999, 864
    %v1002 = vsel %vm1001, %v996, %v11
    %s1003 = scalar_lea.vmem [#allocation19], 256
    %v1004 = vpack.c.bf16 0.0, %v1002
    %s1006 = ssub.s32 16, 1
    %1007 = vst [vmem:[%s1003] sm:%s1006] %v1004
    %s1008 = scalar_lea.vmem %s2, 228
    %v1009 = vld [vmem:[%s1008] sm:$0xf]
    %v1010 = vunpack.c.l.bf16 %v1009
    %v1011 = vunpack.c.h.bf16 %v1009
    %v1012 = vlaneseq
    %v1013 = vand.u32 %v1012, 127
    %v1014 = vadd.s32 %v1013, 128
    %vm1015 = vcmp.lt.s32.totalorder %v1014, 864
    %v1016 = vsel %vm1015, %v1010, %v11
    %s1017 = scalar_lea.vmem [#allocation19], 260
    %v1018 = vpack.c.bf16 0.0, %v1016
    %s1020 = ssub.s32 16, 1
    %1021 = vst [vmem:[%s1017] sm:%s1020] %v1018
    %s1022 = scalar_lea.vmem %s2, 232
    %v1023 = vld [vmem:[%s1022] sm:$0xf]
    %v1024 = vunpack.c.l.bf16 %v1023
    %v1025 = vunpack.c.h.bf16 %v1023
    %v1026 = vlaneseq
    %v1027 = vand.u32 %v1026, 127
    %v1028 = vadd.s32 %v1027, 256
    %vm1029 = vcmp.lt.s32.totalorder %v1028, 864
    %v1030 = vsel %vm1029, %v1024, %v11
    %s1031 = scalar_lea.vmem [#allocation19], 264
    %v1032 = vpack.c.bf16 0.0, %v1030
    %s1034 = ssub.s32 16, 1
    %1035 = vst [vmem:[%s1031] sm:%s1034] %v1032
    %s1036 = scalar_lea.vmem %s2, 236
    %v1037 = vld [vmem:[%s1036] sm:$0xf]
    %v1038 = vunpack.c.l.bf16 %v1037
    %v1039 = vunpack.c.h.bf16 %v1037
    %v1040 = vlaneseq
    %v1041 = vand.u32 %v1040, 127
    %v1042 = vadd.s32 %v1041, 384
    %vm1043 = vcmp.lt.s32.totalorder %v1042, 864
    %v1044 = vsel %vm1043, %v1038, %v11
    %s1045 = scalar_lea.vmem [#allocation19], 268
    %v1046 = vpack.c.bf16 0.0, %v1044
    %s1048 = ssub.s32 16, 1
    %1049 = vst [vmem:[%s1045] sm:%s1048] %v1046
    %s1050 = scalar_lea.vmem %s2, 240
    %v1051 = vld [vmem:[%s1050] sm:$0xf]
    %v1052 = vunpack.c.l.bf16 %v1051
    %v1053 = vunpack.c.h.bf16 %v1051
    %v1054 = vlaneseq
    %v1055 = vand.u32 %v1054, 127
    %v1056 = vadd.s32 %v1055, 512
    %vm1057 = vcmp.lt.s32.totalorder %v1056, 864
    %v1058 = vsel %vm1057, %v1052, %v11
    %s1059 = scalar_lea.vmem [#allocation19], 272
    %v1060 = vpack.c.bf16 0.0, %v1058
    %s1062 = ssub.s32 16, 1
    %1063 = vst [vmem:[%s1059] sm:%s1062] %v1060
    %s1064 = scalar_lea.vmem %s2, 244
    %s1066 = sor.u32 255, 127
    %s1067 = sand.u32 %s1066, 85
    %s1068 = sshrl.u32 %s1067, 1
    %s1069 = sor.u32 %s1067, %s1068
    %s1070 = sand.u32 51, %s1069
    %s1071 = sshrl.u32 %s1070, 2
    %s1072 = sor.u32 %s1070, %s1071
    %s1073 = sand.u32 15, %s1072
    %v1074 = vld [vmem:[%s1064] sm:%s1073]
    %v1075 = vunpack.c.l.bf16 %v1074
    %v1076 = vunpack.c.h.bf16 %v1074
    %v1077 = vlaneseq
    %v1078 = vand.u32 %v1077, 127
    %v1079 = vadd.s32 %v1078, 640
    %vm1080 = vcmp.lt.s32.totalorder %v1079, 864
    %v1081 = vsel %vm1080, %v1075, %v11
    %s1082 = scalar_lea.vmem [#allocation19], 276
    %v1083 = vpack.c.bf16 0.0, %v1081
    %s1085 = ssub.s32 16, 1
    %1086 = vst [vmem:[%s1082] sm:%s1085] %v1083
    %s1087 = scalar_lea.vmem %s2, 248
    %s1089 = sor.u32 255, 127
    %s1090 = sand.u32 %s1089, 85
    %s1091 = sshrl.u32 %s1090, 1
    %s1092 = sor.u32 %s1090, %s1091
    %s1093 = sand.u32 51, %s1092
    %s1094 = sshrl.u32 %s1093, 2
    %s1095 = sor.u32 %s1093, %s1094
    %s1096 = sand.u32 15, %s1095
    %v1097 = vld [vmem:[%s1087] sm:%s1096]
    %v1098 = vunpack.c.l.bf16 %v1097
    %v1099 = vunpack.c.h.bf16 %v1097
    %v1100 = vlaneseq
    %v1101 = vand.u32 %v1100, 127
    %v1102 = vadd.s32 %v1101, 768
    %vm1103 = vcmp.lt.s32.totalorder %v1102, 864
    %v1104 = vsel %vm1103, %v1098, %v11
    %s1105 = scalar_lea.vmem [#allocation19], 280
    %v1106 = vpack.c.bf16 0.0, %v1104
    %s1108 = ssub.s32 16, 1
    %1109 = vst [vmem:[%s1105] sm:%s1108] %v1106
    %s1110 = scalar_lea.vmem [#allocation19], 284
    %v1111 = vpack.c.bf16 0.0, %v11
    %s1113 = ssub.s32 16, 1
    %1114 = vst [vmem:[%s1110] sm:%s1113] %v1111
    %s1115 = scalar_lea.vmem %s2, 252
    %v1116 = vld [vmem:[%s1115] sm:$0xf]
    %v1117 = vunpack.c.l.bf16 %v1116
    %v1118 = vunpack.c.h.bf16 %v1116
    %v1119 = vlaneseq
    %v1120 = vand.u32 %v1119, 127
    %vm1122 = vcmp.lt.s32.totalorder %v1120, 864
    %v1123 = vsel %vm1122, %v1117, %v11
    %s1124 = scalar_lea.vmem [#allocation19], 288
    %v1125 = vpack.c.bf16 0.0, %v1123
    %s1127 = ssub.s32 16, 1
    %1128 = vst [vmem:[%s1124] sm:%s1127] %v1125
    %s1129 = scalar_lea.vmem %s2, 256
    %v1130 = vld [vmem:[%s1129] sm:$0xf]
    %v1131 = vunpack.c.l.bf16 %v1130
    %v1132 = vunpack.c.h.bf16 %v1130
    %v1133 = vlaneseq
    %v1134 = vand.u32 %v1133, 127
    %v1135 = vadd.s32 %v1134, 128
    %vm1136 = vcmp.lt.s32.totalorder %v1135, 864
    %v1137 = vsel %vm1136, %v1131, %v11
    %s1138 = scalar_lea.vmem [#allocation19], 292
    %v1139 = vpack.c.bf16 0.0, %v1137
    %s1141 = ssub.s32 16, 1
    %1142 = vst [vmem:[%s1138] sm:%s1141] %v1139
    %s1143 = scalar_lea.vmem %s2, 260
    %v1144 = vld [vmem:[%s1143] sm:$0xf]
    %v1145 = vunpack.c.l.bf16 %v1144
    %v1146 = vunpack.c.h.bf16 %v1144
    %v1147 = vlaneseq
    %v1148 = vand.u32 %v1147, 127
    %v1149 = vadd.s32 %v1148, 256
    %vm1150 = vcmp.lt.s32.totalorder %v1149, 864
    %v1151 = vsel %vm1150, %v1145, %v11
    %s1152 = scalar_lea.vmem [#allocation19], 296
    %v1153 = vpack.c.bf16 0.0, %v1151
    %s1155 = ssub.s32 16, 1
    %1156 = vst [vmem:[%s1152] sm:%s1155] %v1153
    %s1157 = scalar_lea.vmem %s2, 264
    %v1158 = vld [vmem:[%s1157] sm:$0xf]
    %v1159 = vunpack.c.l.bf16 %v1158
    %v1160 = vunpack.c.h.bf16 %v1158
    %v1161 = vlaneseq
    %v1162 = vand.u32 %v1161, 127
    %v1163 = vadd.s32 %v1162, 384
    %vm1164 = vcmp.lt.s32.totalorder %v1163, 864
    %v1165 = vsel %vm1164, %v1159, %v11
    %s1166 = scalar_lea.vmem [#allocation19], 300
    %v1167 = vpack.c.bf16 0.0, %v1165
    %s1169 = ssub.s32 16, 1
    %1170 = vst [vmem:[%s1166] sm:%s1169] %v1167
    %s1171 = scalar_lea.vmem %s2, 268
    %v1172 = vld [vmem:[%s1171] sm:$0xf]
    %v1173 = vunpack.c.l.bf16 %v1172
    %v1174 = vunpack.c.h.bf16 %v1172
    %v1175 = vlaneseq
    %v1176 = vand.u32 %v1175, 127
    %v1177 = vadd.s32 %v1176, 512
    %vm1178 = vcmp.lt.s32.totalorder %v1177, 864
    %v1179 = vsel %vm1178, %v1173, %v11
    %s1180 = scalar_lea.vmem [#allocation19], 304
    %v1181 = vpack.c.bf16 0.0, %v1179
    %s1183 = ssub.s32 16, 1
    %1184 = vst [vmem:[%s1180] sm:%s1183] %v1181
    %s1185 = scalar_lea.vmem %s2, 272
    %s1187 = sor.u32 255, 127
    %s1188 = sand.u32 %s1187, 85
    %s1189 = sshrl.u32 %s1188, 1
    %s1190 = sor.u32 %s1188, %s1189
    %s1191 = sand.u32 51, %s1190
    %s1192 = sshrl.u32 %s1191, 2
    %s1193 = sor.u32 %s1191, %s1192
    %s1194 = sand.u32 15, %s1193
    %v1195 = vld [vmem:[%s1185] sm:%s1194]
    %v1196 = vunpack.c.l.bf16 %v1195
    %v1197 = vunpack.c.h.bf16 %v1195
    %v1198 = vlaneseq
    %v1199 = vand.u32 %v1198, 127
    %v1200 = vadd.s32 %v1199, 640
    %vm1201 = vcmp.lt.s32.totalorder %v1200, 864
    %v1202 = vsel %vm1201, %v1196, %v11
    %s1203 = scalar_lea.vmem [#allocation19], 308
    %v1204 = vpack.c.bf16 0.0, %v1202
    %s1206 = ssub.s32 16, 1
    %1207 = vst [vmem:[%s1203] sm:%s1206] %v1204
    %s1208 = scalar_lea.vmem %s2, 276
    %s1210 = sor.u32 255, 127
    %s1211 = sand.u32 %s1210, 85
    %s1212 = sshrl.u32 %s1211, 1
    %s1213 = sor.u32 %s1211, %s1212
    %s1214 = sand.u32 51, %s1213
    %s1215 = sshrl.u32 %s1214, 2
    %s1216 = sor.u32 %s1214, %s1215
    %s1217 = sand.u32 15, %s1216
    %v1218 = vld [vmem:[%s1208] sm:%s1217]
    %v1219 = vunpack.c.l.bf16 %v1218
    %v1220 = vunpack.c.h.bf16 %v1218
    %v1221 = vlaneseq
    %v1222 = vand.u32 %v1221, 127
    %v1223 = vadd.s32 %v1222, 768
    %vm1224 = vcmp.lt.s32.totalorder %v1223, 864
    %v1225 = vsel %vm1224, %v1219, %v11
    %s1226 = scalar_lea.vmem [#allocation19], 312
    %v1227 = vpack.c.bf16 0.0, %v1225
    %s1229 = ssub.s32 16, 1
    %1230 = vst [vmem:[%s1226] sm:%s1229] %v1227
    %s1231 = scalar_lea.vmem [#allocation19], 316
    %v1232 = vpack.c.bf16 0.0, %v11
    %s1234 = ssub.s32 16, 1
    %1235 = vst [vmem:[%s1231] sm:%s1234] %v1232
    %s1236 = scalar_lea.vmem %s2, 280
    %v1237 = vld [vmem:[%s1236] sm:$0xf]
    %v1238 = vunpack.c.l.bf16 %v1237
    %v1239 = vunpack.c.h.bf16 %v1237
    %v1240 = vlaneseq
    %v1241 = vand.u32 %v1240, 127
    %vm1243 = vcmp.lt.s32.totalorder %v1241, 864
    %v1244 = vsel %vm1243, %v1238, %v11
    %s1245 = scalar_lea.vmem [#allocation19], 320
    %v1246 = vpack.c.bf16 0.0, %v1244
    %s1248 = ssub.s32 16, 1
    %1249 = vst [vmem:[%s1245] sm:%s1248] %v1246
    %s1250 = scalar_lea.vmem %s2, 284
    %v1251 = vld [vmem:[%s1250] sm:$0xf]
    %v1252 = vunpack.c.l.bf16 %v1251
    %v1253 = vunpack.c.h.bf16 %v1251
    %v1254 = vlaneseq
    %v1255 = vand.u32 %v1254, 127
    %v1256 = vadd.s32 %v1255, 128
    %vm1257 = vcmp.lt.s32.totalorder %v1256, 864
    %v1258 = vsel %vm1257, %v1252, %v11
    %s1259 = scalar_lea.vmem [#allocation19], 324
    %v1260 = vpack.c.bf16 0.0, %v1258
    %s1262 = ssub.s32 16, 1
    %1263 = vst [vmem:[%s1259] sm:%s1262] %v1260
    %s1264 = scalar_lea.vmem %s2, 288
    %v1265 = vld [vmem:[%s1264] sm:$0xf]
    %v1266 = vunpack.c.l.bf16 %v1265
    %v1267 = vunpack.c.h.bf16 %v1265
    %v1268 = vlaneseq
    %v1269 = vand.u32 %v1268, 127
    %v1270 = vadd.s32 %v1269, 256
    %vm1271 = vcmp.lt.s32.totalorder %v1270, 864
    %v1272 = vsel %vm1271, %v1266, %v11
    %s1273 = scalar_lea.vmem [#allocation19], 328
    %v1274 = vpack.c.bf16 0.0, %v1272
    %s1276 = ssub.s32 16, 1
    %1277 = vst [vmem:[%s1273] sm:%s1276] %v1274
    %s1278 = scalar_lea.vmem %s2, 292
    %v1279 = vld [vmem:[%s1278] sm:$0xf]
    %v1280 = vunpack.c.l.bf16 %v1279
    %v1281 = vunpack.c.h.bf16 %v1279
    %v1282 = vlaneseq
    %v1283 = vand.u32 %v1282, 127
    %v1284 = vadd.s32 %v1283, 384
    %vm1285 = vcmp.lt.s32.totalorder %v1284, 864
    %v1286 = vsel %vm1285, %v1280, %v11
    %s1287 = scalar_lea.vmem [#allocation19], 332
    %v1288 = vpack.c.bf16 0.0, %v1286
    %s1290 = ssub.s32 16, 1
    %1291 = vst [vmem:[%s1287] sm:%s1290] %v1288
    %s1292 = scalar_lea.vmem %s2, 296
    %v1293 = vld [vmem:[%s1292] sm:$0xf]
    %v1294 = vunpack.c.l.bf16 %v1293
    %v1295 = vunpack.c.h.bf16 %v1293
    %v1296 = vlaneseq
    %v1297 = vand.u32 %v1296, 127
    %v1298 = vadd.s32 %v1297, 512
    %vm1299 = vcmp.lt.s32.totalorder %v1298, 864
    %v1300 = vsel %vm1299, %v1294, %v11
    %s1301 = scalar_lea.vmem [#allocation19], 336
    %v1302 = vpack.c.bf16 0.0, %v1300
    %s1304 = ssub.s32 16, 1
    %1305 = vst [vmem:[%s1301] sm:%s1304] %v1302
    %s1306 = scalar_lea.vmem %s2, 300
    %s1308 = sor.u32 255, 127
    %s1309 = sand.u32 %s1308, 85
    %s1310 = sshrl.u32 %s1309, 1
    %s1311 = sor.u32 %s1309, %s1310
    %s1312 = sand.u32 51, %s1311
    %s1313 = sshrl.u32 %s1312, 2
    %s1314 = sor.u32 %s1312, %s1313
    %s1315 = sand.u32 15, %s1314
    %v1316 = vld [vmem:[%s1306] sm:%s1315]
    %v1317 = vunpack.c.l.bf16 %v1316
    %v1318 = vunpack.c.h.bf16 %v1316
    %v1319 = vlaneseq
    %v1320 = vand.u32 %v1319, 127
    %v1321 = vadd.s32 %v1320, 640
    %vm1322 = vcmp.lt.s32.totalorder %v1321, 864
    %v1323 = vsel %vm1322, %v1317, %v11
    %s1324 = scalar_lea.vmem [#allocation19], 340
    %v1325 = vpack.c.bf16 0.0, %v1323
    %s1327 = ssub.s32 16, 1
    %1328 = vst [vmem:[%s1324] sm:%s1327] %v1325
    %s1329 = scalar_lea.vmem %s2, 304
    %s1331 = sor.u32 255, 127
    %s1332 = sand.u32 %s1331, 85
    %s1333 = sshrl.u32 %s1332, 1
    %s1334 = sor.u32 %s1332, %s1333
    %s1335 = sand.u32 51, %s1334
    %s1336 = sshrl.u32 %s1335, 2
    %s1337 = sor.u32 %s1335, %s1336
    %s1338 = sand.u32 15, %s1337
    %v1339 = vld [vmem:[%s1329] sm:%s1338]
    %v1340 = vunpack.c.l.bf16 %v1339
    %v1341 = vunpack.c.h.bf16 %v1339
    %v1342 = vlaneseq
    %v1343 = vand.u32 %v1342, 127
    %v1344 = vadd.s32 %v1343, 768
    %vm1345 = vcmp.lt.s32.totalorder %v1344, 864
    %v1346 = vsel %vm1345, %v1340, %v11
    %s1347 = scalar_lea.vmem [#allocation19], 344
    %v1348 = vpack.c.bf16 0.0, %v1346
    %s1350 = ssub.s32 16, 1
    %1351 = vst [vmem:[%s1347] sm:%s1350] %v1348
    %s1352 = scalar_lea.vmem [#allocation19], 348
    %v1353 = vpack.c.bf16 0.0, %v11
    %s1355 = ssub.s32 16, 1
    %1356 = vst [vmem:[%s1352] sm:%s1355] %v1353
    %s1357 = scalar_lea.vmem %s2, 308
    %v1358 = vld [vmem:[%s1357] sm:$0xf]
    %v1359 = vunpack.c.l.bf16 %v1358
    %v1360 = vunpack.c.h.bf16 %v1358
    %v1361 = vlaneseq
    %v1362 = vand.u32 %v1361, 127
    %vm1364 = vcmp.lt.s32.totalorder %v1362, 864
    %v1365 = vsel %vm1364, %v1359, %v11
    %s1366 = scalar_lea.vmem [#allocation19], 352
    %v1367 = vpack.c.bf16 0.0, %v1365
    %s1369 = ssub.s32 16, 1
    %1370 = vst [vmem:[%s1366] sm:%s1369] %v1367
    %s1371 = scalar_lea.vmem %s2, 312
    %v1372 = vld [vmem:[%s1371] sm:$0xf]
    %v1373 = vunpack.c.l.bf16 %v1372
    %v1374 = vunpack.c.h.bf16 %v1372
    %v1375 = vlaneseq
    %v1376 = vand.u32 %v1375, 127
    %v1377 = vadd.s32 %v1376, 128
    %vm1378 = vcmp.lt.s32.totalorder %v1377, 864
    %v1379 = vsel %vm1378, %v1373, %v11
    %s1380 = scalar_lea.vmem [#allocation19], 356
    %v1381 = vpack.c.bf16 0.0, %v1379
    %s1383 = ssub.s32 16, 1
    %1384 = vst [vmem:[%s1380] sm:%s1383] %v1381
    %s1385 = scalar_lea.vmem %s2, 316
    %v1386 = vld [vmem:[%s1385] sm:$0xf]
    %v1387 = vunpack.c.l.bf16 %v1386
    %v1388 = vunpack.c.h.bf16 %v1386
    %v1389 = vlaneseq
    %v1390 = vand.u32 %v1389, 127
    %v1391 = vadd.s32 %v1390, 256
    %vm1392 = vcmp.lt.s32.totalorder %v1391, 864
    %v1393 = vsel %vm1392, %v1387, %v11
    %s1394 = scalar_lea.vmem [#allocation19], 360
    %v1395 = vpack.c.bf16 0.0, %v1393
    %s1397 = ssub.s32 16, 1
    %1398 = vst [vmem:[%s1394] sm:%s1397] %v1395
    %s1399 = scalar_lea.vmem %s2, 320
    %v1400 = vld [vmem:[%s1399] sm:$0xf]
    %v1401 = vunpack.c.l.bf16 %v1400
    %v1402 = vunpack.c.h.bf16 %v1400
    %v1403 = vlaneseq
    %v1404 = vand.u32 %v1403, 127
    %v1405 = vadd.s32 %v1404, 384
    %vm1406 = vcmp.lt.s32.totalorder %v1405, 864
    %v1407 = vsel %vm1406, %v1401, %v11
    %s1408 = scalar_lea.vmem [#allocation19], 364
    %v1409 = vpack.c.bf16 0.0, %v1407
    %s1411 = ssub.s32 16, 1
    %1412 = vst [vmem:[%s1408] sm:%s1411] %v1409
    %s1413 = scalar_lea.vmem %s2, 324
    %v1414 = vld [vmem:[%s1413] sm:$0xf]
    %v1415 = vunpack.c.l.bf16 %v1414
    %v1416 = vunpack.c.h.bf16 %v1414
    %v1417 = vlaneseq
    %v1418 = vand.u32 %v1417, 127
    %v1419 = vadd.s32 %v1418, 512
    %vm1420 = vcmp.lt.s32.totalorder %v1419, 864
    %v1421 = vsel %vm1420, %v1415, %v11
    %s1422 = scalar_lea.vmem [#allocation19], 368
    %v1423 = vpack.c.bf16 0.0, %v1421
    %s1425 = ssub.s32 16, 1
    %1426 = vst [vmem:[%s1422] sm:%s1425] %v1423
    %s1427 = scalar_lea.vmem %s2, 328
    %s1429 = sor.u32 255, 127
    %s1430 = sand.u32 %s1429, 85
    %s1431 = sshrl.u32 %s1430, 1
    %s1432 = sor.u32 %s1430, %s1431
    %s1433 = sand.u32 51, %s1432
    %s1434 = sshrl.u32 %s1433, 2
    %s1435 = sor.u32 %s1433, %s1434
    %s1436 = sand.u32 15, %s1435
    %v1437 = vld [vmem:[%s1427] sm:%s1436]
    %v1438 = vunpack.c.l.bf16 %v1437
    %v1439 = vunpack.c.h.bf16 %v1437
    %v1440 = vlaneseq
    %v1441 = vand.u32 %v1440, 127
    %v1442 = vadd.s32 %v1441, 640
    %vm1443 = vcmp.lt.s32.totalorder %v1442, 864
    %v1444 = vsel %vm1443, %v1438, %v11
    %s1445 = scalar_lea.vmem [#allocation19], 372
    %v1446 = vpack.c.bf16 0.0, %v1444
    %s1448 = ssub.s32 16, 1
    %1449 = vst [vmem:[%s1445] sm:%s1448] %v1446
    %s1450 = scalar_lea.vmem %s2, 332
    %s1452 = sor.u32 255, 127
    %s1453 = sand.u32 %s1452, 85
    %s1454 = sshrl.u32 %s1453, 1
    %s1455 = sor.u32 %s1453, %s1454
    %s1456 = sand.u32 51, %s1455
    %s1457 = sshrl.u32 %s1456, 2
    %s1458 = sor.u32 %s1456, %s1457
    %s1459 = sand.u32 15, %s1458
    %v1460 = vld [vmem:[%s1450] sm:%s1459]
    %v1461 = vunpack.c.l.bf16 %v1460
    %v1462 = vunpack.c.h.bf16 %v1460
    %v1463 = vlaneseq
    %v1464 = vand.u32 %v1463, 127
    %v1465 = vadd.s32 %v1464, 768
    %vm1466 = vcmp.lt.s32.totalorder %v1465, 864
    %v1467 = vsel %vm1466, %v1461, %v11
    %s1468 = scalar_lea.vmem [#allocation19], 376
    %v1469 = vpack.c.bf16 0.0, %v1467
    %s1471 = ssub.s32 16, 1
    %1472 = vst [vmem:[%s1468] sm:%s1471] %v1469
    %s1473 = scalar_lea.vmem [#allocation19], 380
    %v1474 = vpack.c.bf16 0.0, %v11
    %s1476 = ssub.s32 16, 1
    %1477 = vst [vmem:[%s1473] sm:%s1476] %v1474
    %s1478 = scalar_lea.vmem %s2, 336
    %v1479 = vld [vmem:[%s1478] sm:$0xf]
    %v1480 = vunpack.c.l.bf16 %v1479
    %v1481 = vunpack.c.h.bf16 %v1479
    %v1482 = vlaneseq
    %v1483 = vand.u32 %v1482, 127
    %vm1485 = vcmp.lt.s32.totalorder %v1483, 864
    %v1486 = vsel %vm1485, %v1480, %v11
    %s1487 = scalar_lea.vmem [#allocation19], 384
    %v1488 = vpack.c.bf16 0.0, %v1486
    %s1490 = ssub.s32 16, 1
    %1491 = vst [vmem:[%s1487] sm:%s1490] %v1488
    %s1492 = scalar_lea.vmem %s2, 340
    %v1493 = vld [vmem:[%s1492] sm:$0xf]
    %v1494 = vunpack.c.l.bf16 %v1493
    %v1495 = vunpack.c.h.bf16 %v1493
    %v1496 = vlaneseq
    %v1497 = vand.u32 %v1496, 127
    %v1498 = vadd.s32 %v1497, 128
    %vm1499 = vcmp.lt.s32.totalorder %v1498, 864
    %v1500 = vsel %vm1499, %v1494, %v11
    %s1501 = scalar_lea.vmem [#allocation19], 388
    %v1502 = vpack.c.bf16 0.0, %v1500
    %s1504 = ssub.s32 16, 1
    %1505 = vst [vmem:[%s1501] sm:%s1504] %v1502
    %s1506 = scalar_lea.vmem %s2, 344
    %v1507 = vld [vmem:[%s1506] sm:$0xf]
    %v1508 = vunpack.c.l.bf16 %v1507
    %v1509 = vunpack.c.h.bf16 %v1507
    %v1510 = vlaneseq
    %v1511 = vand.u32 %v1510, 127
    %v1512 = vadd.s32 %v1511, 256
    %vm1513 = vcmp.lt.s32.totalorder %v1512, 864
    %v1514 = vsel %vm1513, %v1508, %v11
    %s1515 = scalar_lea.vmem [#allocation19], 392
    %v1516 = vpack.c.bf16 0.0, %v1514
    %s1518 = ssub.s32 16, 1
    %1519 = vst [vmem:[%s1515] sm:%s1518] %v1516
    %s1520 = scalar_lea.vmem %s2, 348
    %v1521 = vld [vmem:[%s1520] sm:$0xf]
    %v1522 = vunpack.c.l.bf16 %v1521
    %v1523 = vunpack.c.h.bf16 %v1521
    %v1524 = vlaneseq
    %v1525 = vand.u32 %v1524, 127
    %v1526 = vadd.s32 %v1525, 384
    %vm1527 = vcmp.lt.s32.totalorder %v1526, 864
    %v1528 = vsel %vm1527, %v1522, %v11
    %s1529 = scalar_lea.vmem [#allocation19], 396
    %v1530 = vpack.c.bf16 0.0, %v1528
    %s1532 = ssub.s32 16, 1
    %1533 = vst [vmem:[%s1529] sm:%s1532] %v1530
    %s1534 = scalar_lea.vmem %s2, 352
    %v1535 = vld [vmem:[%s1534] sm:$0xf]
    %v1536 = vunpack.c.l.bf16 %v1535
    %v1537 = vunpack.c.h.bf16 %v1535
    %v1538 = vlaneseq
    %v1539 = vand.u32 %v1538, 127
    %v1540 = vadd.s32 %v1539, 512
    %vm1541 = vcmp.lt.s32.totalorder %v1540, 864
    %v1542 = vsel %vm1541, %v1536, %v11
    %s1543 = scalar_lea.vmem [#allocation19], 400
    %v1544 = vpack.c.bf16 0.0, %v1542
    %s1546 = ssub.s32 16, 1
    %1547 = vst [vmem:[%s1543] sm:%s1546] %v1544
    %s1548 = scalar_lea.vmem %s2, 356
    %s1550 = sor.u32 255, 127
    %s1551 = sand.u32 %s1550, 85
    %s1552 = sshrl.u32 %s1551, 1
    %s1553 = sor.u32 %s1551, %s1552
    %s1554 = sand.u32 51, %s1553
    %s1555 = sshrl.u32 %s1554, 2
    %s1556 = sor.u32 %s1554, %s1555
    %s1557 = sand.u32 15, %s1556
    %v1558 = vld [vmem:[%s1548] sm:%s1557]
    %v1559 = vunpack.c.l.bf16 %v1558
    %v1560 = vunpack.c.h.bf16 %v1558
    %v1561 = vlaneseq
    %v1562 = vand.u32 %v1561, 127
    %v1563 = vadd.s32 %v1562, 640
    %vm1564 = vcmp.lt.s32.totalorder %v1563, 864
    %v1565 = vsel %vm1564, %v1559, %v11
    %s1566 = scalar_lea.vmem [#allocation19], 404
    %v1567 = vpack.c.bf16 0.0, %v1565
    %s1569 = ssub.s32 16, 1
    %1570 = vst [vmem:[%s1566] sm:%s1569] %v1567
    %s1571 = scalar_lea.vmem %s2, 360
    %s1573 = sor.u32 255, 127
    %s1574 = sand.u32 %s1573, 85
    %s1575 = sshrl.u32 %s1574, 1
    %s1576 = sor.u32 %s1574, %s1575
    %s1577 = sand.u32 51, %s1576
    %s1578 = sshrl.u32 %s1577, 2
    %s1579 = sor.u32 %s1577, %s1578
    %s1580 = sand.u32 15, %s1579
    %v1581 = vld [vmem:[%s1571] sm:%s1580]
    %v1582 = vunpack.c.l.bf16 %v1581
    %v1583 = vunpack.c.h.bf16 %v1581
    %v1584 = vlaneseq
    %v1585 = vand.u32 %v1584, 127
    %v1586 = vadd.s32 %v1585, 768
    %vm1587 = vcmp.lt.s32.totalorder %v1586, 864
    %v1588 = vsel %vm1587, %v1582, %v11
    %s1589 = scalar_lea.vmem [#allocation19], 408
    %v1590 = vpack.c.bf16 0.0, %v1588
    %s1592 = ssub.s32 16, 1
    %1593 = vst [vmem:[%s1589] sm:%s1592] %v1590
    %s1594 = scalar_lea.vmem [#allocation19], 412
    %v1595 = vpack.c.bf16 0.0, %v11
    %s1597 = ssub.s32 16, 1
    %1598 = vst [vmem:[%s1594] sm:%s1597] %v1595
    %s1599 = scalar_lea.vmem %s2, 364
    %v1600 = vld [vmem:[%s1599] sm:$0xf]
    %v1601 = vunpack.c.l.bf16 %v1600
    %v1602 = vunpack.c.h.bf16 %v1600
    %v1603 = vlaneseq
    %v1604 = vand.u32 %v1603, 127
    %vm1606 = vcmp.lt.s32.totalorder %v1604, 864
    %v1607 = vsel %vm1606, %v1601, %v11
    %s1608 = scalar_lea.vmem [#allocation19], 416
    %v1609 = vpack.c.bf16 0.0, %v1607
    %s1611 = ssub.s32 16, 1
    %1612 = vst [vmem:[%s1608] sm:%s1611] %v1609
    %s1613 = scalar_lea.vmem %s2, 368
    %v1614 = vld [vmem:[%s1613] sm:$0xf]
    %v1615 = vunpack.c.l.bf16 %v1614
    %v1616 = vunpack.c.h.bf16 %v1614
    %v1617 = vlaneseq
    %v1618 = vand.u32 %v1617, 127
    %v1619 = vadd.s32 %v1618, 128
    %vm1620 = vcmp.lt.s32.totalorder %v1619, 864
    %v1621 = vsel %vm1620, %v1615, %v11
    %s1622 = scalar_lea.vmem [#allocation19], 420
    %v1623 = vpack.c.bf16 0.0, %v1621
    %s1625 = ssub.s32 16, 1
    %1626 = vst [vmem:[%s1622] sm:%s1625] %v1623
    %s1627 = scalar_lea.vmem %s2, 372
    %v1628 = vld [vmem:[%s1627] sm:$0xf]
    %v1629 = vunpack.c.l.bf16 %v1628
    %v1630 = vunpack.c.h.bf16 %v1628
    %v1631 = vlaneseq
    %v1632 = vand.u32 %v1631, 127
    %v1633 = vadd.s32 %v1632, 256
    %vm1634 = vcmp.lt.s32.totalorder %v1633, 864
    %v1635 = vsel %vm1634, %v1629, %v11
    %s1636 = scalar_lea.vmem [#allocation19], 424
    %v1637 = vpack.c.bf16 0.0, %v1635
    %s1639 = ssub.s32 16, 1
    %1640 = vst [vmem:[%s1636] sm:%s1639] %v1637
    %s1641 = scalar_lea.vmem %s2, 376
    %v1642 = vld [vmem:[%s1641] sm:$0xf]
    %v1643 = vunpack.c.l.bf16 %v1642
    %v1644 = vunpack.c.h.bf16 %v1642
    %v1645 = vlaneseq
    %v1646 = vand.u32 %v1645, 127
    %v1647 = vadd.s32 %v1646, 384
    %vm1648 = vcmp.lt.s32.totalorder %v1647, 864
    %v1649 = vsel %vm1648, %v1643, %v11
    %s1650 = scalar_lea.vmem [#allocation19], 428
    %v1651 = vpack.c.bf16 0.0, %v1649
    %s1653 = ssub.s32 16, 1
    %1654 = vst [vmem:[%s1650] sm:%s1653] %v1651
    %s1655 = scalar_lea.vmem %s2, 380
    %v1656 = vld [vmem:[%s1655] sm:$0xf]
    %v1657 = vunpack.c.l.bf16 %v1656
    %v1658 = vunpack.c.h.bf16 %v1656
    %v1659 = vlaneseq
    %v1660 = vand.u32 %v1659, 127
    %v1661 = vadd.s32 %v1660, 512
    %vm1662 = vcmp.lt.s32.totalorder %v1661, 864
    %v1663 = vsel %vm1662, %v1657, %v11
    %s1664 = scalar_lea.vmem [#allocation19], 432
    %v1665 = vpack.c.bf16 0.0, %v1663
    %s1667 = ssub.s32 16, 1
    %1668 = vst [vmem:[%s1664] sm:%s1667] %v1665
    %s1669 = scalar_lea.vmem %s2, 384
    %s1671 = sor.u32 255, 127
    %s1672 = sand.u32 %s1671, 85
    %s1673 = sshrl.u32 %s1672, 1
    %s1674 = sor.u32 %s1672, %s1673
    %s1675 = sand.u32 51, %s1674
    %s1676 = sshrl.u32 %s1675, 2
    %s1677 = sor.u32 %s1675, %s1676
    %s1678 = sand.u32 15, %s1677
    %v1679 = vld [vmem:[%s1669] sm:%s1678]
    %v1680 = vunpack.c.l.bf16 %v1679
    %v1681 = vunpack.c.h.bf16 %v1679
    %v1682 = vlaneseq
    %v1683 = vand.u32 %v1682, 127
    %v1684 = vadd.s32 %v1683, 640
    %vm1685 = vcmp.lt.s32.totalorder %v1684, 864
    %v1686 = vsel %vm1685, %v1680, %v11
    %s1687 = scalar_lea.vmem [#allocation19], 436
    %v1688 = vpack.c.bf16 0.0, %v1686
    %s1690 = ssub.s32 16, 1
    %1691 = vst [vmem:[%s1687] sm:%s1690] %v1688
    %s1692 = scalar_lea.vmem %s2, 388
    %s1694 = sor.u32 255, 127
    %s1695 = sand.u32 %s1694, 85
    %s1696 = sshrl.u32 %s1695, 1
    %s1697 = sor.u32 %s1695, %s1696
    %s1698 = sand.u32 51, %s1697
    %s1699 = sshrl.u32 %s1698, 2
    %s1700 = sor.u32 %s1698, %s1699
    %s1701 = sand.u32 15, %s1700
    %v1702 = vld [vmem:[%s1692] sm:%s1701]
    %v1703 = vunpack.c.l.bf16 %v1702
    %v1704 = vunpack.c.h.bf16 %v1702
    %v1705 = vlaneseq
    %v1706 = vand.u32 %v1705, 127
    %v1707 = vadd.s32 %v1706, 768
    %vm1708 = vcmp.lt.s32.totalorder %v1707, 864
    %v1709 = vsel %vm1708, %v1703, %v11
    %s1710 = scalar_lea.vmem [#allocation19], 440
    %v1711 = vpack.c.bf16 0.0, %v1709
    %s1713 = ssub.s32 16, 1
    %1714 = vst [vmem:[%s1710] sm:%s1713] %v1711
    %s1715 = scalar_lea.vmem [#allocation19], 444
    %v1716 = vpack.c.bf16 0.0, %v11
    %s1718 = ssub.s32 16, 1
    %1719 = vst [vmem:[%s1715] sm:%s1718] %v1716
    %s1720 = scalar_lea.vmem %s2, 392
    %v1721 = vld [vmem:[%s1720] sm:$0xf]
    %v1722 = vunpack.c.l.bf16 %v1721
    %v1723 = vunpack.c.h.bf16 %v1721
    %v1724 = vlaneseq
    %v1725 = vand.u32 %v1724, 127
    %vm1727 = vcmp.lt.s32.totalorder %v1725, 864
    %v1728 = vsel %vm1727, %v1722, %v11
    %s1729 = scalar_lea.vmem [#allocation19], 448
    %v1730 = vpack.c.bf16 0.0, %v1728
    %s1732 = ssub.s32 16, 1
    %1733 = vst [vmem:[%s1729] sm:%s1732] %v1730
    %s1734 = scalar_lea.vmem %s2, 396
    %v1735 = vld [vmem:[%s1734] sm:$0xf]
    %v1736 = vunpack.c.l.bf16 %v1735
    %v1737 = vunpack.c.h.bf16 %v1735
    %v1738 = vlaneseq
    %v1739 = vand.u32 %v1738, 127
    %v1740 = vadd.s32 %v1739, 128
    %vm1741 = vcmp.lt.s32.totalorder %v1740, 864
    %v1742 = vsel %vm1741, %v1736, %v11
    %s1743 = scalar_lea.vmem [#allocation19], 452
    %v1744 = vpack.c.bf16 0.0, %v1742
    %s1746 = ssub.s32 16, 1
    %1747 = vst [vmem:[%s1743] sm:%s1746] %v1744
    %s1748 = scalar_lea.vmem %s2, 400
    %v1749 = vld [vmem:[%s1748] sm:$0xf]
    %v1750 = vunpack.c.l.bf16 %v1749
    %v1751 = vunpack.c.h.bf16 %v1749
    %v1752 = vlaneseq
    %v1753 = vand.u32 %v1752, 127
    %v1754 = vadd.s32 %v1753, 256
    %vm1755 = vcmp.lt.s32.totalorder %v1754, 864
    %v1756 = vsel %vm1755, %v1750, %v11
    %s1757 = scalar_lea.vmem [#allocation19], 456
    %v1758 = vpack.c.bf16 0.0, %v1756
    %s1760 = ssub.s32 16, 1
    %1761 = vst [vmem:[%s1757] sm:%s1760] %v1758
    %s1762 = scalar_lea.vmem %s2, 404
    %v1763 = vld [vmem:[%s1762] sm:$0xf]
    %v1764 = vunpack.c.l.bf16 %v1763
    %v1765 = vunpack.c.h.bf16 %v1763
    %v1766 = vlaneseq
    %v1767 = vand.u32 %v1766, 127
    %v1768 = vadd.s32 %v1767, 384
    %vm1769 = vcmp.lt.s32.totalorder %v1768, 864
    %v1770 = vsel %vm1769, %v1764, %v11
    %s1771 = scalar_lea.vmem [#allocation19], 460
    %v1772 = vpack.c.bf16 0.0, %v1770
    %s1774 = ssub.s32 16, 1
    %1775 = vst [vmem:[%s1771] sm:%s1774] %v1772
    %s1776 = scalar_lea.vmem %s2, 408
    %v1777 = vld [vmem:[%s1776] sm:$0xf]
    %v1778 = vunpack.c.l.bf16 %v1777
    %v1779 = vunpack.c.h.bf16 %v1777
    %v1780 = vlaneseq
    %v1781 = vand.u32 %v1780, 127
    %v1782 = vadd.s32 %v1781, 512
    %vm1783 = vcmp.lt.s32.totalorder %v1782, 864
    %v1784 = vsel %vm1783, %v1778, %v11
    %s1785 = scalar_lea.vmem [#allocation19], 464
    %v1786 = vpack.c.bf16 0.0, %v1784
    %s1788 = ssub.s32 16, 1
    %1789 = vst [vmem:[%s1785] sm:%s1788] %v1786
    %s1790 = scalar_lea.vmem %s2, 412
    %s1792 = sor.u32 255, 127
    %s1793 = sand.u32 %s1792, 85
    %s1794 = sshrl.u32 %s1793, 1
    %s1795 = sor.u32 %s1793, %s1794
    %s1796 = sand.u32 51, %s1795
    %s1797 = sshrl.u32 %s1796, 2
    %s1798 = sor.u32 %s1796, %s1797
    %s1799 = sand.u32 15, %s1798
    %v1800 = vld [vmem:[%s1790] sm:%s1799]
    %v1801 = vunpack.c.l.bf16 %v1800
    %v1802 = vunpack.c.h.bf16 %v1800
    %v1803 = vlaneseq
    %v1804 = vand.u32 %v1803, 127
    %v1805 = vadd.s32 %v1804, 640
    %vm1806 = vcmp.lt.s32.totalorder %v1805, 864
    %v1807 = vsel %vm1806, %v1801, %v11
    %s1808 = scalar_lea.vmem [#allocation19], 468
    %v1809 = vpack.c.bf16 0.0, %v1807
    %s1811 = ssub.s32 16, 1
    %1812 = vst [vmem:[%s1808] sm:%s1811] %v1809
    %s1813 = scalar_lea.vmem %s2, 416
    %s1815 = sor.u32 255, 127
    %s1816 = sand.u32 %s1815, 85
    %s1817 = sshrl.u32 %s1816, 1
    %s1818 = sor.u32 %s1816, %s1817
    %s1819 = sand.u32 51, %s1818
    %s1820 = sshrl.u32 %s1819, 2
    %s1821 = sor.u32 %s1819, %s1820
    %s1822 = sand.u32 15, %s1821
    %v1823 = vld [vmem:[%s1813] sm:%s1822]
    %v1824 = vunpack.c.l.bf16 %v1823
    %v1825 = vunpack.c.h.bf16 %v1823
    %v1826 = vlaneseq
    %v1827 = vand.u32 %v1826, 127
    %v1828 = vadd.s32 %v1827, 768
    %vm1829 = vcmp.lt.s32.totalorder %v1828, 864
    %v1830 = vsel %vm1829, %v1824, %v11
    %s1831 = scalar_lea.vmem [#allocation19], 472
    %v1832 = vpack.c.bf16 0.0, %v1830
    %s1834 = ssub.s32 16, 1
    %1835 = vst [vmem:[%s1831] sm:%s1834] %v1832
    %s1836 = scalar_lea.vmem [#allocation19], 476
    %v1837 = vpack.c.bf16 0.0, %v11
    %s1839 = ssub.s32 16, 1
    %1840 = vst [vmem:[%s1836] sm:%s1839] %v1837
    %s1841 = scalar_lea.vmem %s2, 420
    %v1842 = vld [vmem:[%s1841] sm:$0xf]
    %v1843 = vunpack.c.l.bf16 %v1842
    %v1844 = vunpack.c.h.bf16 %v1842
    %v1845 = vlaneseq
    %v1846 = vand.u32 %v1845, 127
    %vm1848 = vcmp.lt.s32.totalorder %v1846, 864
    %v1849 = vsel %vm1848, %v1843, %v11
    %s1850 = scalar_lea.vmem [#allocation19], 480
    %v1851 = vpack.c.bf16 0.0, %v1849
    %s1853 = ssub.s32 16, 1
    %1854 = vst [vmem:[%s1850] sm:%s1853] %v1851
    %s1855 = scalar_lea.vmem %s2, 424
    %v1856 = vld [vmem:[%s1855] sm:$0xf]
    %v1857 = vunpack.c.l.bf16 %v1856
    %v1858 = vunpack.c.h.bf16 %v1856
    %v1859 = vlaneseq
    %v1860 = vand.u32 %v1859, 127
    %v1861 = vadd.s32 %v1860, 128
    %vm1862 = vcmp.lt.s32.totalorder %v1861, 864
    %v1863 = vsel %vm1862, %v1857, %v11
    %s1864 = scalar_lea.vmem [#allocation19], 484
    %v1865 = vpack.c.bf16 0.0, %v1863
    %s1867 = ssub.s32 16, 1
    %1868 = vst [vmem:[%s1864] sm:%s1867] %v1865
    %s1869 = scalar_lea.vmem %s2, 428
    %v1870 = vld [vmem:[%s1869] sm:$0xf]
    %v1871 = vunpack.c.l.bf16 %v1870
    %v1872 = vunpack.c.h.bf16 %v1870
    %v1873 = vlaneseq
    %v1874 = vand.u32 %v1873, 127
    %v1875 = vadd.s32 %v1874, 256
    %vm1876 = vcmp.lt.s32.totalorder %v1875, 864
    %v1877 = vsel %vm1876, %v1871, %v11
    %s1878 = scalar_lea.vmem [#allocation19], 488
    %v1879 = vpack.c.bf16 0.0, %v1877
    %s1881 = ssub.s32 16, 1
    %1882 = vst [vmem:[%s1878] sm:%s1881] %v1879
    %s1883 = scalar_lea.vmem %s2, 432
    %v1884 = vld [vmem:[%s1883] sm:$0xf]
    %v1885 = vunpack.c.l.bf16 %v1884
    %v1886 = vunpack.c.h.bf16 %v1884
    %v1887 = vlaneseq
    %v1888 = vand.u32 %v1887, 127
    %v1889 = vadd.s32 %v1888, 384
    %vm1890 = vcmp.lt.s32.totalorder %v1889, 864
    %v1891 = vsel %vm1890, %v1885, %v11
    %s1892 = scalar_lea.vmem [#allocation19], 492
    %v1893 = vpack.c.bf16 0.0, %v1891
    %s1895 = ssub.s32 16, 1
    %1896 = vst [vmem:[%s1892] sm:%s1895] %v1893
    %s1897 = scalar_lea.vmem %s2, 436
    %v1898 = vld [vmem:[%s1897] sm:$0xf]
    %v1899 = vunpack.c.l.bf16 %v1898
    %v1900 = vunpack.c.h.bf16 %v1898
    %v1901 = vlaneseq
    %v1902 = vand.u32 %v1901, 127
    %v1903 = vadd.s32 %v1902, 512
    %vm1904 = vcmp.lt.s32.totalorder %v1903, 864
    %v1905 = vsel %vm1904, %v1899, %v11
    %s1906 = scalar_lea.vmem [#allocation19], 496
    %v1907 = vpack.c.bf16 0.0, %v1905
    %s1909 = ssub.s32 16, 1
    %1910 = vst [vmem:[%s1906] sm:%s1909] %v1907
    %s1911 = scalar_lea.vmem %s2, 440
    %s1913 = sor.u32 255, 127
    %s1914 = sand.u32 %s1913, 85
    %s1915 = sshrl.u32 %s1914, 1
    %s1916 = sor.u32 %s1914, %s1915
    %s1917 = sand.u32 51, %s1916
    %s1918 = sshrl.u32 %s1917, 2
    %s1919 = sor.u32 %s1917, %s1918
    %s1920 = sand.u32 15, %s1919
    %v1921 = vld [vmem:[%s1911] sm:%s1920]
    %v1922 = vunpack.c.l.bf16 %v1921
    %v1923 = vunpack.c.h.bf16 %v1921
    %v1924 = vlaneseq
    %v1925 = vand.u32 %v1924, 127
    %v1926 = vadd.s32 %v1925, 640
    %vm1927 = vcmp.lt.s32.totalorder %v1926, 864
    %v1928 = vsel %vm1927, %v1922, %v11
    %s1929 = scalar_lea.vmem [#allocation19], 500
    %v1930 = vpack.c.bf16 0.0, %v1928
    %s1932 = ssub.s32 16, 1
    %1933 = vst [vmem:[%s1929] sm:%s1932] %v1930
    %s1934 = scalar_lea.vmem %s2, 444
    %s1936 = sor.u32 255, 127
    %s1937 = sand.u32 %s1936, 85
    %s1938 = sshrl.u32 %s1937, 1
    %s1939 = sor.u32 %s1937, %s1938
    %s1940 = sand.u32 51, %s1939
    %s1941 = sshrl.u32 %s1940, 2
    %s1942 = sor.u32 %s1940, %s1941
    %s1943 = sand.u32 15, %s1942
    %v1944 = vld [vmem:[%s1934] sm:%s1943]
    %v1945 = vunpack.c.l.bf16 %v1944
    %v1946 = vunpack.c.h.bf16 %v1944
    %v1947 = vlaneseq
    %v1948 = vand.u32 %v1947, 127
    %v1949 = vadd.s32 %v1948, 768
    %vm1950 = vcmp.lt.s32.totalorder %v1949, 864
    %v1951 = vsel %vm1950, %v1945, %v11
    %s1952 = scalar_lea.vmem [#allocation19], 504
    %v1953 = vpack.c.bf16 0.0, %v1951
    %s1955 = ssub.s32 16, 1
    %1956 = vst [vmem:[%s1952] sm:%s1955] %v1953
    %s1957 = scalar_lea.vmem [#allocation19], 508
    %v1958 = vpack.c.bf16 0.0, %v11
    %s1960 = ssub.s32 16, 1
    %1961 = vst [vmem:[%s1957] sm:%s1960] %v1958
    %s1963 = sor.u32 255, 127
    %s1964 = sand.u32 %s1963, 85
    %s1965 = sshrl.u32 %s1964, 1
    %s1966 = sor.u32 %s1964, %s1965
    %s1967 = sand.u32 51, %s1966
    %s1968 = sshrl.u32 %s1967, 2
    %s1969 = sor.u32 %s1967, %s1968
    %s1970 = sand.u32 15, %s1969
    %v1971 = vld [vmem:[%s0] sm:%s1970]
    %v1972 = vunpack.c.l.bf16 %v1971
    %v1973 = vunpack.c.h.bf16 %v1971
    %v1974 = vlaneseq
    %v1975 = vand.u32 %v1974, 127
    %vm1977 = vcmp.lt.s32.totalorder %v1975, 48
    %v1978 = vsel %vm1977, %v1972, %v16
    %v1979 = vpack.c.bf16 0.0, %v1978
    %s1981 = ssub.s32 16, 1
    %1982 = vst [vmem:[#allocation20] sm:%s1981] %v1979
    %s1983 = scalar_lea.vmem %s0, 4
    %s1985 = sor.u32 255, 127
    %s1986 = sand.u32 %s1985, 85
    %s1987 = sshrl.u32 %s1986, 1
    %s1988 = sor.u32 %s1986, %s1987
    %s1989 = sand.u32 51, %s1988
    %s1990 = sshrl.u32 %s1989, 2
    %s1991 = sor.u32 %s1989, %s1990
    %s1992 = sand.u32 15, %s1991
    %v1993 = vld [vmem:[%s1983] sm:%s1992]
    %v1994 = vunpack.c.l.bf16 %v1993
    %v1995 = vunpack.c.h.bf16 %v1993
    %v1996 = vlaneseq
    %v1997 = vand.u32 %v1996, 127
    %vm1999 = vcmp.lt.s32.totalorder %v1997, 48
    %v2000 = vsel %vm1999, %v1994, %v16
    %s2001 = scalar_lea.vmem [#allocation20], 4
    %v2002 = vpack.c.bf16 0.0, %v2000
    %s2004 = ssub.s32 16, 1
    %2005 = vst [vmem:[%s2001] sm:%s2004] %v2002
    %s2006 = scalar_lea.vmem %s0, 8
    %s2008 = sor.u32 255, 127
    %s2009 = sand.u32 %s2008, 85
    %s2010 = sshrl.u32 %s2009, 1
    %s2011 = sor.u32 %s2009, %s2010
    %s2012 = sand.u32 51, %s2011
    %s2013 = sshrl.u32 %s2012, 2
    %s2014 = sor.u32 %s2012, %s2013
    %s2015 = sand.u32 15, %s2014
    %v2016 = vld [vmem:[%s2006] sm:%s2015]
    %v2017 = vunpack.c.l.bf16 %v2016
    %v2018 = vunpack.c.h.bf16 %v2016
    %v2019 = vlaneseq
    %v2020 = vand.u32 %v2019, 127
    %vm2022 = vcmp.lt.s32.totalorder %v2020, 48
    %v2023 = vsel %vm2022, %v2017, %v16
    %s2024 = scalar_lea.vmem [#allocation20], 8
    %v2025 = vpack.c.bf16 0.0, %v2023
    %s2027 = ssub.s32 16, 1
    %2028 = vst [vmem:[%s2024] sm:%s2027] %v2025
    %s2029 = scalar_lea.vmem %s0, 12
    %s2031 = sor.u32 255, 127
    %s2032 = sand.u32 %s2031, 85
    %s2033 = sshrl.u32 %s2032, 1
    %s2034 = sor.u32 %s2032, %s2033
    %s2035 = sand.u32 51, %s2034
    %s2036 = sshrl.u32 %s2035, 2
    %s2037 = sor.u32 %s2035, %s2036
    %s2038 = sand.u32 15, %s2037
    %v2039 = vld [vmem:[%s2029] sm:%s2038]
    %v2040 = vunpack.c.l.bf16 %v2039
    %v2041 = vunpack.c.h.bf16 %v2039
    %v2042 = vlaneseq
    %v2043 = vand.u32 %v2042, 127
    %vm2045 = vcmp.lt.s32.totalorder %v2043, 48
    %v2046 = vsel %vm2045, %v2040, %v16
    %s2047 = scalar_lea.vmem [#allocation20], 12
    %v2048 = vpack.c.bf16 0.0, %v2046
    %s2050 = ssub.s32 16, 1
    %2051 = vst [vmem:[%s2047] sm:%s2050] %v2048
    %s2052 = scalar_lea.vmem %s0, 16
    %s2054 = sor.u32 255, 127
    %s2055 = sand.u32 %s2054, 85
    %s2056 = sshrl.u32 %s2055, 1
    %s2057 = sor.u32 %s2055, %s2056
    %s2058 = sand.u32 51, %s2057
    %s2059 = sshrl.u32 %s2058, 2
    %s2060 = sor.u32 %s2058, %s2059
    %s2061 = sand.u32 15, %s2060
    %v2062 = vld [vmem:[%s2052] sm:%s2061]
    %v2063 = vunpack.c.l.bf16 %v2062
    %v2064 = vunpack.c.h.bf16 %v2062
    %v2065 = vlaneseq
    %v2066 = vand.u32 %v2065, 127
    %vm2068 = vcmp.lt.s32.totalorder %v2066, 48
    %v2069 = vsel %vm2068, %v2063, %v16
    %s2070 = scalar_lea.vmem [#allocation20], 16
    %v2071 = vpack.c.bf16 0.0, %v2069
    %s2073 = ssub.s32 16, 1
    %2074 = vst [vmem:[%s2070] sm:%s2073] %v2071
    %s2075 = scalar_lea.vmem %s0, 20
    %s2077 = sor.u32 255, 127
    %s2078 = sand.u32 %s2077, 85
    %s2079 = sshrl.u32 %s2078, 1
    %s2080 = sor.u32 %s2078, %s2079
    %s2081 = sand.u32 51, %s2080
    %s2082 = sshrl.u32 %s2081, 2
    %s2083 = sor.u32 %s2081, %s2082
    %s2084 = sand.u32 15, %s2083
    %v2085 = vld [vmem:[%s2075] sm:%s2084]
    %v2086 = vunpack.c.l.bf16 %v2085
    %v2087 = vunpack.c.h.bf16 %v2085
    %v2088 = vlaneseq
    %v2089 = vand.u32 %v2088, 127
    %vm2091 = vcmp.lt.s32.totalorder %v2089, 48
    %v2092 = vsel %vm2091, %v2086, %v16
    %s2093 = scalar_lea.vmem [#allocation20], 20
    %v2094 = vpack.c.bf16 0.0, %v2092
    %s2096 = ssub.s32 16, 1
    %2097 = vst [vmem:[%s2093] sm:%s2096] %v2094
    %s2098 = scalar_lea.vmem %s0, 24
    %s2100 = sor.u32 255, 127
    %s2101 = sand.u32 %s2100, 85
    %s2102 = sshrl.u32 %s2101, 1
    %s2103 = sor.u32 %s2101, %s2102
    %s2104 = sand.u32 51, %s2103
    %s2105 = sshrl.u32 %s2104, 2
    %s2106 = sor.u32 %s2104, %s2105
    %s2107 = sand.u32 15, %s2106
    %v2108 = vld [vmem:[%s2098] sm:%s2107]
    %v2109 = vunpack.c.l.bf16 %v2108
    %v2110 = vunpack.c.h.bf16 %v2108
    %v2111 = vlaneseq
    %v2112 = vand.u32 %v2111, 127
    %vm2114 = vcmp.lt.s32.totalorder %v2112, 48
    %v2115 = vsel %vm2114, %v2109, %v16
    %s2116 = scalar_lea.vmem [#allocation20], 24
    %v2117 = vpack.c.bf16 0.0, %v2115
    %s2119 = ssub.s32 16, 1
    %2120 = vst [vmem:[%s2116] sm:%s2119] %v2117
    %s2121 = scalar_lea.vmem %s0, 28
    %s2123 = sor.u32 255, 127
    %s2124 = sand.u32 %s2123, 85
    %s2125 = sshrl.u32 %s2124, 1
    %s2126 = sor.u32 %s2124, %s2125
    %s2127 = sand.u32 51, %s2126
    %s2128 = sshrl.u32 %s2127, 2
    %s2129 = sor.u32 %s2127, %s2128
    %s2130 = sand.u32 15, %s2129
    %v2131 = vld [vmem:[%s2121] sm:%s2130]
    %v2132 = vunpack.c.l.bf16 %v2131
    %v2133 = vunpack.c.h.bf16 %v2131
    %v2134 = vlaneseq
    %v2135 = vand.u32 %v2134, 127
    %vm2137 = vcmp.lt.s32.totalorder %v2135, 48
    %v2138 = vsel %vm2137, %v2132, %v16
    %s2139 = scalar_lea.vmem [#allocation20], 28
    %v2140 = vpack.c.bf16 0.0, %v2138
    %s2142 = ssub.s32 16, 1
    %2143 = vst [vmem:[%s2139] sm:%s2142] %v2140
    %s2144 = scalar_lea.vmem %s0, 32
    %s2146 = sor.u32 255, 127
    %s2147 = sand.u32 %s2146, 85
    %s2148 = sshrl.u32 %s2147, 1
    %s2149 = sor.u32 %s2147, %s2148
    %s2150 = sand.u32 51, %s2149
    %s2151 = sshrl.u32 %s2150, 2
    %s2152 = sor.u32 %s2150, %s2151
    %s2153 = sand.u32 15, %s2152
    %v2154 = vld [vmem:[%s2144] sm:%s2153]
    %v2155 = vunpack.c.l.bf16 %v2154
    %v2156 = vunpack.c.h.bf16 %v2154
    %v2157 = vlaneseq
    %v2158 = vand.u32 %v2157, 127
    %vm2160 = vcmp.lt.s32.totalorder %v2158, 48
    %v2161 = vsel %vm2160, %v2155, %v16
    %s2162 = scalar_lea.vmem [#allocation20], 32
    %v2163 = vpack.c.bf16 0.0, %v2161
    %s2165 = ssub.s32 16, 1
    %2166 = vst [vmem:[%s2162] sm:%s2165] %v2163
    %s2167 = scalar_lea.vmem %s0, 36
    %s2169 = sor.u32 255, 127
    %s2170 = sand.u32 %s2169, 85
    %s2171 = sshrl.u32 %s2170, 1
    %s2172 = sor.u32 %s2170, %s2171
    %s2173 = sand.u32 51, %s2172
    %s2174 = sshrl.u32 %s2173, 2
    %s2175 = sor.u32 %s2173, %s2174
    %s2176 = sand.u32 15, %s2175
    %v2177 = vld [vmem:[%s2167] sm:%s2176]
    %v2178 = vunpack.c.l.bf16 %v2177
    %v2179 = vunpack.c.h.bf16 %v2177
    %v2180 = vlaneseq
    %v2181 = vand.u32 %v2180, 127
    %vm2183 = vcmp.lt.s32.totalorder %v2181, 48
    %v2184 = vsel %vm2183, %v2178, %v16
    %s2185 = scalar_lea.vmem [#allocation20], 36
    %v2186 = vpack.c.bf16 0.0, %v2184
    %s2188 = ssub.s32 16, 1
    %2189 = vst [vmem:[%s2185] sm:%s2188] %v2186
    %s2190 = scalar_lea.vmem %s0, 40
    %s2192 = sor.u32 255, 127
    %s2193 = sand.u32 %s2192, 85
    %s2194 = sshrl.u32 %s2193, 1
    %s2195 = sor.u32 %s2193, %s2194
    %s2196 = sand.u32 51, %s2195
    %s2197 = sshrl.u32 %s2196, 2
    %s2198 = sor.u32 %s2196, %s2197
    %s2199 = sand.u32 15, %s2198
    %v2200 = vld [vmem:[%s2190] sm:%s2199]
    %v2201 = vunpack.c.l.bf16 %v2200
    %v2202 = vunpack.c.h.bf16 %v2200
    %v2203 = vlaneseq
    %v2204 = vand.u32 %v2203, 127
    %vm2206 = vcmp.lt.s32.totalorder %v2204, 48
    %v2207 = vsel %vm2206, %v2201, %v16
    %s2208 = scalar_lea.vmem [#allocation20], 40
    %v2209 = vpack.c.bf16 0.0, %v2207
    %s2211 = ssub.s32 16, 1
    %2212 = vst [vmem:[%s2208] sm:%s2211] %v2209
    %s2213 = scalar_lea.vmem %s0, 44
    %s2215 = sor.u32 255, 127
    %s2216 = sand.u32 %s2215, 85
    %s2217 = sshrl.u32 %s2216, 1
    %s2218 = sor.u32 %s2216, %s2217
    %s2219 = sand.u32 51, %s2218
    %s2220 = sshrl.u32 %s2219, 2
    %s2221 = sor.u32 %s2219, %s2220
    %s2222 = sand.u32 15, %s2221
    %v2223 = vld [vmem:[%s2213] sm:%s2222]
    %v2224 = vunpack.c.l.bf16 %v2223
    %v2225 = vunpack.c.h.bf16 %v2223
    %v2226 = vlaneseq
    %v2227 = vand.u32 %v2226, 127
    %vm2229 = vcmp.lt.s32.totalorder %v2227, 48
    %v2230 = vsel %vm2229, %v2224, %v16
    %s2231 = scalar_lea.vmem [#allocation20], 44
    %v2232 = vpack.c.bf16 0.0, %v2230
    %s2234 = ssub.s32 16, 1
    %2235 = vst [vmem:[%s2231] sm:%s2234] %v2232
    %s2236 = scalar_lea.vmem %s0, 48
    %s2238 = sor.u32 255, 127
    %s2239 = sand.u32 %s2238, 85
    %s2240 = sshrl.u32 %s2239, 1
    %s2241 = sor.u32 %s2239, %s2240
    %s2242 = sand.u32 51, %s2241
    %s2243 = sshrl.u32 %s2242, 2
    %s2244 = sor.u32 %s2242, %s2243
    %s2245 = sand.u32 15, %s2244
    %v2246 = vld [vmem:[%s2236] sm:%s2245]
    %v2247 = vunpack.c.l.bf16 %v2246
    %v2248 = vunpack.c.h.bf16 %v2246
    %v2249 = vlaneseq
    %v2250 = vand.u32 %v2249, 127
    %vm2252 = vcmp.lt.s32.totalorder %v2250, 48
    %v2253 = vsel %vm2252, %v2247, %v16
    %s2254 = scalar_lea.vmem [#allocation20], 48
    %v2255 = vpack.c.bf16 0.0, %v2253
    %s2257 = ssub.s32 16, 1
    %2258 = vst [vmem:[%s2254] sm:%s2257] %v2255
    %s2259 = scalar_lea.vmem %s0, 52
    %s2261 = sor.u32 255, 127
    %s2262 = sand.u32 %s2261, 85
    %s2263 = sshrl.u32 %s2262, 1
    %s2264 = sor.u32 %s2262, %s2263
    %s2265 = sand.u32 51, %s2264
    %s2266 = sshrl.u32 %s2265, 2
    %s2267 = sor.u32 %s2265, %s2266
    %s2268 = sand.u32 15, %s2267
    %v2269 = vld [vmem:[%s2259] sm:%s2268]
    %v2270 = vunpack.c.l.bf16 %v2269
    %v2271 = vunpack.c.h.bf16 %v2269
    %v2272 = vlaneseq
    %v2273 = vand.u32 %v2272, 127
    %vm2275 = vcmp.lt.s32.totalorder %v2273, 48
    %v2276 = vsel %vm2275, %v2270, %v16
    %s2277 = scalar_lea.vmem [#allocation20], 52
    %v2278 = vpack.c.bf16 0.0, %v2276
    %s2280 = ssub.s32 16, 1
    %2281 = vst [vmem:[%s2277] sm:%s2280] %v2278
    %s2282 = scalar_lea.vmem %s0, 56
    %s2284 = sor.u32 255, 127
    %s2285 = sand.u32 %s2284, 85
    %s2286 = sshrl.u32 %s2285, 1
    %s2287 = sor.u32 %s2285, %s2286
    %s2288 = sand.u32 51, %s2287
    %s2289 = sshrl.u32 %s2288, 2
    %s2290 = sor.u32 %s2288, %s2289
    %s2291 = sand.u32 15, %s2290
    %v2292 = vld [vmem:[%s2282] sm:%s2291]
    %v2293 = vunpack.c.l.bf16 %v2292
    %v2294 = vunpack.c.h.bf16 %v2292
    %v2295 = vlaneseq
    %v2296 = vand.u32 %v2295, 127
    %vm2298 = vcmp.lt.s32.totalorder %v2296, 48
    %v2299 = vsel %vm2298, %v2293, %v16
    %s2300 = scalar_lea.vmem [#allocation20], 56
    %v2301 = vpack.c.bf16 0.0, %v2299
    %s2303 = ssub.s32 16, 1
    %2304 = vst [vmem:[%s2300] sm:%s2303] %v2301
    %s2305 = scalar_lea.vmem %s0, 60
    %s2307 = sor.u32 255, 127
    %s2308 = sand.u32 %s2307, 85
    %s2309 = sshrl.u32 %s2308, 1
    %s2310 = sor.u32 %s2308, %s2309
    %s2311 = sand.u32 51, %s2310
    %s2312 = sshrl.u32 %s2311, 2
    %s2313 = sor.u32 %s2311, %s2312
    %s2314 = sand.u32 15, %s2313
    %v2315 = vld [vmem:[%s2305] sm:%s2314]
    %v2316 = vunpack.c.l.bf16 %v2315
    %v2317 = vunpack.c.h.bf16 %v2315
    %v2318 = vlaneseq
    %v2319 = vand.u32 %v2318, 127
    %vm2321 = vcmp.lt.s32.totalorder %v2319, 48
    %v2322 = vsel %vm2321, %v2316, %v16
    %s2323 = scalar_lea.vmem [#allocation20], 60
    %v2324 = vpack.c.bf16 0.0, %v2322
    %s2326 = ssub.s32 16, 1
    %2327 = vst [vmem:[%s2323] sm:%s2326] %v2324
    %s2328 = scalar_lea.vmem %s0, 64
    %s2330 = sor.u32 255, 127
    %s2331 = sand.u32 %s2330, 85
    %s2332 = sshrl.u32 %s2331, 1
    %s2333 = sor.u32 %s2331, %s2332
    %s2334 = sand.u32 51, %s2333
    %s2335 = sshrl.u32 %s2334, 2
    %s2336 = sor.u32 %s2334, %s2335
    %s2337 = sand.u32 15, %s2336
    %v2338 = vld [vmem:[%s2328] sm:%s2337]
    %v2339 = vunpack.c.l.bf16 %v2338
    %v2340 = vunpack.c.h.bf16 %v2338
    %v2341 = vlaneseq
    %v2342 = vand.u32 %v2341, 127
    %vm2344 = vcmp.lt.s32.totalorder %v2342, 48
    %v2345 = vsel %vm2344, %v2339, %v16
    %s2346 = scalar_lea.vmem [#allocation20], 64
    %v2347 = vpack.c.bf16 0.0, %v2345
    %s2349 = ssub.s32 16, 1
    %2350 = vst [vmem:[%s2346] sm:%s2349] %v2347
    %s2351 = scalar_lea.vmem %s0, 68
    %s2353 = sor.u32 255, 127
    %s2354 = sand.u32 %s2353, 85
    %s2355 = sshrl.u32 %s2354, 1
    %s2356 = sor.u32 %s2354, %s2355
    %s2357 = sand.u32 51, %s2356
    %s2358 = sshrl.u32 %s2357, 2
    %s2359 = sor.u32 %s2357, %s2358
    %s2360 = sand.u32 15, %s2359
    %v2361 = vld [vmem:[%s2351] sm:%s2360]
    %v2362 = vunpack.c.l.bf16 %v2361
    %v2363 = vunpack.c.h.bf16 %v2361
    %v2364 = vlaneseq
    %v2365 = vand.u32 %v2364, 127
    %vm2367 = vcmp.lt.s32.totalorder %v2365, 48
    %v2368 = vsel %vm2367, %v2362, %v16
    %s2369 = scalar_lea.vmem [#allocation20], 68
    %v2370 = vpack.c.bf16 0.0, %v2368
    %s2372 = ssub.s32 16, 1
    %2373 = vst [vmem:[%s2369] sm:%s2372] %v2370
    %s2374 = scalar_lea.vmem %s0, 72
    %s2376 = sor.u32 255, 127
    %s2377 = sand.u32 %s2376, 85
    %s2378 = sshrl.u32 %s2377, 1
    %s2379 = sor.u32 %s2377, %s2378
    %s2380 = sand.u32 51, %s2379
    %s2381 = sshrl.u32 %s2380, 2
    %s2382 = sor.u32 %s2380, %s2381
    %s2383 = sand.u32 15, %s2382
    %v2384 = vld [vmem:[%s2374] sm:%s2383]
    %v2385 = vunpack.c.l.bf16 %v2384
    %v2386 = vunpack.c.h.bf16 %v2384
    %v2387 = vlaneseq
    %v2388 = vand.u32 %v2387, 127
    %vm2390 = vcmp.lt.s32.totalorder %v2388, 48
    %v2391 = vsel %vm2390, %v2385, %v16
    %s2392 = scalar_lea.vmem [#allocation20], 72
    %v2393 = vpack.c.bf16 0.0, %v2391
    %s2395 = ssub.s32 16, 1
    %2396 = vst [vmem:[%s2392] sm:%s2395] %v2393
    %s2397 = scalar_lea.vmem %s0, 76
    %s2399 = sor.u32 255, 127
    %s2400 = sand.u32 %s2399, 85
    %s2401 = sshrl.u32 %s2400, 1
    %s2402 = sor.u32 %s2400, %s2401
    %s2403 = sand.u32 51, %s2402
    %s2404 = sshrl.u32 %s2403, 2
    %s2405 = sor.u32 %s2403, %s2404
    %s2406 = sand.u32 15, %s2405
    %v2407 = vld [vmem:[%s2397] sm:%s2406]
    %v2408 = vunpack.c.l.bf16 %v2407
    %v2409 = vunpack.c.h.bf16 %v2407
    %v2410 = vlaneseq
    %v2411 = vand.u32 %v2410, 127
    %vm2413 = vcmp.lt.s32.totalorder %v2411, 48
    %v2414 = vsel %vm2413, %v2408, %v16
    %s2415 = scalar_lea.vmem [#allocation20], 76
    %v2416 = vpack.c.bf16 0.0, %v2414
    %s2418 = ssub.s32 16, 1
    %2419 = vst [vmem:[%s2415] sm:%s2418] %v2416
    %s2420 = scalar_lea.vmem %s0, 80
    %s2422 = sor.u32 255, 127
    %s2423 = sand.u32 %s2422, 85
    %s2424 = sshrl.u32 %s2423, 1
    %s2425 = sor.u32 %s2423, %s2424
    %s2426 = sand.u32 51, %s2425
    %s2427 = sshrl.u32 %s2426, 2
    %s2428 = sor.u32 %s2426, %s2427
    %s2429 = sand.u32 15, %s2428
    %v2430 = vld [vmem:[%s2420] sm:%s2429]
    %v2431 = vunpack.c.l.bf16 %v2430
    %v2432 = vunpack.c.h.bf16 %v2430
    %v2433 = vlaneseq
    %v2434 = vand.u32 %v2433, 127
    %vm2436 = vcmp.lt.s32.totalorder %v2434, 48
    %v2437 = vsel %vm2436, %v2431, %v16
    %s2438 = scalar_lea.vmem [#allocation20], 80
    %v2439 = vpack.c.bf16 0.0, %v2437
    %s2441 = ssub.s32 16, 1
    %2442 = vst [vmem:[%s2438] sm:%s2441] %v2439
    %s2443 = scalar_lea.vmem %s0, 84
    %s2445 = sor.u32 255, 127
    %s2446 = sand.u32 %s2445, 85
    %s2447 = sshrl.u32 %s2446, 1
    %s2448 = sor.u32 %s2446, %s2447
    %s2449 = sand.u32 51, %s2448
    %s2450 = sshrl.u32 %s2449, 2
    %s2451 = sor.u32 %s2449, %s2450
    %s2452 = sand.u32 15, %s2451
    %v2453 = vld [vmem:[%s2443] sm:%s2452]
    %v2454 = vunpack.c.l.bf16 %v2453
    %v2455 = vunpack.c.h.bf16 %v2453
    %v2456 = vlaneseq
    %v2457 = vand.u32 %v2456, 127
    %vm2459 = vcmp.lt.s32.totalorder %v2457, 48
    %v2460 = vsel %vm2459, %v2454, %v16
    %s2461 = scalar_lea.vmem [#allocation20], 84
    %v2462 = vpack.c.bf16 0.0, %v2460
    %s2464 = ssub.s32 16, 1
    %2465 = vst [vmem:[%s2461] sm:%s2464] %v2462
    %s2466 = scalar_lea.vmem %s0, 88
    %s2468 = sor.u32 255, 127
    %s2469 = sand.u32 %s2468, 85
    %s2470 = sshrl.u32 %s2469, 1
    %s2471 = sor.u32 %s2469, %s2470
    %s2472 = sand.u32 51, %s2471
    %s2473 = sshrl.u32 %s2472, 2
    %s2474 = sor.u32 %s2472, %s2473
    %s2475 = sand.u32 15, %s2474
    %v2476 = vld [vmem:[%s2466] sm:%s2475]
    %v2477 = vunpack.c.l.bf16 %v2476
    %v2478 = vunpack.c.h.bf16 %v2476
    %v2479 = vlaneseq
    %v2480 = vand.u32 %v2479, 127
    %vm2482 = vcmp.lt.s32.totalorder %v2480, 48
    %v2483 = vsel %vm2482, %v2477, %v16
    %s2484 = scalar_lea.vmem [#allocation20], 88
    %v2485 = vpack.c.bf16 0.0, %v2483
    %s2487 = ssub.s32 16, 1
    %2488 = vst [vmem:[%s2484] sm:%s2487] %v2485
    %s2489 = scalar_lea.vmem %s0, 92
    %s2491 = sor.u32 255, 127
    %s2492 = sand.u32 %s2491, 85
    %s2493 = sshrl.u32 %s2492, 1
    %s2494 = sor.u32 %s2492, %s2493
    %s2495 = sand.u32 51, %s2494
    %s2496 = sshrl.u32 %s2495, 2
    %s2497 = sor.u32 %s2495, %s2496
    %s2498 = sand.u32 15, %s2497
    %v2499 = vld [vmem:[%s2489] sm:%s2498]
    %v2500 = vunpack.c.l.bf16 %v2499
    %v2501 = vunpack.c.h.bf16 %v2499
    %v2502 = vlaneseq
    %v2503 = vand.u32 %v2502, 127
    %vm2505 = vcmp.lt.s32.totalorder %v2503, 48
    %v2506 = vsel %vm2505, %v2500, %v16
    %s2507 = scalar_lea.vmem [#allocation20], 92
    %v2508 = vpack.c.bf16 0.0, %v2506
    %s2510 = ssub.s32 16, 1
    %2511 = vst [vmem:[%s2507] sm:%s2510] %v2508
    %s2512 = scalar_lea.vmem %s0, 96
    %s2514 = sor.u32 255, 127
    %s2515 = sand.u32 %s2514, 85
    %s2516 = sshrl.u32 %s2515, 1
    %s2517 = sor.u32 %s2515, %s2516
    %s2518 = sand.u32 51, %s2517
    %s2519 = sshrl.u32 %s2518, 2
    %s2520 = sor.u32 %s2518, %s2519
    %s2521 = sand.u32 15, %s2520
    %v2522 = vld [vmem:[%s2512] sm:%s2521]
    %v2523 = vunpack.c.l.bf16 %v2522
    %v2524 = vunpack.c.h.bf16 %v2522
    %v2525 = vlaneseq
    %v2526 = vand.u32 %v2525, 127
    %vm2528 = vcmp.lt.s32.totalorder %v2526, 48
    %v2529 = vsel %vm2528, %v2523, %v16
    %s2530 = scalar_lea.vmem [#allocation20], 96
    %v2531 = vpack.c.bf16 0.0, %v2529
    %s2533 = ssub.s32 16, 1
    %2534 = vst [vmem:[%s2530] sm:%s2533] %v2531
    %s2535 = scalar_lea.vmem %s0, 100
    %s2537 = sor.u32 255, 127
    %s2538 = sand.u32 %s2537, 85
    %s2539 = sshrl.u32 %s2538, 1
    %s2540 = sor.u32 %s2538, %s2539
    %s2541 = sand.u32 51, %s2540
    %s2542 = sshrl.u32 %s2541, 2
    %s2543 = sor.u32 %s2541, %s2542
    %s2544 = sand.u32 15, %s2543
    %v2545 = vld [vmem:[%s2535] sm:%s2544]
    %v2546 = vunpack.c.l.bf16 %v2545
    %v2547 = vunpack.c.h.bf16 %v2545
    %v2548 = vlaneseq
    %v2549 = vand.u32 %v2548, 127
    %vm2551 = vcmp.lt.s32.totalorder %v2549, 48
    %v2552 = vsel %vm2551, %v2546, %v16
    %s2553 = scalar_lea.vmem [#allocation20], 100
    %v2554 = vpack.c.bf16 0.0, %v2552
    %s2556 = ssub.s32 16, 1
    %2557 = vst [vmem:[%s2553] sm:%s2556] %v2554
    %s2558 = scalar_lea.vmem %s0, 104
    %s2560 = sor.u32 255, 127
    %s2561 = sand.u32 %s2560, 85
    %s2562 = sshrl.u32 %s2561, 1
    %s2563 = sor.u32 %s2561, %s2562
    %s2564 = sand.u32 51, %s2563
    %s2565 = sshrl.u32 %s2564, 2
    %s2566 = sor.u32 %s2564, %s2565
    %s2567 = sand.u32 15, %s2566
    %v2568 = vld [vmem:[%s2558] sm:%s2567]
    %v2569 = vunpack.c.l.bf16 %v2568
    %v2570 = vunpack.c.h.bf16 %v2568
    %v2571 = vlaneseq
    %v2572 = vand.u32 %v2571, 127
    %vm2574 = vcmp.lt.s32.totalorder %v2572, 48
    %v2575 = vsel %vm2574, %v2569, %v16
    %s2576 = scalar_lea.vmem [#allocation20], 104
    %v2577 = vpack.c.bf16 0.0, %v2575
    %s2579 = ssub.s32 16, 1
    %2580 = vst [vmem:[%s2576] sm:%s2579] %v2577
    %s2581 = scalar_lea.vmem %s0, 108
    %s2583 = sor.u32 255, 127
    %s2584 = sand.u32 %s2583, 85
    %s2585 = sshrl.u32 %s2584, 1
    %s2586 = sor.u32 %s2584, %s2585
    %s2587 = sand.u32 51, %s2586
    %s2588 = sshrl.u32 %s2587, 2
    %s2589 = sor.u32 %s2587, %s2588
    %s2590 = sand.u32 15, %s2589
    %v2591 = vld [vmem:[%s2581] sm:%s2590]
    %v2592 = vunpack.c.l.bf16 %v2591
    %v2593 = vunpack.c.h.bf16 %v2591
    %v2594 = vlaneseq
    %v2595 = vand.u32 %v2594, 127
    %vm2597 = vcmp.lt.s32.totalorder %v2595, 48
    %v2598 = vsel %vm2597, %v2592, %v16
    %s2599 = scalar_lea.vmem [#allocation20], 108
    %v2600 = vpack.c.bf16 0.0, %v2598
    %s2602 = ssub.s32 16, 1
    %2603 = vst [vmem:[%s2599] sm:%s2602] %v2600
    %s2604 = scalar_lea.vmem %s0, 112
    %s2606 = sor.u32 255, 127
    %s2607 = sand.u32 %s2606, 85
    %s2608 = sshrl.u32 %s2607, 1
    %s2609 = sor.u32 %s2607, %s2608
    %s2610 = sand.u32 51, %s2609
    %s2611 = sshrl.u32 %s2610, 2
    %s2612 = sor.u32 %s2610, %s2611
    %s2613 = sand.u32 15, %s2612
    %v2614 = vld [vmem:[%s2604] sm:%s2613]
    %v2615 = vunpack.c.l.bf16 %v2614
    %v2616 = vunpack.c.h.bf16 %v2614
    %v2617 = vlaneseq
    %v2618 = vand.u32 %v2617, 127
    %vm2620 = vcmp.lt.s32.totalorder %v2618, 48
    %v2621 = vsel %vm2620, %v2615, %v16
    %s2622 = scalar_lea.vmem [#allocation20], 112
    %v2623 = vpack.c.bf16 0.0, %v2621
    %s2625 = ssub.s32 16, 1
    %2626 = vst [vmem:[%s2622] sm:%s2625] %v2623
    %s2627 = scalar_lea.vmem %s0, 116
    %s2629 = sor.u32 255, 127
    %s2630 = sand.u32 %s2629, 85
    %s2631 = sshrl.u32 %s2630, 1
    %s2632 = sor.u32 %s2630, %s2631
    %s2633 = sand.u32 51, %s2632
    %s2634 = sshrl.u32 %s2633, 2
    %s2635 = sor.u32 %s2633, %s2634
    %s2636 = sand.u32 15, %s2635
    %v2637 = vld [vmem:[%s2627] sm:%s2636]
    %v2638 = vunpack.c.l.bf16 %v2637
    %v2639 = vunpack.c.h.bf16 %v2637
    %v2640 = vlaneseq
    %v2641 = vand.u32 %v2640, 127
    %vm2643 = vcmp.lt.s32.totalorder %v2641, 48
    %v2644 = vsel %vm2643, %v2638, %v16
    %s2645 = scalar_lea.vmem [#allocation20], 116
    %v2646 = vpack.c.bf16 0.0, %v2644
    %s2648 = ssub.s32 16, 1
    %2649 = vst [vmem:[%s2645] sm:%s2648] %v2646
    %s2650 = scalar_lea.vmem %s0, 120
    %s2652 = sor.u32 255, 127
    %s2653 = sand.u32 %s2652, 85
    %s2654 = sshrl.u32 %s2653, 1
    %s2655 = sor.u32 %s2653, %s2654
    %s2656 = sand.u32 51, %s2655
    %s2657 = sshrl.u32 %s2656, 2
    %s2658 = sor.u32 %s2656, %s2657
    %s2659 = sand.u32 15, %s2658
    %v2660 = vld [vmem:[%s2650] sm:%s2659]
    %v2661 = vunpack.c.l.bf16 %v2660
    %v2662 = vunpack.c.h.bf16 %v2660
    %v2663 = vlaneseq
    %v2664 = vand.u32 %v2663, 127
    %vm2666 = vcmp.lt.s32.totalorder %v2664, 48
    %v2667 = vsel %vm2666, %v2661, %v16
    %s2668 = scalar_lea.vmem [#allocation20], 120
    %v2669 = vpack.c.bf16 0.0, %v2667
    %s2671 = ssub.s32 16, 1
    %2672 = vst [vmem:[%s2668] sm:%s2671] %v2669
    %s2673 = scalar_lea.vmem %s0, 124
    %s2675 = sor.u32 255, 127
    %s2676 = sand.u32 %s2675, 85
    %s2677 = sshrl.u32 %s2676, 1
    %s2678 = sor.u32 %s2676, %s2677
    %s2679 = sand.u32 51, %s2678
    %s2680 = sshrl.u32 %s2679, 2
    %s2681 = sor.u32 %s2679, %s2680
    %s2682 = sand.u32 15, %s2681
    %v2683 = vld [vmem:[%s2673] sm:%s2682]
    %v2684 = vunpack.c.l.bf16 %v2683
    %v2685 = vunpack.c.h.bf16 %v2683
    %v2686 = vlaneseq
    %v2687 = vand.u32 %v2686, 127
    %vm2689 = vcmp.lt.s32.totalorder %v2687, 48
    %v2690 = vsel %vm2689, %v2684, %v16
    %s2691 = scalar_lea.vmem [#allocation20], 124
    %v2692 = vpack.c.bf16 0.0, %v2690
    %s2694 = ssub.s32 16, 1
    %2695 = vst [vmem:[%s2691] sm:%s2694] %v2692
    %s2696 = scalar_lea.vmem %s0, 128
    %s2698 = sor.u32 255, 127
    %s2699 = sand.u32 %s2698, 85
    %s2700 = sshrl.u32 %s2699, 1
    %s2701 = sor.u32 %s2699, %s2700
    %s2702 = sand.u32 51, %s2701
    %s2703 = sshrl.u32 %s2702, 2
    %s2704 = sor.u32 %s2702, %s2703
    %s2705 = sand.u32 15, %s2704
    %v2706 = vld [vmem:[%s2696] sm:%s2705]
    %v2707 = vunpack.c.l.bf16 %v2706
    %v2708 = vunpack.c.h.bf16 %v2706
    %v2709 = vlaneseq
    %v2710 = vand.u32 %v2709, 127
    %vm2712 = vcmp.lt.s32.totalorder %v2710, 48
    %v2713 = vsel %vm2712, %v2707, %v16
    %s2714 = scalar_lea.vmem [#allocation20], 128
    %v2715 = vpack.c.bf16 0.0, %v2713
    %s2717 = ssub.s32 16, 1
    %2718 = vst [vmem:[%s2714] sm:%s2717] %v2715
    %s2719 = scalar_lea.vmem %s0, 132
    %s2721 = sor.u32 255, 127
    %s2722 = sand.u32 %s2721, 85
    %s2723 = sshrl.u32 %s2722, 1
    %s2724 = sor.u32 %s2722, %s2723
    %s2725 = sand.u32 51, %s2724
    %s2726 = sshrl.u32 %s2725, 2
    %s2727 = sor.u32 %s2725, %s2726
    %s2728 = sand.u32 15, %s2727
    %v2729 = vld [vmem:[%s2719] sm:%s2728]
    %v2730 = vunpack.c.l.bf16 %v2729
    %v2731 = vunpack.c.h.bf16 %v2729
    %v2732 = vlaneseq
    %v2733 = vand.u32 %v2732, 127
    %vm2735 = vcmp.lt.s32.totalorder %v2733, 48
    %v2736 = vsel %vm2735, %v2730, %v16
    %s2737 = scalar_lea.vmem [#allocation20], 132
    %v2738 = vpack.c.bf16 0.0, %v2736
    %s2740 = ssub.s32 16, 1
    %2741 = vst [vmem:[%s2737] sm:%s2740] %v2738
    %s2742 = scalar_lea.vmem %s0, 136
    %s2744 = sor.u32 255, 127
    %s2745 = sand.u32 %s2744, 85
    %s2746 = sshrl.u32 %s2745, 1
    %s2747 = sor.u32 %s2745, %s2746
    %s2748 = sand.u32 51, %s2747
    %s2749 = sshrl.u32 %s2748, 2
    %s2750 = sor.u32 %s2748, %s2749
    %s2751 = sand.u32 15, %s2750
    %v2752 = vld [vmem:[%s2742] sm:%s2751]
    %v2753 = vunpack.c.l.bf16 %v2752
    %v2754 = vunpack.c.h.bf16 %v2752
    %v2755 = vlaneseq
    %v2756 = vand.u32 %v2755, 127
    %vm2758 = vcmp.lt.s32.totalorder %v2756, 48
    %v2759 = vsel %vm2758, %v2753, %v16
    %s2760 = scalar_lea.vmem [#allocation20], 136
    %v2761 = vpack.c.bf16 0.0, %v2759
    %s2763 = ssub.s32 16, 1
    %2764 = vst [vmem:[%s2760] sm:%s2763] %v2761
    %s2765 = scalar_lea.vmem %s0, 140
    %s2767 = sor.u32 255, 127
    %s2768 = sand.u32 %s2767, 85
    %s2769 = sshrl.u32 %s2768, 1
    %s2770 = sor.u32 %s2768, %s2769
    %s2771 = sand.u32 51, %s2770
    %s2772 = sshrl.u32 %s2771, 2
    %s2773 = sor.u32 %s2771, %s2772
    %s2774 = sand.u32 15, %s2773
    %v2775 = vld [vmem:[%s2765] sm:%s2774]
    %v2776 = vunpack.c.l.bf16 %v2775
    %v2777 = vunpack.c.h.bf16 %v2775
    %v2778 = vlaneseq
    %v2779 = vand.u32 %v2778, 127
    %vm2781 = vcmp.lt.s32.totalorder %v2779, 48
    %v2782 = vsel %vm2781, %v2776, %v16
    %s2783 = scalar_lea.vmem [#allocation20], 140
    %v2784 = vpack.c.bf16 0.0, %v2782
    %s2786 = ssub.s32 16, 1
    %2787 = vst [vmem:[%s2783] sm:%s2786] %v2784
    %s2788 = scalar_lea.vmem %s0, 144
    %s2790 = sor.u32 255, 127
    %s2791 = sand.u32 %s2790, 85
    %s2792 = sshrl.u32 %s2791, 1
    %s2793 = sor.u32 %s2791, %s2792
    %s2794 = sand.u32 51, %s2793
    %s2795 = sshrl.u32 %s2794, 2
    %s2796 = sor.u32 %s2794, %s2795
    %s2797 = sand.u32 15, %s2796
    %v2798 = vld [vmem:[%s2788] sm:%s2797]
    %v2799 = vunpack.c.l.bf16 %v2798
    %v2800 = vunpack.c.h.bf16 %v2798
    %v2801 = vlaneseq
    %v2802 = vand.u32 %v2801, 127
    %vm2804 = vcmp.lt.s32.totalorder %v2802, 48
    %v2805 = vsel %vm2804, %v2799, %v16
    %s2806 = scalar_lea.vmem [#allocation20], 144
    %v2807 = vpack.c.bf16 0.0, %v2805
    %s2809 = ssub.s32 16, 1
    %2810 = vst [vmem:[%s2806] sm:%s2809] %v2807
    %s2811 = scalar_lea.vmem %s0, 148
    %s2813 = sor.u32 255, 127
    %s2814 = sand.u32 %s2813, 85
    %s2815 = sshrl.u32 %s2814, 1
    %s2816 = sor.u32 %s2814, %s2815
    %s2817 = sand.u32 51, %s2816
    %s2818 = sshrl.u32 %s2817, 2
    %s2819 = sor.u32 %s2817, %s2818
    %s2820 = sand.u32 15, %s2819
    %v2821 = vld [vmem:[%s2811] sm:%s2820]
    %v2822 = vunpack.c.l.bf16 %v2821
    %v2823 = vunpack.c.h.bf16 %v2821
    %v2824 = vlaneseq
    %v2825 = vand.u32 %v2824, 127
    %vm2827 = vcmp.lt.s32.totalorder %v2825, 48
    %v2828 = vsel %vm2827, %v2822, %v16
    %s2829 = scalar_lea.vmem [#allocation20], 148
    %v2830 = vpack.c.bf16 0.0, %v2828
    %s2832 = ssub.s32 16, 1
    %2833 = vst [vmem:[%s2829] sm:%s2832] %v2830
    %s2834 = scalar_lea.vmem %s0, 152
    %s2836 = sor.u32 255, 127
    %s2837 = sand.u32 %s2836, 85
    %s2838 = sshrl.u32 %s2837, 1
    %s2839 = sor.u32 %s2837, %s2838
    %s2840 = sand.u32 51, %s2839
    %s2841 = sshrl.u32 %s2840, 2
    %s2842 = sor.u32 %s2840, %s2841
    %s2843 = sand.u32 15, %s2842
    %v2844 = vld [vmem:[%s2834] sm:%s2843]
    %v2845 = vunpack.c.l.bf16 %v2844
    %v2846 = vunpack.c.h.bf16 %v2844
    %v2847 = vlaneseq
    %v2848 = vand.u32 %v2847, 127
    %vm2850 = vcmp.lt.s32.totalorder %v2848, 48
    %v2851 = vsel %vm2850, %v2845, %v16
    %s2852 = scalar_lea.vmem [#allocation20], 152
    %v2853 = vpack.c.bf16 0.0, %v2851
    %s2855 = ssub.s32 16, 1
    %2856 = vst [vmem:[%s2852] sm:%s2855] %v2853
    %s2857 = scalar_lea.vmem %s0, 156
    %s2859 = sor.u32 255, 127
    %s2860 = sand.u32 %s2859, 85
    %s2861 = sshrl.u32 %s2860, 1
    %s2862 = sor.u32 %s2860, %s2861
    %s2863 = sand.u32 51, %s2862
    %s2864 = sshrl.u32 %s2863, 2
    %s2865 = sor.u32 %s2863, %s2864
    %s2866 = sand.u32 15, %s2865
    %v2867 = vld [vmem:[%s2857] sm:%s2866]
    %v2868 = vunpack.c.l.bf16 %v2867
    %v2869 = vunpack.c.h.bf16 %v2867
    %v2870 = vlaneseq
    %v2871 = vand.u32 %v2870, 127
    %vm2873 = vcmp.lt.s32.totalorder %v2871, 48
    %v2874 = vsel %vm2873, %v2868, %v16
    %s2875 = scalar_lea.vmem [#allocation20], 156
    %v2876 = vpack.c.bf16 0.0, %v2874
    %s2878 = ssub.s32 16, 1
    %2879 = vst [vmem:[%s2875] sm:%s2878] %v2876
    %s2880 = scalar_lea.vmem %s0, 160
    %s2882 = sor.u32 255, 127
    %s2883 = sand.u32 %s2882, 85
    %s2884 = sshrl.u32 %s2883, 1
    %s2885 = sor.u32 %s2883, %s2884
    %s2886 = sand.u32 51, %s2885
    %s2887 = sshrl.u32 %s2886, 2
    %s2888 = sor.u32 %s2886, %s2887
    %s2889 = sand.u32 15, %s2888
    %v2890 = vld [vmem:[%s2880] sm:%s2889]
    %v2891 = vunpack.c.l.bf16 %v2890
    %v2892 = vunpack.c.h.bf16 %v2890
    %v2893 = vlaneseq
    %v2894 = vand.u32 %v2893, 127
    %vm2896 = vcmp.lt.s32.totalorder %v2894, 48
    %v2897 = vsel %vm2896, %v2891, %v16
    %s2898 = scalar_lea.vmem [#allocation20], 160
    %v2899 = vpack.c.bf16 0.0, %v2897
    %s2901 = ssub.s32 16, 1
    %2902 = vst [vmem:[%s2898] sm:%s2901] %v2899
    %s2903 = scalar_lea.vmem %s0, 164
    %s2905 = sor.u32 255, 127
    %s2906 = sand.u32 %s2905, 85
    %s2907 = sshrl.u32 %s2906, 1
    %s2908 = sor.u32 %s2906, %s2907
    %s2909 = sand.u32 51, %s2908
    %s2910 = sshrl.u32 %s2909, 2
    %s2911 = sor.u32 %s2909, %s2910
    %s2912 = sand.u32 15, %s2911
    %v2913 = vld [vmem:[%s2903] sm:%s2912]
    %v2914 = vunpack.c.l.bf16 %v2913
    %v2915 = vunpack.c.h.bf16 %v2913
    %v2916 = vlaneseq
    %v2917 = vand.u32 %v2916, 127
    %vm2919 = vcmp.lt.s32.totalorder %v2917, 48
    %v2920 = vsel %vm2919, %v2914, %v16
    %s2921 = scalar_lea.vmem [#allocation20], 164
    %v2922 = vpack.c.bf16 0.0, %v2920
    %s2924 = ssub.s32 16, 1
    %2925 = vst [vmem:[%s2921] sm:%s2924] %v2922
    %s2926 = scalar_lea.vmem %s0, 168
    %s2928 = sor.u32 255, 127
    %s2929 = sand.u32 %s2928, 85
    %s2930 = sshrl.u32 %s2929, 1
    %s2931 = sor.u32 %s2929, %s2930
    %s2932 = sand.u32 51, %s2931
    %s2933 = sshrl.u32 %s2932, 2
    %s2934 = sor.u32 %s2932, %s2933
    %s2935 = sand.u32 15, %s2934
    %v2936 = vld [vmem:[%s2926] sm:%s2935]
    %v2937 = vunpack.c.l.bf16 %v2936
    %v2938 = vunpack.c.h.bf16 %v2936
    %v2939 = vlaneseq
    %v2940 = vand.u32 %v2939, 127
    %vm2942 = vcmp.lt.s32.totalorder %v2940, 48
    %v2943 = vsel %vm2942, %v2937, %v16
    %s2944 = scalar_lea.vmem [#allocation20], 168
    %v2945 = vpack.c.bf16 0.0, %v2943
    %s2947 = ssub.s32 16, 1
    %2948 = vst [vmem:[%s2944] sm:%s2947] %v2945
    %s2949 = scalar_lea.vmem %s0, 172
    %s2951 = sor.u32 255, 127
    %s2952 = sand.u32 %s2951, 85
    %s2953 = sshrl.u32 %s2952, 1
    %s2954 = sor.u32 %s2952, %s2953
    %s2955 = sand.u32 51, %s2954
    %s2956 = sshrl.u32 %s2955, 2
    %s2957 = sor.u32 %s2955, %s2956
    %s2958 = sand.u32 15, %s2957
    %v2959 = vld [vmem:[%s2949] sm:%s2958]
    %v2960 = vunpack.c.l.bf16 %v2959
    %v2961 = vunpack.c.h.bf16 %v2959
    %v2962 = vlaneseq
    %v2963 = vand.u32 %v2962, 127
    %vm2965 = vcmp.lt.s32.totalorder %v2963, 48
    %v2966 = vsel %vm2965, %v2960, %v16
    %s2967 = scalar_lea.vmem [#allocation20], 172
    %v2968 = vpack.c.bf16 0.0, %v2966
    %s2970 = ssub.s32 16, 1
    %2971 = vst [vmem:[%s2967] sm:%s2970] %v2968
    %s2972 = scalar_lea.vmem %s0, 176
    %s2974 = sor.u32 255, 127
    %s2975 = sand.u32 %s2974, 85
    %s2976 = sshrl.u32 %s2975, 1
    %s2977 = sor.u32 %s2975, %s2976
    %s2978 = sand.u32 51, %s2977
    %s2979 = sshrl.u32 %s2978, 2
    %s2980 = sor.u32 %s2978, %s2979
    %s2981 = sand.u32 15, %s2980
    %v2982 = vld [vmem:[%s2972] sm:%s2981]
    %v2983 = vunpack.c.l.bf16 %v2982
    %v2984 = vunpack.c.h.bf16 %v2982
    %v2985 = vlaneseq
    %v2986 = vand.u32 %v2985, 127
    %vm2988 = vcmp.lt.s32.totalorder %v2986, 48
    %v2989 = vsel %vm2988, %v2983, %v16
    %s2990 = scalar_lea.vmem [#allocation20], 176
    %v2991 = vpack.c.bf16 0.0, %v2989
    %s2993 = ssub.s32 16, 1
    %2994 = vst [vmem:[%s2990] sm:%s2993] %v2991
    %s2995 = scalar_lea.vmem %s0, 180
    %s2997 = sor.u32 255, 127
    %s2998 = sand.u32 %s2997, 85
    %s2999 = sshrl.u32 %s2998, 1
    %s3000 = sor.u32 %s2998, %s2999
    %s3001 = sand.u32 51, %s3000
    %s3002 = sshrl.u32 %s3001, 2
    %s3003 = sor.u32 %s3001, %s3002
    %s3004 = sand.u32 15, %s3003
    %v3005 = vld [vmem:[%s2995] sm:%s3004]
    %v3006 = vunpack.c.l.bf16 %v3005
    %v3007 = vunpack.c.h.bf16 %v3005
    %v3008 = vlaneseq
    %v3009 = vand.u32 %v3008, 127
    %vm3011 = vcmp.lt.s32.totalorder %v3009, 48
    %v3012 = vsel %vm3011, %v3006, %v16
    %s3013 = scalar_lea.vmem [#allocation20], 180
    %v3014 = vpack.c.bf16 0.0, %v3012
    %s3016 = ssub.s32 16, 1
    %3017 = vst [vmem:[%s3013] sm:%s3016] %v3014
    %s3018 = scalar_lea.vmem %s0, 184
    %s3020 = sor.u32 255, 127
    %s3021 = sand.u32 %s3020, 85
    %s3022 = sshrl.u32 %s3021, 1
    %s3023 = sor.u32 %s3021, %s3022
    %s3024 = sand.u32 51, %s3023
    %s3025 = sshrl.u32 %s3024, 2
    %s3026 = sor.u32 %s3024, %s3025
    %s3027 = sand.u32 15, %s3026
    %v3028 = vld [vmem:[%s3018] sm:%s3027]
    %v3029 = vunpack.c.l.bf16 %v3028
    %v3030 = vunpack.c.h.bf16 %v3028
    %v3031 = vlaneseq
    %v3032 = vand.u32 %v3031, 127
    %vm3034 = vcmp.lt.s32.totalorder %v3032, 48
    %v3035 = vsel %vm3034, %v3029, %v16
    %s3036 = scalar_lea.vmem [#allocation20], 184
    %v3037 = vpack.c.bf16 0.0, %v3035
    %s3039 = ssub.s32 16, 1
    %3040 = vst [vmem:[%s3036] sm:%s3039] %v3037
    %s3041 = scalar_lea.vmem %s0, 188
    %s3043 = sor.u32 255, 127
    %s3044 = sand.u32 %s3043, 85
    %s3045 = sshrl.u32 %s3044, 1
    %s3046 = sor.u32 %s3044, %s3045
    %s3047 = sand.u32 51, %s3046
    %s3048 = sshrl.u32 %s3047, 2
    %s3049 = sor.u32 %s3047, %s3048
    %s3050 = sand.u32 15, %s3049
    %v3051 = vld [vmem:[%s3041] sm:%s3050]
    %v3052 = vunpack.c.l.bf16 %v3051
    %v3053 = vunpack.c.h.bf16 %v3051
    %v3054 = vlaneseq
    %v3055 = vand.u32 %v3054, 127
    %vm3057 = vcmp.lt.s32.totalorder %v3055, 48
    %v3058 = vsel %vm3057, %v3052, %v16
    %s3059 = scalar_lea.vmem [#allocation20], 188
    %v3060 = vpack.c.bf16 0.0, %v3058
    %s3062 = ssub.s32 16, 1
    %3063 = vst [vmem:[%s3059] sm:%s3062] %v3060
    %s3064 = scalar_lea.vmem %s0, 192
    %s3066 = sor.u32 255, 127
    %s3067 = sand.u32 %s3066, 85
    %s3068 = sshrl.u32 %s3067, 1
    %s3069 = sor.u32 %s3067, %s3068
    %s3070 = sand.u32 51, %s3069
    %s3071 = sshrl.u32 %s3070, 2
    %s3072 = sor.u32 %s3070, %s3071
    %s3073 = sand.u32 15, %s3072
    %v3074 = vld [vmem:[%s3064] sm:%s3073]
    %v3075 = vunpack.c.l.bf16 %v3074
    %v3076 = vunpack.c.h.bf16 %v3074
    %v3077 = vlaneseq
    %v3078 = vand.u32 %v3077, 127
    %vm3080 = vcmp.lt.s32.totalorder %v3078, 48
    %v3081 = vsel %vm3080, %v3075, %v16
    %s3082 = scalar_lea.vmem [#allocation20], 192
    %v3083 = vpack.c.bf16 0.0, %v3081
    %s3085 = ssub.s32 16, 1
    %3086 = vst [vmem:[%s3082] sm:%s3085] %v3083
    %s3087 = scalar_lea.vmem %s0, 196
    %s3089 = sor.u32 255, 127
    %s3090 = sand.u32 %s3089, 85
    %s3091 = sshrl.u32 %s3090, 1
    %s3092 = sor.u32 %s3090, %s3091
    %s3093 = sand.u32 51, %s3092
    %s3094 = sshrl.u32 %s3093, 2
    %s3095 = sor.u32 %s3093, %s3094
    %s3096 = sand.u32 15, %s3095
    %v3097 = vld [vmem:[%s3087] sm:%s3096]
    %v3098 = vunpack.c.l.bf16 %v3097
    %v3099 = vunpack.c.h.bf16 %v3097
    %v3100 = vlaneseq
    %v3101 = vand.u32 %v3100, 127
    %vm3103 = vcmp.lt.s32.totalorder %v3101, 48
    %v3104 = vsel %vm3103, %v3098, %v16
    %s3105 = scalar_lea.vmem [#allocation20], 196
    %v3106 = vpack.c.bf16 0.0, %v3104
    %s3108 = ssub.s32 16, 1
    %3109 = vst [vmem:[%s3105] sm:%s3108] %v3106
    %s3110 = scalar_lea.vmem %s0, 200
    %s3112 = sor.u32 255, 127
    %s3113 = sand.u32 %s3112, 85
    %s3114 = sshrl.u32 %s3113, 1
    %s3115 = sor.u32 %s3113, %s3114
    %s3116 = sand.u32 51, %s3115
    %s3117 = sshrl.u32 %s3116, 2
    %s3118 = sor.u32 %s3116, %s3117
    %s3119 = sand.u32 15, %s3118
    %v3120 = vld [vmem:[%s3110] sm:%s3119]
    %v3121 = vunpack.c.l.bf16 %v3120
    %v3122 = vunpack.c.h.bf16 %v3120
    %v3123 = vlaneseq
    %v3124 = vand.u32 %v3123, 127
    %vm3126 = vcmp.lt.s32.totalorder %v3124, 48
    %v3127 = vsel %vm3126, %v3121, %v16
    %s3128 = scalar_lea.vmem [#allocation20], 200
    %v3129 = vpack.c.bf16 0.0, %v3127
    %s3131 = ssub.s32 16, 1
    %3132 = vst [vmem:[%s3128] sm:%s3131] %v3129
    %s3133 = scalar_lea.vmem %s0, 204
    %s3135 = sor.u32 255, 127
    %s3136 = sand.u32 %s3135, 85
    %s3137 = sshrl.u32 %s3136, 1
    %s3138 = sor.u32 %s3136, %s3137
    %s3139 = sand.u32 51, %s3138
    %s3140 = sshrl.u32 %s3139, 2
    %s3141 = sor.u32 %s3139, %s3140
    %s3142 = sand.u32 15, %s3141
    %v3143 = vld [vmem:[%s3133] sm:%s3142]
    %v3144 = vunpack.c.l.bf16 %v3143
    %v3145 = vunpack.c.h.bf16 %v3143
    %v3146 = vlaneseq
    %v3147 = vand.u32 %v3146, 127
    %vm3149 = vcmp.lt.s32.totalorder %v3147, 48
    %v3150 = vsel %vm3149, %v3144, %v16
    %s3151 = scalar_lea.vmem [#allocation20], 204
    %v3152 = vpack.c.bf16 0.0, %v3150
    %s3154 = ssub.s32 16, 1
    %3155 = vst [vmem:[%s3151] sm:%s3154] %v3152
    %s3156 = scalar_lea.vmem %s0, 208
    %s3158 = sor.u32 255, 127
    %s3159 = sand.u32 %s3158, 85
    %s3160 = sshrl.u32 %s3159, 1
    %s3161 = sor.u32 %s3159, %s3160
    %s3162 = sand.u32 51, %s3161
    %s3163 = sshrl.u32 %s3162, 2
    %s3164 = sor.u32 %s3162, %s3163
    %s3165 = sand.u32 15, %s3164
    %v3166 = vld [vmem:[%s3156] sm:%s3165]
    %v3167 = vunpack.c.l.bf16 %v3166
    %v3168 = vunpack.c.h.bf16 %v3166
    %v3169 = vlaneseq
    %v3170 = vand.u32 %v3169, 127
    %vm3172 = vcmp.lt.s32.totalorder %v3170, 48
    %v3173 = vsel %vm3172, %v3167, %v16
    %s3174 = scalar_lea.vmem [#allocation20], 208
    %v3175 = vpack.c.bf16 0.0, %v3173
    %s3177 = ssub.s32 16, 1
    %3178 = vst [vmem:[%s3174] sm:%s3177] %v3175
    %s3179 = scalar_lea.vmem %s0, 212
    %s3181 = sor.u32 255, 127
    %s3182 = sand.u32 %s3181, 85
    %s3183 = sshrl.u32 %s3182, 1
    %s3184 = sor.u32 %s3182, %s3183
    %s3185 = sand.u32 51, %s3184
    %s3186 = sshrl.u32 %s3185, 2
    %s3187 = sor.u32 %s3185, %s3186
    %s3188 = sand.u32 15, %s3187
    %v3189 = vld [vmem:[%s3179] sm:%s3188]
    %v3190 = vunpack.c.l.bf16 %v3189
    %v3191 = vunpack.c.h.bf16 %v3189
    %v3192 = vlaneseq
    %v3193 = vand.u32 %v3192, 127
    %vm3195 = vcmp.lt.s32.totalorder %v3193, 48
    %v3196 = vsel %vm3195, %v3190, %v16
    %s3197 = scalar_lea.vmem [#allocation20], 212
    %v3198 = vpack.c.bf16 0.0, %v3196
    %s3200 = ssub.s32 16, 1
    %3201 = vst [vmem:[%s3197] sm:%s3200] %v3198
    %s3202 = scalar_lea.vmem %s0, 216
    %s3204 = sor.u32 255, 127
    %s3205 = sand.u32 %s3204, 85
    %s3206 = sshrl.u32 %s3205, 1
    %s3207 = sor.u32 %s3205, %s3206
    %s3208 = sand.u32 51, %s3207
    %s3209 = sshrl.u32 %s3208, 2
    %s3210 = sor.u32 %s3208, %s3209
    %s3211 = sand.u32 15, %s3210
    %v3212 = vld [vmem:[%s3202] sm:%s3211]
    %v3213 = vunpack.c.l.bf16 %v3212
    %v3214 = vunpack.c.h.bf16 %v3212
    %v3215 = vlaneseq
    %v3216 = vand.u32 %v3215, 127
    %vm3218 = vcmp.lt.s32.totalorder %v3216, 48
    %v3219 = vsel %vm3218, %v3213, %v16
    %s3220 = scalar_lea.vmem [#allocation20], 216
    %v3221 = vpack.c.bf16 0.0, %v3219
    %s3223 = ssub.s32 16, 1
    %3224 = vst [vmem:[%s3220] sm:%s3223] %v3221
    %s3225 = scalar_lea.vmem %s0, 220
    %s3227 = sor.u32 255, 127
    %s3228 = sand.u32 %s3227, 85
    %s3229 = sshrl.u32 %s3228, 1
    %s3230 = sor.u32 %s3228, %s3229
    %s3231 = sand.u32 51, %s3230
    %s3232 = sshrl.u32 %s3231, 2
    %s3233 = sor.u32 %s3231, %s3232
    %s3234 = sand.u32 15, %s3233
    %v3235 = vld [vmem:[%s3225] sm:%s3234]
    %v3236 = vunpack.c.l.bf16 %v3235
    %v3237 = vunpack.c.h.bf16 %v3235
    %v3238 = vlaneseq
    %v3239 = vand.u32 %v3238, 127
    %vm3241 = vcmp.lt.s32.totalorder %v3239, 48
    %v3242 = vsel %vm3241, %v3236, %v16
    %s3243 = scalar_lea.vmem [#allocation20], 220
    %v3244 = vpack.c.bf16 0.0, %v3242
    %s3246 = ssub.s32 16, 1
    %3247 = vst [vmem:[%s3243] sm:%s3246] %v3244
    %s3248 = scalar_lea.vmem %s0, 224
    %s3250 = sor.u32 255, 127
    %s3251 = sand.u32 %s3250, 85
    %s3252 = sshrl.u32 %s3251, 1
    %s3253 = sor.u32 %s3251, %s3252
    %s3254 = sand.u32 51, %s3253
    %s3255 = sshrl.u32 %s3254, 2
    %s3256 = sor.u32 %s3254, %s3255
    %s3257 = sand.u32 15, %s3256
    %v3258 = vld [vmem:[%s3248] sm:%s3257]
    %v3259 = vunpack.c.l.bf16 %v3258
    %v3260 = vunpack.c.h.bf16 %v3258
    %v3261 = vlaneseq
    %v3262 = vand.u32 %v3261, 127
    %vm3264 = vcmp.lt.s32.totalorder %v3262, 48
    %v3265 = vsel %vm3264, %v3259, %v16
    %s3266 = scalar_lea.vmem [#allocation20], 224
    %v3267 = vpack.c.bf16 0.0, %v3265
    %s3269 = ssub.s32 16, 1
    %3270 = vst [vmem:[%s3266] sm:%s3269] %v3267
    %s3271 = scalar_lea.vmem %s0, 228
    %s3273 = sor.u32 255, 127
    %s3274 = sand.u32 %s3273, 85
    %s3275 = sshrl.u32 %s3274, 1
    %s3276 = sor.u32 %s3274, %s3275
    %s3277 = sand.u32 51, %s3276
    %s3278 = sshrl.u32 %s3277, 2
    %s3279 = sor.u32 %s3277, %s3278
    %s3280 = sand.u32 15, %s3279
    %v3281 = vld [vmem:[%s3271] sm:%s3280]
    %v3282 = vunpack.c.l.bf16 %v3281
    %v3283 = vunpack.c.h.bf16 %v3281
    %v3284 = vlaneseq
    %v3285 = vand.u32 %v3284, 127
    %vm3287 = vcmp.lt.s32.totalorder %v3285, 48
    %v3288 = vsel %vm3287, %v3282, %v16
    %s3289 = scalar_lea.vmem [#allocation20], 228
    %v3290 = vpack.c.bf16 0.0, %v3288
    %s3292 = ssub.s32 16, 1
    %3293 = vst [vmem:[%s3289] sm:%s3292] %v3290
    %s3294 = scalar_lea.vmem %s0, 232
    %s3296 = sor.u32 255, 127
    %s3297 = sand.u32 %s3296, 85
    %s3298 = sshrl.u32 %s3297, 1
    %s3299 = sor.u32 %s3297, %s3298
    %s3300 = sand.u32 51, %s3299
    %s3301 = sshrl.u32 %s3300, 2
    %s3302 = sor.u32 %s3300, %s3301
    %s3303 = sand.u32 15, %s3302
    %v3304 = vld [vmem:[%s3294] sm:%s3303]
    %v3305 = vunpack.c.l.bf16 %v3304
    %v3306 = vunpack.c.h.bf16 %v3304
    %v3307 = vlaneseq
    %v3308 = vand.u32 %v3307, 127
    %vm3310 = vcmp.lt.s32.totalorder %v3308, 48
    %v3311 = vsel %vm3310, %v3305, %v16
    %s3312 = scalar_lea.vmem [#allocation20], 232
    %v3313 = vpack.c.bf16 0.0, %v3311
    %s3315 = ssub.s32 16, 1
    %3316 = vst [vmem:[%s3312] sm:%s3315] %v3313
    %s3317 = scalar_lea.vmem %s0, 236
    %s3319 = sor.u32 255, 127
    %s3320 = sand.u32 %s3319, 85
    %s3321 = sshrl.u32 %s3320, 1
    %s3322 = sor.u32 %s3320, %s3321
    %s3323 = sand.u32 51, %s3322
    %s3324 = sshrl.u32 %s3323, 2
    %s3325 = sor.u32 %s3323, %s3324
    %s3326 = sand.u32 15, %s3325
    %v3327 = vld [vmem:[%s3317] sm:%s3326]
    %v3328 = vunpack.c.l.bf16 %v3327
    %v3329 = vunpack.c.h.bf16 %v3327
    %v3330 = vlaneseq
    %v3331 = vand.u32 %v3330, 127
    %vm3333 = vcmp.lt.s32.totalorder %v3331, 48
    %v3334 = vsel %vm3333, %v3328, %v16
    %s3335 = scalar_lea.vmem [#allocation20], 236
    %v3336 = vpack.c.bf16 0.0, %v3334
    %s3338 = ssub.s32 16, 1
    %3339 = vst [vmem:[%s3335] sm:%s3338] %v3336
    %s3340 = scalar_lea.vmem %s0, 240
    %s3342 = sor.u32 255, 127
    %s3343 = sand.u32 %s3342, 85
    %s3344 = sshrl.u32 %s3343, 1
    %s3345 = sor.u32 %s3343, %s3344
    %s3346 = sand.u32 51, %s3345
    %s3347 = sshrl.u32 %s3346, 2
    %s3348 = sor.u32 %s3346, %s3347
    %s3349 = sand.u32 15, %s3348
    %v3350 = vld [vmem:[%s3340] sm:%s3349]
    %v3351 = vunpack.c.l.bf16 %v3350
    %v3352 = vunpack.c.h.bf16 %v3350
    %v3353 = vlaneseq
    %v3354 = vand.u32 %v3353, 127
    %vm3356 = vcmp.lt.s32.totalorder %v3354, 48
    %v3357 = vsel %vm3356, %v3351, %v16
    %s3358 = scalar_lea.vmem [#allocation20], 240
    %v3359 = vpack.c.bf16 0.0, %v3357
    %s3361 = ssub.s32 16, 1
    %3362 = vst [vmem:[%s3358] sm:%s3361] %v3359
    %s3363 = scalar_lea.vmem %s0, 244
    %s3365 = sor.u32 255, 127
    %s3366 = sand.u32 %s3365, 85
    %s3367 = sshrl.u32 %s3366, 1
    %s3368 = sor.u32 %s3366, %s3367
    %s3369 = sand.u32 51, %s3368
    %s3370 = sshrl.u32 %s3369, 2
    %s3371 = sor.u32 %s3369, %s3370
    %s3372 = sand.u32 15, %s3371
    %v3373 = vld [vmem:[%s3363] sm:%s3372]
    %v3374 = vunpack.c.l.bf16 %v3373
    %v3375 = vunpack.c.h.bf16 %v3373
    %v3376 = vlaneseq
    %v3377 = vand.u32 %v3376, 127
    %vm3379 = vcmp.lt.s32.totalorder %v3377, 48
    %v3380 = vsel %vm3379, %v3374, %v16
    %s3381 = scalar_lea.vmem [#allocation20], 244
    %v3382 = vpack.c.bf16 0.0, %v3380
    %s3384 = ssub.s32 16, 1
    %3385 = vst [vmem:[%s3381] sm:%s3384] %v3382
    %s3386 = scalar_lea.vmem %s0, 248
    %s3388 = sor.u32 255, 127
    %s3389 = sand.u32 %s3388, 85
    %s3390 = sshrl.u32 %s3389, 1
    %s3391 = sor.u32 %s3389, %s3390
    %s3392 = sand.u32 51, %s3391
    %s3393 = sshrl.u32 %s3392, 2
    %s3394 = sor.u32 %s3392, %s3393
    %s3395 = sand.u32 15, %s3394
    %v3396 = vld [vmem:[%s3386] sm:%s3395]
    %v3397 = vunpack.c.l.bf16 %v3396
    %v3398 = vunpack.c.h.bf16 %v3396
    %v3399 = vlaneseq
    %v3400 = vand.u32 %v3399, 127
    %vm3402 = vcmp.lt.s32.totalorder %v3400, 48
    %v3403 = vsel %vm3402, %v3397, %v16
    %s3404 = scalar_lea.vmem [#allocation20], 248
    %v3405 = vpack.c.bf16 0.0, %v3403
    %s3407 = ssub.s32 16, 1
    %3408 = vst [vmem:[%s3404] sm:%s3407] %v3405
    %s3409 = scalar_lea.vmem %s0, 252
    %s3411 = sor.u32 255, 127
    %s3412 = sand.u32 %s3411, 85
    %s3413 = sshrl.u32 %s3412, 1
    %s3414 = sor.u32 %s3412, %s3413
    %s3415 = sand.u32 51, %s3414
    %s3416 = sshrl.u32 %s3415, 2
    %s3417 = sor.u32 %s3415, %s3416
    %s3418 = sand.u32 15, %s3417
    %v3419 = vld [vmem:[%s3409] sm:%s3418]
    %v3420 = vunpack.c.l.bf16 %v3419
    %v3421 = vunpack.c.h.bf16 %v3419
    %v3422 = vlaneseq
    %v3423 = vand.u32 %v3422, 127
    %vm3425 = vcmp.lt.s32.totalorder %v3423, 48
    %v3426 = vsel %vm3425, %v3420, %v16
    %s3427 = scalar_lea.vmem [#allocation20], 252
    %v3428 = vpack.c.bf16 0.0, %v3426
    %s3430 = ssub.s32 16, 1
    %3431 = vst [vmem:[%s3427] sm:%s3430] %v3428
    %s3432 = scalar_lea.vmem %s0, 256
    %s3434 = sor.u32 255, 127
    %s3435 = sand.u32 %s3434, 85
    %s3436 = sshrl.u32 %s3435, 1
    %s3437 = sor.u32 %s3435, %s3436
    %s3438 = sand.u32 51, %s3437
    %s3439 = sshrl.u32 %s3438, 2
    %s3440 = sor.u32 %s3438, %s3439
    %s3441 = sand.u32 15, %s3440
    %v3442 = vld [vmem:[%s3432] sm:%s3441]
    %v3443 = vunpack.c.l.bf16 %v3442
    %v3444 = vunpack.c.h.bf16 %v3442
    %v3445 = vlaneseq
    %v3446 = vand.u32 %v3445, 127
    %vm3448 = vcmp.lt.s32.totalorder %v3446, 48
    %v3449 = vsel %vm3448, %v3443, %v16
    %s3450 = scalar_lea.vmem [#allocation20], 256
    %v3451 = vpack.c.bf16 0.0, %v3449
    %s3453 = ssub.s32 16, 1
    %3454 = vst [vmem:[%s3450] sm:%s3453] %v3451
    %s3455 = scalar_lea.vmem %s0, 260
    %s3457 = sor.u32 255, 127
    %s3458 = sand.u32 %s3457, 85
    %s3459 = sshrl.u32 %s3458, 1
    %s3460 = sor.u32 %s3458, %s3459
    %s3461 = sand.u32 51, %s3460
    %s3462 = sshrl.u32 %s3461, 2
    %s3463 = sor.u32 %s3461, %s3462
    %s3464 = sand.u32 15, %s3463
    %v3465 = vld [vmem:[%s3455] sm:%s3464]
    %v3466 = vunpack.c.l.bf16 %v3465
    %v3467 = vunpack.c.h.bf16 %v3465
    %v3468 = vlaneseq
    %v3469 = vand.u32 %v3468, 127
    %vm3471 = vcmp.lt.s32.totalorder %v3469, 48
    %v3472 = vsel %vm3471, %v3466, %v16
    %s3473 = scalar_lea.vmem [#allocation20], 260
    %v3474 = vpack.c.bf16 0.0, %v3472
    %s3476 = ssub.s32 16, 1
    %3477 = vst [vmem:[%s3473] sm:%s3476] %v3474
    %s3478 = scalar_lea.vmem %s0, 264
    %s3480 = sor.u32 255, 127
    %s3481 = sand.u32 %s3480, 85
    %s3482 = sshrl.u32 %s3481, 1
    %s3483 = sor.u32 %s3481, %s3482
    %s3484 = sand.u32 51, %s3483
    %s3485 = sshrl.u32 %s3484, 2
    %s3486 = sor.u32 %s3484, %s3485
    %s3487 = sand.u32 15, %s3486
    %v3488 = vld [vmem:[%s3478] sm:%s3487]
    %v3489 = vunpack.c.l.bf16 %v3488
    %v3490 = vunpack.c.h.bf16 %v3488
    %v3491 = vlaneseq
    %v3492 = vand.u32 %v3491, 127
    %vm3494 = vcmp.lt.s32.totalorder %v3492, 48
    %v3495 = vsel %vm3494, %v3489, %v16
    %s3496 = scalar_lea.vmem [#allocation20], 264
    %v3497 = vpack.c.bf16 0.0, %v3495
    %s3499 = ssub.s32 16, 1
    %3500 = vst [vmem:[%s3496] sm:%s3499] %v3497
    %s3501 = scalar_lea.vmem %s0, 268
    %s3503 = sor.u32 255, 127
    %s3504 = sand.u32 %s3503, 85
    %s3505 = sshrl.u32 %s3504, 1
    %s3506 = sor.u32 %s3504, %s3505
    %s3507 = sand.u32 51, %s3506
    %s3508 = sshrl.u32 %s3507, 2
    %s3509 = sor.u32 %s3507, %s3508
    %s3510 = sand.u32 15, %s3509
    %v3511 = vld [vmem:[%s3501] sm:%s3510]
    %v3512 = vunpack.c.l.bf16 %v3511
    %v3513 = vunpack.c.h.bf16 %v3511
    %v3514 = vlaneseq
    %v3515 = vand.u32 %v3514, 127
    %vm3517 = vcmp.lt.s32.totalorder %v3515, 48
    %v3518 = vsel %vm3517, %v3512, %v16
    %s3519 = scalar_lea.vmem [#allocation20], 268
    %v3520 = vpack.c.bf16 0.0, %v3518
    %s3522 = ssub.s32 16, 1
    %3523 = vst [vmem:[%s3519] sm:%s3522] %v3520
    %s3524 = scalar_lea.vmem %s0, 272
    %s3526 = sor.u32 255, 127
    %s3527 = sand.u32 %s3526, 85
    %s3528 = sshrl.u32 %s3527, 1
    %s3529 = sor.u32 %s3527, %s3528
    %s3530 = sand.u32 51, %s3529
    %s3531 = sshrl.u32 %s3530, 2
    %s3532 = sor.u32 %s3530, %s3531
    %s3533 = sand.u32 15, %s3532
    %v3534 = vld [vmem:[%s3524] sm:%s3533]
    %v3535 = vunpack.c.l.bf16 %v3534
    %v3536 = vunpack.c.h.bf16 %v3534
    %v3537 = vlaneseq
    %v3538 = vand.u32 %v3537, 127
    %vm3540 = vcmp.lt.s32.totalorder %v3538, 48
    %v3541 = vsel %vm3540, %v3535, %v16
    %s3542 = scalar_lea.vmem [#allocation20], 272
    %v3543 = vpack.c.bf16 0.0, %v3541
    %s3545 = ssub.s32 16, 1
    %3546 = vst [vmem:[%s3542] sm:%s3545] %v3543
    %s3547 = scalar_lea.vmem %s0, 276
    %s3549 = sor.u32 255, 127
    %s3550 = sand.u32 %s3549, 85
    %s3551 = sshrl.u32 %s3550, 1
    %s3552 = sor.u32 %s3550, %s3551
    %s3553 = sand.u32 51, %s3552
    %s3554 = sshrl.u32 %s3553, 2
    %s3555 = sor.u32 %s3553, %s3554
    %s3556 = sand.u32 15, %s3555
    %v3557 = vld [vmem:[%s3547] sm:%s3556]
    %v3558 = vunpack.c.l.bf16 %v3557
    %v3559 = vunpack.c.h.bf16 %v3557
    %v3560 = vlaneseq
    %v3561 = vand.u32 %v3560, 127
    %vm3563 = vcmp.lt.s32.totalorder %v3561, 48
    %v3564 = vsel %vm3563, %v3558, %v16
    %s3565 = scalar_lea.vmem [#allocation20], 276
    %v3566 = vpack.c.bf16 0.0, %v3564
    %s3568 = ssub.s32 16, 1
    %3569 = vst [vmem:[%s3565] sm:%s3568] %v3566
    %s3570 = scalar_lea.vmem %s0, 280
    %s3572 = sor.u32 255, 127
    %s3573 = sand.u32 %s3572, 85
    %s3574 = sshrl.u32 %s3573, 1
    %s3575 = sor.u32 %s3573, %s3574
    %s3576 = sand.u32 51, %s3575
    %s3577 = sshrl.u32 %s3576, 2
    %s3578 = sor.u32 %s3576, %s3577
    %s3579 = sand.u32 15, %s3578
    %v3580 = vld [vmem:[%s3570] sm:%s3579]
    %v3581 = vunpack.c.l.bf16 %v3580
    %v3582 = vunpack.c.h.bf16 %v3580
    %v3583 = vlaneseq
    %v3584 = vand.u32 %v3583, 127
    %vm3586 = vcmp.lt.s32.totalorder %v3584, 48
    %v3587 = vsel %vm3586, %v3581, %v16
    %s3588 = scalar_lea.vmem [#allocation20], 280
    %v3589 = vpack.c.bf16 0.0, %v3587
    %s3591 = ssub.s32 16, 1
    %3592 = vst [vmem:[%s3588] sm:%s3591] %v3589
    %s3593 = scalar_lea.vmem %s0, 284
    %s3595 = sor.u32 255, 127
    %s3596 = sand.u32 %s3595, 85
    %s3597 = sshrl.u32 %s3596, 1
    %s3598 = sor.u32 %s3596, %s3597
    %s3599 = sand.u32 51, %s3598
    %s3600 = sshrl.u32 %s3599, 2
    %s3601 = sor.u32 %s3599, %s3600
    %s3602 = sand.u32 15, %s3601
    %v3603 = vld [vmem:[%s3593] sm:%s3602]
    %v3604 = vunpack.c.l.bf16 %v3603
    %v3605 = vunpack.c.h.bf16 %v3603
    %v3606 = vlaneseq
    %v3607 = vand.u32 %v3606, 127
    %vm3609 = vcmp.lt.s32.totalorder %v3607, 48
    %v3610 = vsel %vm3609, %v3604, %v16
    %s3611 = scalar_lea.vmem [#allocation20], 284
    %v3612 = vpack.c.bf16 0.0, %v3610
    %s3614 = ssub.s32 16, 1
    %3615 = vst [vmem:[%s3611] sm:%s3614] %v3612
    %s3616 = scalar_lea.vmem %s0, 288
    %s3618 = sor.u32 255, 127
    %s3619 = sand.u32 %s3618, 85
    %s3620 = sshrl.u32 %s3619, 1
    %s3621 = sor.u32 %s3619, %s3620
    %s3622 = sand.u32 51, %s3621
    %s3623 = sshrl.u32 %s3622, 2
    %s3624 = sor.u32 %s3622, %s3623
    %s3625 = sand.u32 15, %s3624
    %v3626 = vld [vmem:[%s3616] sm:%s3625]
    %v3627 = vunpack.c.l.bf16 %v3626
    %v3628 = vunpack.c.h.bf16 %v3626
    %v3629 = vlaneseq
    %v3630 = vand.u32 %v3629, 127
    %vm3632 = vcmp.lt.s32.totalorder %v3630, 48
    %v3633 = vsel %vm3632, %v3627, %v16
    %s3634 = scalar_lea.vmem [#allocation20], 288
    %v3635 = vpack.c.bf16 0.0, %v3633
    %s3637 = ssub.s32 16, 1
    %3638 = vst [vmem:[%s3634] sm:%s3637] %v3635
    %s3639 = scalar_lea.vmem %s0, 292
    %s3641 = sor.u32 255, 127
    %s3642 = sand.u32 %s3641, 85
    %s3643 = sshrl.u32 %s3642, 1
    %s3644 = sor.u32 %s3642, %s3643
    %s3645 = sand.u32 51, %s3644
    %s3646 = sshrl.u32 %s3645, 2
    %s3647 = sor.u32 %s3645, %s3646
    %s3648 = sand.u32 15, %s3647
    %v3649 = vld [vmem:[%s3639] sm:%s3648]
    %v3650 = vunpack.c.l.bf16 %v3649
    %v3651 = vunpack.c.h.bf16 %v3649
    %v3652 = vlaneseq
    %v3653 = vand.u32 %v3652, 127
    %vm3655 = vcmp.lt.s32.totalorder %v3653, 48
    %v3656 = vsel %vm3655, %v3650, %v16
    %s3657 = scalar_lea.vmem [#allocation20], 292
    %v3658 = vpack.c.bf16 0.0, %v3656
    %s3660 = ssub.s32 16, 1
    %3661 = vst [vmem:[%s3657] sm:%s3660] %v3658
    %s3662 = scalar_lea.vmem %s0, 296
    %s3664 = sor.u32 255, 127
    %s3665 = sand.u32 %s3664, 85
    %s3666 = sshrl.u32 %s3665, 1
    %s3667 = sor.u32 %s3665, %s3666
    %s3668 = sand.u32 51, %s3667
    %s3669 = sshrl.u32 %s3668, 2
    %s3670 = sor.u32 %s3668, %s3669
    %s3671 = sand.u32 15, %s3670
    %v3672 = vld [vmem:[%s3662] sm:%s3671]
    %v3673 = vunpack.c.l.bf16 %v3672
    %v3674 = vunpack.c.h.bf16 %v3672
    %v3675 = vlaneseq
    %v3676 = vand.u32 %v3675, 127
    %vm3678 = vcmp.lt.s32.totalorder %v3676, 48
    %v3679 = vsel %vm3678, %v3673, %v16
    %s3680 = scalar_lea.vmem [#allocation20], 296
    %v3681 = vpack.c.bf16 0.0, %v3679
    %s3683 = ssub.s32 16, 1
    %3684 = vst [vmem:[%s3680] sm:%s3683] %v3681
    %s3685 = scalar_lea.vmem %s0, 300
    %s3687 = sor.u32 255, 127
    %s3688 = sand.u32 %s3687, 85
    %s3689 = sshrl.u32 %s3688, 1
    %s3690 = sor.u32 %s3688, %s3689
    %s3691 = sand.u32 51, %s3690
    %s3692 = sshrl.u32 %s3691, 2
    %s3693 = sor.u32 %s3691, %s3692
    %s3694 = sand.u32 15, %s3693
    %v3695 = vld [vmem:[%s3685] sm:%s3694]
    %v3696 = vunpack.c.l.bf16 %v3695
    %v3697 = vunpack.c.h.bf16 %v3695
    %v3698 = vlaneseq
    %v3699 = vand.u32 %v3698, 127
    %vm3701 = vcmp.lt.s32.totalorder %v3699, 48
    %v3702 = vsel %vm3701, %v3696, %v16
    %s3703 = scalar_lea.vmem [#allocation20], 300
    %v3704 = vpack.c.bf16 0.0, %v3702
    %s3706 = ssub.s32 16, 1
    %3707 = vst [vmem:[%s3703] sm:%s3706] %v3704
    %s3708 = scalar_lea.vmem %s0, 304
    %s3710 = sor.u32 255, 127
    %s3711 = sand.u32 %s3710, 85
    %s3712 = sshrl.u32 %s3711, 1
    %s3713 = sor.u32 %s3711, %s3712
    %s3714 = sand.u32 51, %s3713
    %s3715 = sshrl.u32 %s3714, 2
    %s3716 = sor.u32 %s3714, %s3715
    %s3717 = sand.u32 15, %s3716
    %v3718 = vld [vmem:[%s3708] sm:%s3717]
    %v3719 = vunpack.c.l.bf16 %v3718
    %v3720 = vunpack.c.h.bf16 %v3718
    %v3721 = vlaneseq
    %v3722 = vand.u32 %v3721, 127
    %vm3724 = vcmp.lt.s32.totalorder %v3722, 48
    %v3725 = vsel %vm3724, %v3719, %v16
    %s3726 = scalar_lea.vmem [#allocation20], 304
    %v3727 = vpack.c.bf16 0.0, %v3725
    %s3729 = ssub.s32 16, 1
    %3730 = vst [vmem:[%s3726] sm:%s3729] %v3727
    %s3731 = scalar_lea.vmem %s0, 308
    %s3733 = sor.u32 255, 127
    %s3734 = sand.u32 %s3733, 85
    %s3735 = sshrl.u32 %s3734, 1
    %s3736 = sor.u32 %s3734, %s3735
    %s3737 = sand.u32 51, %s3736
    %s3738 = sshrl.u32 %s3737, 2
    %s3739 = sor.u32 %s3737, %s3738
    %s3740 = sand.u32 15, %s3739
    %v3741 = vld [vmem:[%s3731] sm:%s3740]
    %v3742 = vunpack.c.l.bf16 %v3741
    %v3743 = vunpack.c.h.bf16 %v3741
    %v3744 = vlaneseq
    %v3745 = vand.u32 %v3744, 127
    %vm3747 = vcmp.lt.s32.totalorder %v3745, 48
    %v3748 = vsel %vm3747, %v3742, %v16
    %s3749 = scalar_lea.vmem [#allocation20], 308
    %v3750 = vpack.c.bf16 0.0, %v3748
    %s3752 = ssub.s32 16, 1
    %3753 = vst [vmem:[%s3749] sm:%s3752] %v3750
    %s3754 = scalar_lea.vmem %s0, 312
    %s3756 = sor.u32 255, 127
    %s3757 = sand.u32 %s3756, 85
    %s3758 = sshrl.u32 %s3757, 1
    %s3759 = sor.u32 %s3757, %s3758
    %s3760 = sand.u32 51, %s3759
    %s3761 = sshrl.u32 %s3760, 2
    %s3762 = sor.u32 %s3760, %s3761
    %s3763 = sand.u32 15, %s3762
    %v3764 = vld [vmem:[%s3754] sm:%s3763]
    %v3765 = vunpack.c.l.bf16 %v3764
    %v3766 = vunpack.c.h.bf16 %v3764
    %v3767 = vlaneseq
    %v3768 = vand.u32 %v3767, 127
    %vm3770 = vcmp.lt.s32.totalorder %v3768, 48
    %v3771 = vsel %vm3770, %v3765, %v16
    %s3772 = scalar_lea.vmem [#allocation20], 312
    %v3773 = vpack.c.bf16 0.0, %v3771
    %s3775 = ssub.s32 16, 1
    %3776 = vst [vmem:[%s3772] sm:%s3775] %v3773
    %s3777 = scalar_lea.vmem %s0, 316
    %s3779 = sor.u32 255, 127
    %s3780 = sand.u32 %s3779, 85
    %s3781 = sshrl.u32 %s3780, 1
    %s3782 = sor.u32 %s3780, %s3781
    %s3783 = sand.u32 51, %s3782
    %s3784 = sshrl.u32 %s3783, 2
    %s3785 = sor.u32 %s3783, %s3784
    %s3786 = sand.u32 15, %s3785
    %v3787 = vld [vmem:[%s3777] sm:%s3786]
    %v3788 = vunpack.c.l.bf16 %v3787
    %v3789 = vunpack.c.h.bf16 %v3787
    %v3790 = vlaneseq
    %v3791 = vand.u32 %v3790, 127
    %vm3793 = vcmp.lt.s32.totalorder %v3791, 48
    %v3794 = vsel %vm3793, %v3788, %v16
    %s3795 = scalar_lea.vmem [#allocation20], 316
    %v3796 = vpack.c.bf16 0.0, %v3794
    %s3798 = ssub.s32 16, 1
    %3799 = vst [vmem:[%s3795] sm:%s3798] %v3796
    %s3800 = scalar_lea.vmem %s0, 320
    %s3802 = sor.u32 255, 127
    %s3803 = sand.u32 %s3802, 85
    %s3804 = sshrl.u32 %s3803, 1
    %s3805 = sor.u32 %s3803, %s3804
    %s3806 = sand.u32 51, %s3805
    %s3807 = sshrl.u32 %s3806, 2
    %s3808 = sor.u32 %s3806, %s3807
    %s3809 = sand.u32 15, %s3808
    %v3810 = vld [vmem:[%s3800] sm:%s3809]
    %v3811 = vunpack.c.l.bf16 %v3810
    %v3812 = vunpack.c.h.bf16 %v3810
    %v3813 = vlaneseq
    %v3814 = vand.u32 %v3813, 127
    %vm3816 = vcmp.lt.s32.totalorder %v3814, 48
    %v3817 = vsel %vm3816, %v3811, %v16
    %s3818 = scalar_lea.vmem [#allocation20], 320
    %v3819 = vpack.c.bf16 0.0, %v3817
    %s3821 = ssub.s32 16, 1
    %3822 = vst [vmem:[%s3818] sm:%s3821] %v3819
    %s3823 = scalar_lea.vmem %s0, 324
    %s3825 = sor.u32 255, 127
    %s3826 = sand.u32 %s3825, 85
    %s3827 = sshrl.u32 %s3826, 1
    %s3828 = sor.u32 %s3826, %s3827
    %s3829 = sand.u32 51, %s3828
    %s3830 = sshrl.u32 %s3829, 2
    %s3831 = sor.u32 %s3829, %s3830
    %s3832 = sand.u32 15, %s3831
    %v3833 = vld [vmem:[%s3823] sm:%s3832]
    %v3834 = vunpack.c.l.bf16 %v3833
    %v3835 = vunpack.c.h.bf16 %v3833
    %v3836 = vlaneseq
    %v3837 = vand.u32 %v3836, 127
    %vm3839 = vcmp.lt.s32.totalorder %v3837, 48
    %v3840 = vsel %vm3839, %v3834, %v16
    %s3841 = scalar_lea.vmem [#allocation20], 324
    %v3842 = vpack.c.bf16 0.0, %v3840
    %s3844 = ssub.s32 16, 1
    %3845 = vst [vmem:[%s3841] sm:%s3844] %v3842
    %s3846 = scalar_lea.vmem %s0, 328
    %s3848 = sor.u32 255, 127
    %s3849 = sand.u32 %s3848, 85
    %s3850 = sshrl.u32 %s3849, 1
    %s3851 = sor.u32 %s3849, %s3850
    %s3852 = sand.u32 51, %s3851
    %s3853 = sshrl.u32 %s3852, 2
    %s3854 = sor.u32 %s3852, %s3853
    %s3855 = sand.u32 15, %s3854
    %v3856 = vld [vmem:[%s3846] sm:%s3855]
    %v3857 = vunpack.c.l.bf16 %v3856
    %v3858 = vunpack.c.h.bf16 %v3856
    %v3859 = vlaneseq
    %v3860 = vand.u32 %v3859, 127
    %vm3862 = vcmp.lt.s32.totalorder %v3860, 48
    %v3863 = vsel %vm3862, %v3857, %v16
    %s3864 = scalar_lea.vmem [#allocation20], 328
    %v3865 = vpack.c.bf16 0.0, %v3863
    %s3867 = ssub.s32 16, 1
    %3868 = vst [vmem:[%s3864] sm:%s3867] %v3865
    %s3869 = scalar_lea.vmem %s0, 332
    %s3871 = sor.u32 255, 127
    %s3872 = sand.u32 %s3871, 85
    %s3873 = sshrl.u32 %s3872, 1
    %s3874 = sor.u32 %s3872, %s3873
    %s3875 = sand.u32 51, %s3874
    %s3876 = sshrl.u32 %s3875, 2
    %s3877 = sor.u32 %s3875, %s3876
    %s3878 = sand.u32 15, %s3877
    %v3879 = vld [vmem:[%s3869] sm:%s3878]
    %v3880 = vunpack.c.l.bf16 %v3879
    %v3881 = vunpack.c.h.bf16 %v3879
    %v3882 = vlaneseq
    %v3883 = vand.u32 %v3882, 127
    %vm3885 = vcmp.lt.s32.totalorder %v3883, 48
    %v3886 = vsel %vm3885, %v3880, %v16
    %s3887 = scalar_lea.vmem [#allocation20], 332
    %v3888 = vpack.c.bf16 0.0, %v3886
    %s3890 = ssub.s32 16, 1
    %3891 = vst [vmem:[%s3887] sm:%s3890] %v3888
    %s3892 = scalar_lea.vmem %s0, 336
    %s3894 = sor.u32 255, 127
    %s3895 = sand.u32 %s3894, 85
    %s3896 = sshrl.u32 %s3895, 1
    %s3897 = sor.u32 %s3895, %s3896
    %s3898 = sand.u32 51, %s3897
    %s3899 = sshrl.u32 %s3898, 2
    %s3900 = sor.u32 %s3898, %s3899
    %s3901 = sand.u32 15, %s3900
    %v3902 = vld [vmem:[%s3892] sm:%s3901]
    %v3903 = vunpack.c.l.bf16 %v3902
    %v3904 = vunpack.c.h.bf16 %v3902
    %v3905 = vlaneseq
    %v3906 = vand.u32 %v3905, 127
    %vm3908 = vcmp.lt.s32.totalorder %v3906, 48
    %v3909 = vsel %vm3908, %v3903, %v16
    %s3910 = scalar_lea.vmem [#allocation20], 336
    %v3911 = vpack.c.bf16 0.0, %v3909
    %s3913 = ssub.s32 16, 1
    %3914 = vst [vmem:[%s3910] sm:%s3913] %v3911
    %s3915 = scalar_lea.vmem %s0, 340
    %s3917 = sor.u32 255, 127
    %s3918 = sand.u32 %s3917, 85
    %s3919 = sshrl.u32 %s3918, 1
    %s3920 = sor.u32 %s3918, %s3919
    %s3921 = sand.u32 51, %s3920
    %s3922 = sshrl.u32 %s3921, 2
    %s3923 = sor.u32 %s3921, %s3922
    %s3924 = sand.u32 15, %s3923
    %v3925 = vld [vmem:[%s3915] sm:%s3924]
    %v3926 = vunpack.c.l.bf16 %v3925
    %v3927 = vunpack.c.h.bf16 %v3925
    %v3928 = vlaneseq
    %v3929 = vand.u32 %v3928, 127
    %vm3931 = vcmp.lt.s32.totalorder %v3929, 48
    %v3932 = vsel %vm3931, %v3926, %v16
    %s3933 = scalar_lea.vmem [#allocation20], 340
    %v3934 = vpack.c.bf16 0.0, %v3932
    %s3936 = ssub.s32 16, 1
    %3937 = vst [vmem:[%s3933] sm:%s3936] %v3934
    %s3938 = scalar_lea.vmem %s0, 344
    %s3940 = sor.u32 255, 127
    %s3941 = sand.u32 %s3940, 85
    %s3942 = sshrl.u32 %s3941, 1
    %s3943 = sor.u32 %s3941, %s3942
    %s3944 = sand.u32 51, %s3943
    %s3945 = sshrl.u32 %s3944, 2
    %s3946 = sor.u32 %s3944, %s3945
    %s3947 = sand.u32 15, %s3946
    %v3948 = vld [vmem:[%s3938] sm:%s3947]
    %v3949 = vunpack.c.l.bf16 %v3948
    %v3950 = vunpack.c.h.bf16 %v3948
    %v3951 = vlaneseq
    %v3952 = vand.u32 %v3951, 127
    %vm3954 = vcmp.lt.s32.totalorder %v3952, 48
    %v3955 = vsel %vm3954, %v3949, %v16
    %s3956 = scalar_lea.vmem [#allocation20], 344
    %v3957 = vpack.c.bf16 0.0, %v3955
    %s3959 = ssub.s32 16, 1
    %3960 = vst [vmem:[%s3956] sm:%s3959] %v3957
    %s3961 = scalar_lea.vmem %s0, 348
    %s3963 = sor.u32 255, 127
    %s3964 = sand.u32 %s3963, 85
    %s3965 = sshrl.u32 %s3964, 1
    %s3966 = sor.u32 %s3964, %s3965
    %s3967 = sand.u32 51, %s3966
    %s3968 = sshrl.u32 %s3967, 2
    %s3969 = sor.u32 %s3967, %s3968
    %s3970 = sand.u32 15, %s3969
    %v3971 = vld [vmem:[%s3961] sm:%s3970]
    %v3972 = vunpack.c.l.bf16 %v3971
    %v3973 = vunpack.c.h.bf16 %v3971
    %v3974 = vlaneseq
    %v3975 = vand.u32 %v3974, 127
    %vm3977 = vcmp.lt.s32.totalorder %v3975, 48
    %v3978 = vsel %vm3977, %v3972, %v16
    %s3979 = scalar_lea.vmem [#allocation20], 348
    %v3980 = vpack.c.bf16 0.0, %v3978
    %s3982 = ssub.s32 16, 1
    %3983 = vst [vmem:[%s3979] sm:%s3982] %v3980
    %s3984 = scalar_lea.vmem %s0, 352
    %s3986 = sor.u32 255, 127
    %s3987 = sand.u32 %s3986, 85
    %s3988 = sshrl.u32 %s3987, 1
    %s3989 = sor.u32 %s3987, %s3988
    %s3990 = sand.u32 51, %s3989
    %s3991 = sshrl.u32 %s3990, 2
    %s3992 = sor.u32 %s3990, %s3991
    %s3993 = sand.u32 15, %s3992
    %v3994 = vld [vmem:[%s3984] sm:%s3993]
    %v3995 = vunpack.c.l.bf16 %v3994
    %v3996 = vunpack.c.h.bf16 %v3994
    %v3997 = vlaneseq
    %v3998 = vand.u32 %v3997, 127
    %vm4000 = vcmp.lt.s32.totalorder %v3998, 48
    %v4001 = vsel %vm4000, %v3995, %v16
    %s4002 = scalar_lea.vmem [#allocation20], 352
    %v4003 = vpack.c.bf16 0.0, %v4001
    %s4005 = ssub.s32 16, 1
    %4006 = vst [vmem:[%s4002] sm:%s4005] %v4003
    %s4007 = scalar_lea.vmem %s0, 356
    %s4009 = sor.u32 255, 127
    %s4010 = sand.u32 %s4009, 85
    %s4011 = sshrl.u32 %s4010, 1
    %s4012 = sor.u32 %s4010, %s4011
    %s4013 = sand.u32 51, %s4012
    %s4014 = sshrl.u32 %s4013, 2
    %s4015 = sor.u32 %s4013, %s4014
    %s4016 = sand.u32 15, %s4015
    %v4017 = vld [vmem:[%s4007] sm:%s4016]
    %v4018 = vunpack.c.l.bf16 %v4017
    %v4019 = vunpack.c.h.bf16 %v4017
    %v4020 = vlaneseq
    %v4021 = vand.u32 %v4020, 127
    %vm4023 = vcmp.lt.s32.totalorder %v4021, 48
    %v4024 = vsel %vm4023, %v4018, %v16
    %s4025 = scalar_lea.vmem [#allocation20], 356
    %v4026 = vpack.c.bf16 0.0, %v4024
    %s4028 = ssub.s32 16, 1
    %4029 = vst [vmem:[%s4025] sm:%s4028] %v4026
    %s4030 = scalar_lea.vmem %s0, 360
    %s4032 = sor.u32 255, 127
    %s4033 = sand.u32 %s4032, 85
    %s4034 = sshrl.u32 %s4033, 1
    %s4035 = sor.u32 %s4033, %s4034
    %s4036 = sand.u32 51, %s4035
    %s4037 = sshrl.u32 %s4036, 2
    %s4038 = sor.u32 %s4036, %s4037
    %s4039 = sand.u32 15, %s4038
    %v4040 = vld [vmem:[%s4030] sm:%s4039]
    %v4041 = vunpack.c.l.bf16 %v4040
    %v4042 = vunpack.c.h.bf16 %v4040
    %v4043 = vlaneseq
    %v4044 = vand.u32 %v4043, 127
    %vm4046 = vcmp.lt.s32.totalorder %v4044, 48
    %v4047 = vsel %vm4046, %v4041, %v16
    %s4048 = scalar_lea.vmem [#allocation20], 360
    %v4049 = vpack.c.bf16 0.0, %v4047
    %s4051 = ssub.s32 16, 1
    %4052 = vst [vmem:[%s4048] sm:%s4051] %v4049
    %s4053 = scalar_lea.vmem %s0, 364
    %s4055 = sor.u32 255, 127
    %s4056 = sand.u32 %s4055, 85
    %s4057 = sshrl.u32 %s4056, 1
    %s4058 = sor.u32 %s4056, %s4057
    %s4059 = sand.u32 51, %s4058
    %s4060 = sshrl.u32 %s4059, 2
    %s4061 = sor.u32 %s4059, %s4060
    %s4062 = sand.u32 15, %s4061
    %v4063 = vld [vmem:[%s4053] sm:%s4062]
    %v4064 = vunpack.c.l.bf16 %v4063
    %v4065 = vunpack.c.h.bf16 %v4063
    %v4066 = vlaneseq
    %v4067 = vand.u32 %v4066, 127
    %vm4069 = vcmp.lt.s32.totalorder %v4067, 48
    %v4070 = vsel %vm4069, %v4064, %v16
    %s4071 = scalar_lea.vmem [#allocation20], 364
    %v4072 = vpack.c.bf16 0.0, %v4070
    %s4074 = ssub.s32 16, 1
    %4075 = vst [vmem:[%s4071] sm:%s4074] %v4072
    %s4076 = scalar_lea.vmem %s0, 368
    %s4078 = sor.u32 255, 127
    %s4079 = sand.u32 %s4078, 85
    %s4080 = sshrl.u32 %s4079, 1
    %s4081 = sor.u32 %s4079, %s4080
    %s4082 = sand.u32 51, %s4081
    %s4083 = sshrl.u32 %s4082, 2
    %s4084 = sor.u32 %s4082, %s4083
    %s4085 = sand.u32 15, %s4084
    %v4086 = vld [vmem:[%s4076] sm:%s4085]
    %v4087 = vunpack.c.l.bf16 %v4086
    %v4088 = vunpack.c.h.bf16 %v4086
    %v4089 = vlaneseq
    %v4090 = vand.u32 %v4089, 127
    %vm4092 = vcmp.lt.s32.totalorder %v4090, 48
    %v4093 = vsel %vm4092, %v4087, %v16
    %s4094 = scalar_lea.vmem [#allocation20], 368
    %v4095 = vpack.c.bf16 0.0, %v4093
    %s4097 = ssub.s32 16, 1
    %4098 = vst [vmem:[%s4094] sm:%s4097] %v4095
    %s4099 = scalar_lea.vmem %s0, 372
    %s4101 = sor.u32 255, 127
    %s4102 = sand.u32 %s4101, 85
    %s4103 = sshrl.u32 %s4102, 1
    %s4104 = sor.u32 %s4102, %s4103
    %s4105 = sand.u32 51, %s4104
    %s4106 = sshrl.u32 %s4105, 2
    %s4107 = sor.u32 %s4105, %s4106
    %s4108 = sand.u32 15, %s4107
    %v4109 = vld [vmem:[%s4099] sm:%s4108]
    %v4110 = vunpack.c.l.bf16 %v4109
    %v4111 = vunpack.c.h.bf16 %v4109
    %v4112 = vlaneseq
    %v4113 = vand.u32 %v4112, 127
    %vm4115 = vcmp.lt.s32.totalorder %v4113, 48
    %v4116 = vsel %vm4115, %v4110, %v16
    %s4117 = scalar_lea.vmem [#allocation20], 372
    %v4118 = vpack.c.bf16 0.0, %v4116
    %s4120 = ssub.s32 16, 1
    %4121 = vst [vmem:[%s4117] sm:%s4120] %v4118
    %s4122 = scalar_lea.vmem %s0, 376
    %s4124 = sor.u32 255, 127
    %s4125 = sand.u32 %s4124, 85
    %s4126 = sshrl.u32 %s4125, 1
    %s4127 = sor.u32 %s4125, %s4126
    %s4128 = sand.u32 51, %s4127
    %s4129 = sshrl.u32 %s4128, 2
    %s4130 = sor.u32 %s4128, %s4129
    %s4131 = sand.u32 15, %s4130
    %v4132 = vld [vmem:[%s4122] sm:%s4131]
    %v4133 = vunpack.c.l.bf16 %v4132
    %v4134 = vunpack.c.h.bf16 %v4132
    %v4135 = vlaneseq
    %v4136 = vand.u32 %v4135, 127
    %vm4138 = vcmp.lt.s32.totalorder %v4136, 48
    %v4139 = vsel %vm4138, %v4133, %v16
    %s4140 = scalar_lea.vmem [#allocation20], 376
    %v4141 = vpack.c.bf16 0.0, %v4139
    %s4143 = ssub.s32 16, 1
    %4144 = vst [vmem:[%s4140] sm:%s4143] %v4141
    %s4145 = scalar_lea.vmem %s0, 380
    %s4147 = sor.u32 255, 127
    %s4148 = sand.u32 %s4147, 85
    %s4149 = sshrl.u32 %s4148, 1
    %s4150 = sor.u32 %s4148, %s4149
    %s4151 = sand.u32 51, %s4150
    %s4152 = sshrl.u32 %s4151, 2
    %s4153 = sor.u32 %s4151, %s4152
    %s4154 = sand.u32 15, %s4153
    %v4155 = vld [vmem:[%s4145] sm:%s4154]
    %v4156 = vunpack.c.l.bf16 %v4155
    %v4157 = vunpack.c.h.bf16 %v4155
    %v4158 = vlaneseq
    %v4159 = vand.u32 %v4158, 127
    %vm4161 = vcmp.lt.s32.totalorder %v4159, 48
    %v4162 = vsel %vm4161, %v4156, %v16
    %s4163 = scalar_lea.vmem [#allocation20], 380
    %v4164 = vpack.c.bf16 0.0, %v4162
    %s4166 = ssub.s32 16, 1
    %4167 = vst [vmem:[%s4163] sm:%s4166] %v4164
    %s4168 = scalar_lea.vmem %s0, 384
    %s4170 = sor.u32 255, 127
    %s4171 = sand.u32 %s4170, 85
    %s4172 = sshrl.u32 %s4171, 1
    %s4173 = sor.u32 %s4171, %s4172
    %s4174 = sand.u32 51, %s4173
    %s4175 = sshrl.u32 %s4174, 2
    %s4176 = sor.u32 %s4174, %s4175
    %s4177 = sand.u32 15, %s4176
    %v4178 = vld [vmem:[%s4168] sm:%s4177]
    %v4179 = vunpack.c.l.bf16 %v4178
    %v4180 = vunpack.c.h.bf16 %v4178
    %v4181 = vlaneseq
    %v4182 = vand.u32 %v4181, 127
    %vm4184 = vcmp.lt.s32.totalorder %v4182, 48
    %v4185 = vsel %vm4184, %v4179, %v16
    %s4186 = scalar_lea.vmem [#allocation20], 384
    %v4187 = vpack.c.bf16 0.0, %v4185
    %s4189 = ssub.s32 16, 1
    %4190 = vst [vmem:[%s4186] sm:%s4189] %v4187
    %s4191 = scalar_lea.vmem %s0, 388
    %s4193 = sor.u32 255, 127
    %s4194 = sand.u32 %s4193, 85
    %s4195 = sshrl.u32 %s4194, 1
    %s4196 = sor.u32 %s4194, %s4195
    %s4197 = sand.u32 51, %s4196
    %s4198 = sshrl.u32 %s4197, 2
    %s4199 = sor.u32 %s4197, %s4198
    %s4200 = sand.u32 15, %s4199
    %v4201 = vld [vmem:[%s4191] sm:%s4200]
    %v4202 = vunpack.c.l.bf16 %v4201
    %v4203 = vunpack.c.h.bf16 %v4201
    %v4204 = vlaneseq
    %v4205 = vand.u32 %v4204, 127
    %vm4207 = vcmp.lt.s32.totalorder %v4205, 48
    %v4208 = vsel %vm4207, %v4202, %v16
    %s4209 = scalar_lea.vmem [#allocation20], 388
    %v4210 = vpack.c.bf16 0.0, %v4208
    %s4212 = ssub.s32 16, 1
    %4213 = vst [vmem:[%s4209] sm:%s4212] %v4210
    %s4214 = scalar_lea.vmem %s0, 392
    %s4216 = sor.u32 255, 127
    %s4217 = sand.u32 %s4216, 85
    %s4218 = sshrl.u32 %s4217, 1
    %s4219 = sor.u32 %s4217, %s4218
    %s4220 = sand.u32 51, %s4219
    %s4221 = sshrl.u32 %s4220, 2
    %s4222 = sor.u32 %s4220, %s4221
    %s4223 = sand.u32 15, %s4222
    %v4224 = vld [vmem:[%s4214] sm:%s4223]
    %v4225 = vunpack.c.l.bf16 %v4224
    %v4226 = vunpack.c.h.bf16 %v4224
    %v4227 = vlaneseq
    %v4228 = vand.u32 %v4227, 127
    %vm4230 = vcmp.lt.s32.totalorder %v4228, 48
    %v4231 = vsel %vm4230, %v4225, %v16
    %s4232 = scalar_lea.vmem [#allocation20], 392
    %v4233 = vpack.c.bf16 0.0, %v4231
    %s4235 = ssub.s32 16, 1
    %4236 = vst [vmem:[%s4232] sm:%s4235] %v4233
    %s4237 = scalar_lea.vmem %s0, 396
    %s4239 = sor.u32 255, 127
    %s4240 = sand.u32 %s4239, 85
    %s4241 = sshrl.u32 %s4240, 1
    %s4242 = sor.u32 %s4240, %s4241
    %s4243 = sand.u32 51, %s4242
    %s4244 = sshrl.u32 %s4243, 2
    %s4245 = sor.u32 %s4243, %s4244
    %s4246 = sand.u32 15, %s4245
    %v4247 = vld [vmem:[%s4237] sm:%s4246]
    %v4248 = vunpack.c.l.bf16 %v4247
    %v4249 = vunpack.c.h.bf16 %v4247
    %v4250 = vlaneseq
    %v4251 = vand.u32 %v4250, 127
    %vm4253 = vcmp.lt.s32.totalorder %v4251, 48
    %v4254 = vsel %vm4253, %v4248, %v16
    %s4255 = scalar_lea.vmem [#allocation20], 396
    %v4256 = vpack.c.bf16 0.0, %v4254
    %s4258 = ssub.s32 16, 1
    %4259 = vst [vmem:[%s4255] sm:%s4258] %v4256
    %s4260 = scalar_lea.vmem %s0, 400
    %s4262 = sor.u32 255, 127
    %s4263 = sand.u32 %s4262, 85
    %s4264 = sshrl.u32 %s4263, 1
    %s4265 = sor.u32 %s4263, %s4264
    %s4266 = sand.u32 51, %s4265
    %s4267 = sshrl.u32 %s4266, 2
    %s4268 = sor.u32 %s4266, %s4267
    %s4269 = sand.u32 15, %s4268
    %v4270 = vld [vmem:[%s4260] sm:%s4269]
    %v4271 = vunpack.c.l.bf16 %v4270
    %v4272 = vunpack.c.h.bf16 %v4270
    %v4273 = vlaneseq
    %v4274 = vand.u32 %v4273, 127
    %vm4276 = vcmp.lt.s32.totalorder %v4274, 48
    %v4277 = vsel %vm4276, %v4271, %v16
    %s4278 = scalar_lea.vmem [#allocation20], 400
    %v4279 = vpack.c.bf16 0.0, %v4277
    %s4281 = ssub.s32 16, 1
    %4282 = vst [vmem:[%s4278] sm:%s4281] %v4279
    %s4283 = scalar_lea.vmem %s0, 404
    %s4285 = sor.u32 255, 127
    %s4286 = sand.u32 %s4285, 85
    %s4287 = sshrl.u32 %s4286, 1
    %s4288 = sor.u32 %s4286, %s4287
    %s4289 = sand.u32 51, %s4288
    %s4290 = sshrl.u32 %s4289, 2
    %s4291 = sor.u32 %s4289, %s4290
    %s4292 = sand.u32 15, %s4291
    %v4293 = vld [vmem:[%s4283] sm:%s4292]
    %v4294 = vunpack.c.l.bf16 %v4293
    %v4295 = vunpack.c.h.bf16 %v4293
    %v4296 = vlaneseq
    %v4297 = vand.u32 %v4296, 127
    %vm4299 = vcmp.lt.s32.totalorder %v4297, 48
    %v4300 = vsel %vm4299, %v4294, %v16
    %s4301 = scalar_lea.vmem [#allocation20], 404
    %v4302 = vpack.c.bf16 0.0, %v4300
    %s4304 = ssub.s32 16, 1
    %4305 = vst [vmem:[%s4301] sm:%s4304] %v4302
    %s4306 = scalar_lea.vmem %s0, 408
    %s4308 = sor.u32 255, 127
    %s4309 = sand.u32 %s4308, 85
    %s4310 = sshrl.u32 %s4309, 1
    %s4311 = sor.u32 %s4309, %s4310
    %s4312 = sand.u32 51, %s4311
    %s4313 = sshrl.u32 %s4312, 2
    %s4314 = sor.u32 %s4312, %s4313
    %s4315 = sand.u32 15, %s4314
    %v4316 = vld [vmem:[%s4306] sm:%s4315]
    %v4317 = vunpack.c.l.bf16 %v4316
    %v4318 = vunpack.c.h.bf16 %v4316
    %v4319 = vlaneseq
    %v4320 = vand.u32 %v4319, 127
    %vm4322 = vcmp.lt.s32.totalorder %v4320, 48
    %v4323 = vsel %vm4322, %v4317, %v16
    %s4324 = scalar_lea.vmem [#allocation20], 408
    %v4325 = vpack.c.bf16 0.0, %v4323
    %s4327 = ssub.s32 16, 1
    %4328 = vst [vmem:[%s4324] sm:%s4327] %v4325
    %s4329 = scalar_lea.vmem %s0, 412
    %s4331 = sor.u32 255, 127
    %s4332 = sand.u32 %s4331, 85
    %s4333 = sshrl.u32 %s4332, 1
    %s4334 = sor.u32 %s4332, %s4333
    %s4335 = sand.u32 51, %s4334
    %s4336 = sshrl.u32 %s4335, 2
    %s4337 = sor.u32 %s4335, %s4336
    %s4338 = sand.u32 15, %s4337
    %v4339 = vld [vmem:[%s4329] sm:%s4338]
    %v4340 = vunpack.c.l.bf16 %v4339
    %v4341 = vunpack.c.h.bf16 %v4339
    %v4342 = vlaneseq
    %v4343 = vand.u32 %v4342, 127
    %vm4345 = vcmp.lt.s32.totalorder %v4343, 48
    %v4346 = vsel %vm4345, %v4340, %v16
    %s4347 = scalar_lea.vmem [#allocation20], 412
    %v4348 = vpack.c.bf16 0.0, %v4346
    %s4350 = ssub.s32 16, 1
    %4351 = vst [vmem:[%s4347] sm:%s4350] %v4348
    %s4352 = scalar_lea.vmem %s0, 416
    %s4354 = sor.u32 255, 127
    %s4355 = sand.u32 %s4354, 85
    %s4356 = sshrl.u32 %s4355, 1
    %s4357 = sor.u32 %s4355, %s4356
    %s4358 = sand.u32 51, %s4357
    %s4359 = sshrl.u32 %s4358, 2
    %s4360 = sor.u32 %s4358, %s4359
    %s4361 = sand.u32 15, %s4360
    %v4362 = vld [vmem:[%s4352] sm:%s4361]
    %v4363 = vunpack.c.l.bf16 %v4362
    %v4364 = vunpack.c.h.bf16 %v4362
    %v4365 = vlaneseq
    %v4366 = vand.u32 %v4365, 127
    %vm4368 = vcmp.lt.s32.totalorder %v4366, 48
    %v4369 = vsel %vm4368, %v4363, %v16
    %s4370 = scalar_lea.vmem [#allocation20], 416
    %v4371 = vpack.c.bf16 0.0, %v4369
    %s4373 = ssub.s32 16, 1
    %4374 = vst [vmem:[%s4370] sm:%s4373] %v4371
    %s4375 = scalar_lea.vmem %s0, 420
    %s4377 = sor.u32 255, 127
    %s4378 = sand.u32 %s4377, 85
    %s4379 = sshrl.u32 %s4378, 1
    %s4380 = sor.u32 %s4378, %s4379
    %s4381 = sand.u32 51, %s4380
    %s4382 = sshrl.u32 %s4381, 2
    %s4383 = sor.u32 %s4381, %s4382
    %s4384 = sand.u32 15, %s4383
    %v4385 = vld [vmem:[%s4375] sm:%s4384]
    %v4386 = vunpack.c.l.bf16 %v4385
    %v4387 = vunpack.c.h.bf16 %v4385
    %v4388 = vlaneseq
    %v4389 = vand.u32 %v4388, 127
    %vm4391 = vcmp.lt.s32.totalorder %v4389, 48
    %v4392 = vsel %vm4391, %v4386, %v16
    %s4393 = scalar_lea.vmem [#allocation20], 420
    %v4394 = vpack.c.bf16 0.0, %v4392
    %s4396 = ssub.s32 16, 1
    %4397 = vst [vmem:[%s4393] sm:%s4396] %v4394
    %s4398 = scalar_lea.vmem %s0, 424
    %s4400 = sor.u32 255, 127
    %s4401 = sand.u32 %s4400, 85
    %s4402 = sshrl.u32 %s4401, 1
    %s4403 = sor.u32 %s4401, %s4402
    %s4404 = sand.u32 51, %s4403
    %s4405 = sshrl.u32 %s4404, 2
    %s4406 = sor.u32 %s4404, %s4405
    %s4407 = sand.u32 15, %s4406
    %v4408 = vld [vmem:[%s4398] sm:%s4407]
    %v4409 = vunpack.c.l.bf16 %v4408
    %v4410 = vunpack.c.h.bf16 %v4408
    %v4411 = vlaneseq
    %v4412 = vand.u32 %v4411, 127
    %vm4414 = vcmp.lt.s32.totalorder %v4412, 48
    %v4415 = vsel %vm4414, %v4409, %v16
    %s4416 = scalar_lea.vmem [#allocation20], 424
    %v4417 = vpack.c.bf16 0.0, %v4415
    %s4419 = ssub.s32 16, 1
    %4420 = vst [vmem:[%s4416] sm:%s4419] %v4417
    %s4421 = scalar_lea.vmem %s0, 428
    %s4423 = sor.u32 255, 127
    %s4424 = sand.u32 %s4423, 85
    %s4425 = sshrl.u32 %s4424, 1
    %s4426 = sor.u32 %s4424, %s4425
    %s4427 = sand.u32 51, %s4426
    %s4428 = sshrl.u32 %s4427, 2
    %s4429 = sor.u32 %s4427, %s4428
    %s4430 = sand.u32 15, %s4429
    %v4431 = vld [vmem:[%s4421] sm:%s4430]
    %v4432 = vunpack.c.l.bf16 %v4431
    %v4433 = vunpack.c.h.bf16 %v4431
    %v4434 = vlaneseq
    %v4435 = vand.u32 %v4434, 127
    %vm4437 = vcmp.lt.s32.totalorder %v4435, 48
    %v4438 = vsel %vm4437, %v4432, %v16
    %s4439 = scalar_lea.vmem [#allocation20], 428
    %v4440 = vpack.c.bf16 0.0, %v4438
    %s4442 = ssub.s32 16, 1
    %4443 = vst [vmem:[%s4439] sm:%s4442] %v4440
    %s4444 = scalar_lea.vmem [#allocation20], 432
    %v4445 = vpack.c.bf16 0.0, %v16
    %s4447 = ssub.s32 16, 1
    %4448 = vst [vmem:[%s4444] sm:%s4447] %v4445
    %s4449 = scalar_lea.vmem [#allocation20], 436
    %v4450 = vpack.c.bf16 0.0, %v16
    %s4452 = ssub.s32 16, 1
    %4453 = vst [vmem:[%s4449] sm:%s4452] %v4450
    %s4454 = scalar_lea.vmem [#allocation20], 440
    %v4455 = vpack.c.bf16 0.0, %v16
    %s4457 = ssub.s32 16, 1
    %4458 = vst [vmem:[%s4454] sm:%s4457] %v4455
    %s4459 = scalar_lea.vmem [#allocation20], 444
    %v4460 = vpack.c.bf16 0.0, %v16
    %s4462 = ssub.s32 16, 1
    %4463 = vst [vmem:[%s4459] sm:%s4462] %v4460
    %s4464 = scalar_lea.vmem [#allocation20], 448
    %v4465 = vpack.c.bf16 0.0, %v16
    %s4467 = ssub.s32 16, 1
    %4468 = vst [vmem:[%s4464] sm:%s4467] %v4465
    %s4469 = scalar_lea.vmem [#allocation20], 452
    %v4470 = vpack.c.bf16 0.0, %v16
    %s4472 = ssub.s32 16, 1
    %4473 = vst [vmem:[%s4469] sm:%s4472] %v4470
    %s4474 = scalar_lea.vmem [#allocation20], 456
    %v4475 = vpack.c.bf16 0.0, %v16
    %s4477 = ssub.s32 16, 1
    %4478 = vst [vmem:[%s4474] sm:%s4477] %v4475
    %s4479 = scalar_lea.vmem [#allocation20], 460
    %v4480 = vpack.c.bf16 0.0, %v16
    %s4482 = ssub.s32 16, 1
    %4483 = vst [vmem:[%s4479] sm:%s4482] %v4480
    %s4484 = scalar_lea.vmem [#allocation20], 464
    %v4485 = vpack.c.bf16 0.0, %v16
    %s4487 = ssub.s32 16, 1
    %4488 = vst [vmem:[%s4484] sm:%s4487] %v4485
    %s4489 = scalar_lea.vmem [#allocation20], 468
    %v4490 = vpack.c.bf16 0.0, %v16
    %s4492 = ssub.s32 16, 1
    %4493 = vst [vmem:[%s4489] sm:%s4492] %v4490
    %s4494 = scalar_lea.vmem [#allocation20], 472
    %v4495 = vpack.c.bf16 0.0, %v16
    %s4497 = ssub.s32 16, 1
    %4498 = vst [vmem:[%s4494] sm:%s4497] %v4495
    %s4499 = scalar_lea.vmem [#allocation20], 476
    %v4500 = vpack.c.bf16 0.0, %v16
    %s4502 = ssub.s32 16, 1
    %4503 = vst [vmem:[%s4499] sm:%s4502] %v4500
    %s4504 = scalar_lea.vmem [#allocation20], 480
    %v4505 = vpack.c.bf16 0.0, %v16
    %s4507 = ssub.s32 16, 1
    %4508 = vst [vmem:[%s4504] sm:%s4507] %v4505
    %s4509 = scalar_lea.vmem [#allocation20], 484
    %v4510 = vpack.c.bf16 0.0, %v16
    %s4512 = ssub.s32 16, 1
    %4513 = vst [vmem:[%s4509] sm:%s4512] %v4510
    %s4514 = scalar_lea.vmem [#allocation20], 488
    %v4515 = vpack.c.bf16 0.0, %v16
    %s4517 = ssub.s32 16, 1
    %4518 = vst [vmem:[%s4514] sm:%s4517] %v4515
    %s4519 = scalar_lea.vmem [#allocation20], 492
    %v4520 = vpack.c.bf16 0.0, %v16
    %s4522 = ssub.s32 16, 1
    %4523 = vst [vmem:[%s4519] sm:%s4522] %v4520
    %s4524 = scalar_lea.vmem [#allocation20], 496
    %v4525 = vpack.c.bf16 0.0, %v16
    %s4527 = ssub.s32 16, 1
    %4528 = vst [vmem:[%s4524] sm:%s4527] %v4525
    %s4529 = scalar_lea.vmem [#allocation20], 500
    %v4530 = vpack.c.bf16 0.0, %v16
    %s4532 = ssub.s32 16, 1
    %4533 = vst [vmem:[%s4529] sm:%s4532] %v4530
    %s4534 = scalar_lea.vmem [#allocation20], 504
    %v4535 = vpack.c.bf16 0.0, %v16
    %s4537 = ssub.s32 16, 1
    %4538 = vst [vmem:[%s4534] sm:%s4537] %v4535
    %s4539 = scalar_lea.vmem [#allocation20], 508
    %v4540 = vpack.c.bf16 0.0, %v16
    %s4542 = ssub.s32 16, 1
    %4543 = vst [vmem:[%s4539] sm:%s4542] %v4540
    %v4544 = vld [vmem:[%s3] sm:$0x1]
    %v4545 = vlaneseq
    %vm4547 = vcmp.lt.s32.totalorder %v4545, 48
    %v4548 = vsel %vm4547, %v4544, %v20
    %s4550 = ssub.s32 2, 1
    %4551 = vst [vmem:[#allocation21] sm:%s4550] %v4548
    %v4552 = vld [vmem:[#allocation19] sm:$0xff]
    %v4553 = vld [vmem:[#allocation19 + $0x8] sm:$0xff]
    %v4554 = vld [vmem:[#allocation19 + $0x10] sm:$0xff]
    %v4555 = vld [vmem:[#allocation19 + $0x18] sm:$0xff]
    %v4556 = vld [vmem:[#allocation19 + $0x20] sm:$0xff]
    %v4557 = vld [vmem:[#allocation19 + $0x28] sm:$0xff]
    %v4558 = vld [vmem:[#allocation19 + $0x30] sm:$0xff]
    %v4559 = vld [vmem:[#allocation19 + $0x38] sm:$0xff]
    %v4560 = vld [vmem:[#allocation19 + $0x40] sm:$0xff]
    %v4561 = vld [vmem:[#allocation19 + $0x48] sm:$0xff]
    %v4562 = vld [vmem:[#allocation19 + $0x50] sm:$0xff]
    %v4563 = vld [vmem:[#allocation19 + $0x58] sm:$0xff]
    %v4564 = vld [vmem:[#allocation19 + $0x60] sm:$0xff]
    %v4565 = vld [vmem:[#allocation19 + $0x68] sm:$0xff]
    %v4566 = vld [vmem:[#allocation19 + $0x70] sm:$0xff]
    %v4567 = vld [vmem:[#allocation19 + $0x78] sm:$0xff]
    %v4568 = vld [vmem:[#allocation19 + $0x80] sm:$0xff]
    %v4569 = vld [vmem:[#allocation19 + $0x88] sm:$0xff]
    %v4570 = vld [vmem:[#allocation19 + $0x90] sm:$0xff]
    %v4571 = vld [vmem:[#allocation19 + $0x98] sm:$0xff]
    %v4572 = vld [vmem:[#allocation19 + $0xa0] sm:$0xff]
    %v4573 = vld [vmem:[#allocation19 + $0xa8] sm:$0xff]
    %v4574 = vld [vmem:[#allocation19 + $0xb0] sm:$0xff]
    %v4575 = vld [vmem:[#allocation19 + $0xb8] sm:$0xff]
    %v4576 = vld [vmem:[#allocation19 + $0xc0] sm:$0xff]
    %v4577 = vld [vmem:[#allocation19 + $0xc8] sm:$0xff]
    %v4578 = vld [vmem:[#allocation19 + $0xd0] sm:$0xff]
    %v4579 = vld [vmem:[#allocation19 + $0xd8] sm:$0xff]
    %v4580 = vld [vmem:[#allocation19 + $0xe0] sm:$0xff]
    %v4581 = vld [vmem:[#allocation19 + $0xe8] sm:$0xff]
    %v4582 = vld [vmem:[#allocation19 + $0xf0] sm:$0xff]
    %v4583 = vld [vmem:[#allocation19 + $0xf8] sm:$0xff]
    %v4584 = vld [vmem:[#allocation19 + $0x100] sm:$0xff]
    %v4585 = vld [vmem:[#allocation19 + $0x108] sm:$0xff]
    %v4586 = vld [vmem:[#allocation19 + $0x110] sm:$0xff]
    %v4587 = vld [vmem:[#allocation19 + $0x118] sm:$0xff]
    %v4588 = vld [vmem:[#allocation19 + $0x120] sm:$0xff]
    %v4589 = vld [vmem:[#allocation19 + $0x128] sm:$0xff]
    %v4590 = vld [vmem:[#allocation19 + $0x130] sm:$0xff]
    %v4591 = vld [vmem:[#allocation19 + $0x138] sm:$0xff]
    %v4592 = vld [vmem:[#allocation19 + $0x140] sm:$0xff]
    %v4593 = vld [vmem:[#allocation19 + $0x148] sm:$0xff]
    %v4594 = vld [vmem:[#allocation19 + $0x150] sm:$0xff]
    %v4595 = vld [vmem:[#allocation19 + $0x158] sm:$0xff]
    %v4596 = vld [vmem:[#allocation19 + $0x160] sm:$0xff]
    %v4597 = vld [vmem:[#allocation19 + $0x168] sm:$0xff]
    %v4598 = vld [vmem:[#allocation19 + $0x170] sm:$0xff]
    %v4599 = vld [vmem:[#allocation19 + $0x178] sm:$0xff]
    %v4600 = vld [vmem:[#allocation19 + $0x180] sm:$0xff]
    %v4601 = vld [vmem:[#allocation19 + $0x188] sm:$0xff]
    %v4602 = vld [vmem:[#allocation19 + $0x190] sm:$0xff]
    %v4603 = vld [vmem:[#allocation19 + $0x198] sm:$0xff]
    %v4604 = vld [vmem:[#allocation19 + $0x1a0] sm:$0xff]
    %v4605 = vld [vmem:[#allocation19 + $0x1a8] sm:$0xff]
    %v4606 = vld [vmem:[#allocation19 + $0x1b0] sm:$0xff]
    %v4607 = vld [vmem:[#allocation19 + $0x1b8] sm:$0xff]
    %v4608 = vld [vmem:[#allocation19 + $0x1c0] sm:$0xff]
    %v4609 = vld [vmem:[#allocation19 + $0x1c8] sm:$0xff]
    %v4610 = vld [vmem:[#allocation19 + $0x1d0] sm:$0xff]
    %v4611 = vld [vmem:[#allocation19 + $0x1d8] sm:$0xff]
    %v4612 = vld [vmem:[#allocation19 + $0x1e0] sm:$0xff]
    %v4613 = vld [vmem:[#allocation19 + $0x1e8] sm:$0xff]
    %v4614 = vld [vmem:[#allocation19 + $0x1f0] sm:$0xff]
    %v4615 = vld [vmem:[#allocation19 + $0x1f8] sm:$0xff]
    %v4616 = vld [vmem:[#allocation20] sm:$0xf]
    %v4617 = vld [vmem:[#allocation20 + $0x4] sm:$0xf]
    %v4618 = vld [vmem:[#allocation20 + $0x8] sm:$0xf]
    %v4619 = vld [vmem:[#allocation20 + $0xc] sm:$0xf]
    %v4620 = vld [vmem:[#allocation20 + $0x10] sm:$0xf]
    %v4621 = vld [vmem:[#allocation20 + $0x14] sm:$0xf]
    %v4622 = vld [vmem:[#allocation20 + $0x18] sm:$0xf]
    %v4623 = vld [vmem:[#allocation20 + $0x1c] sm:$0xf]
    %v4624 = vld [vmem:[#allocation20 + $0x20] sm:$0xf]
    %v4625 = vld [vmem:[#allocation20 + $0x24] sm:$0xf]
    %v4626 = vld [vmem:[#allocation20 + $0x28] sm:$0xf]
    %v4627 = vld [vmem:[#allocation20 + $0x2c] sm:$0xf]
    %v4628 = vld [vmem:[#allocation20 + $0x30] sm:$0xf]
    %v4629 = vld [vmem:[#allocation20 + $0x34] sm:$0xf]
    %v4630 = vld [vmem:[#allocation20 + $0x38] sm:$0xf]
    %v4631 = vld [vmem:[#allocation20 + $0x3c] sm:$0xf]
    %v4632 = vld [vmem:[#allocation20 + $0x40] sm:$0xf]
    %v4633 = vld [vmem:[#allocation20 + $0x44] sm:$0xf]
    %v4634 = vld [vmem:[#allocation20 + $0x48] sm:$0xf]
    %v4635 = vld [vmem:[#allocation20 + $0x4c] sm:$0xf]
    %v4636 = vld [vmem:[#allocation20 + $0x50] sm:$0xf]
    %v4637 = vld [vmem:[#allocation20 + $0x54] sm:$0xf]
    %v4638 = vld [vmem:[#allocation20 + $0x58] sm:$0xf]
    %v4639 = vld [vmem:[#allocation20 + $0x5c] sm:$0xf]
    %v4640 = vld [vmem:[#allocation20 + $0x60] sm:$0xf]
    %v4641 = vld [vmem:[#allocation20 + $0x64] sm:$0xf]
    %v4642 = vld [vmem:[#allocation20 + $0x68] sm:$0xf]
    %v4643 = vld [vmem:[#allocation20 + $0x6c] sm:$0xf]
    %v4644 = vld [vmem:[#allocation20 + $0x70] sm:$0xf]
    %v4645 = vld [vmem:[#allocation20 + $0x74] sm:$0xf]
    %v4646 = vld [vmem:[#allocation20 + $0x78] sm:$0xf]
    %v4647 = vld [vmem:[#allocation20 + $0x7c] sm:$0xf]
    %v4648 = vld [vmem:[#allocation20 + $0x80] sm:$0xf]
    %v4649 = vld [vmem:[#allocation20 + $0x84] sm:$0xf]
    %v4650 = vld [vmem:[#allocation20 + $0x88] sm:$0xf]
    %v4651 = vld [vmem:[#allocation20 + $0x8c] sm:$0xf]
    %v4652 = vld [vmem:[#allocation20 + $0x90] sm:$0xf]
    %v4653 = vld [vmem:[#allocation20 + $0x94] sm:$0xf]
    %v4654 = vld [vmem:[#allocation20 + $0x98] sm:$0xf]
    %v4655 = vld [vmem:[#allocation20 + $0x9c] sm:$0xf]
    %v4656 = vld [vmem:[#allocation20 + $0xa0] sm:$0xf]
    %v4657 = vld [vmem:[#allocation20 + $0xa4] sm:$0xf]
    %v4658 = vld [vmem:[#allocation20 + $0xa8] sm:$0xf]
    %v4659 = vld [vmem:[#allocation20 + $0xac] sm:$0xf]
    %v4660 = vld [vmem:[#allocation20 + $0xb0] sm:$0xf]
    %v4661 = vld [vmem:[#allocation20 + $0xb4] sm:$0xf]
    %v4662 = vld [vmem:[#allocation20 + $0xb8] sm:$0xf]
    %v4663 = vld [vmem:[#allocation20 + $0xbc] sm:$0xf]
    %v4664 = vld [vmem:[#allocation20 + $0xc0] sm:$0xf]
    %v4665 = vld [vmem:[#allocation20 + $0xc4] sm:$0xf]
    %v4666 = vld [vmem:[#allocation20 + $0xc8] sm:$0xf]
    %v4667 = vld [vmem:[#allocation20 + $0xcc] sm:$0xf]
    %v4668 = vld [vmem:[#allocation20 + $0xd0] sm:$0xf]
    %v4669 = vld [vmem:[#allocation20 + $0xd4] sm:$0xf]
    %v4670 = vld [vmem:[#allocation20 + $0xd8] sm:$0xf]
    %v4671 = vld [vmem:[#allocation20 + $0xdc] sm:$0xf]
    %v4672 = vld [vmem:[#allocation20 + $0xe0] sm:$0xf]
    %v4673 = vld [vmem:[#allocation20 + $0xe4] sm:$0xf]
    %v4674 = vld [vmem:[#allocation20 + $0xe8] sm:$0xf]
    %v4675 = vld [vmem:[#allocation20 + $0xec] sm:$0xf]
    %v4676 = vld [vmem:[#allocation20 + $0xf0] sm:$0xf]
    %v4677 = vld [vmem:[#allocation20 + $0xf4] sm:$0xf]
    %v4678 = vld [vmem:[#allocation20 + $0xf8] sm:$0xf]
    %v4679 = vld [vmem:[#allocation20 + $0xfc] sm:$0xf]
    %v4680 = vld [vmem:[#allocation20 + $0x100] sm:$0xf]
    %v4681 = vld [vmem:[#allocation20 + $0x104] sm:$0xf]
    %v4682 = vld [vmem:[#allocation20 + $0x108] sm:$0xf]
    %v4683 = vld [vmem:[#allocation20 + $0x10c] sm:$0xf]
    %v4684 = vld [vmem:[#allocation20 + $0x110] sm:$0xf]
    %v4685 = vld [vmem:[#allocation20 + $0x114] sm:$0xf]
    %v4686 = vld [vmem:[#allocation20 + $0x118] sm:$0xf]
    %v4687 = vld [vmem:[#allocation20 + $0x11c] sm:$0xf]
    %v4688 = vld [vmem:[#allocation20 + $0x120] sm:$0xf]
    %v4689 = vld [vmem:[#allocation20 + $0x124] sm:$0xf]
    %v4690 = vld [vmem:[#allocation20 + $0x128] sm:$0xf]
    %v4691 = vld [vmem:[#allocation20 + $0x12c] sm:$0xf]
    %v4692 = vld [vmem:[#allocation20 + $0x130] sm:$0xf]
    %v4693 = vld [vmem:[#allocation20 + $0x134] sm:$0xf]
    %v4694 = vld [vmem:[#allocation20 + $0x138] sm:$0xf]
    %v4695 = vld [vmem:[#allocation20 + $0x13c] sm:$0xf]
    %v4696 = vld [vmem:[#allocation20 + $0x140] sm:$0xf]
    %v4697 = vld [vmem:[#allocation20 + $0x144] sm:$0xf]
    %v4698 = vld [vmem:[#allocation20 + $0x148] sm:$0xf]
    %v4699 = vld [vmem:[#allocation20 + $0x14c] sm:$0xf]
    %v4700 = vld [vmem:[#allocation20 + $0x150] sm:$0xf]
    %v4701 = vld [vmem:[#allocation20 + $0x154] sm:$0xf]
    %v4702 = vld [vmem:[#allocation20 + $0x158] sm:$0xf]
    %v4703 = vld [vmem:[#allocation20 + $0x15c] sm:$0xf]
    %v4704 = vld [vmem:[#allocation20 + $0x160] sm:$0xf]
    %v4705 = vld [vmem:[#allocation20 + $0x164] sm:$0xf]
    %v4706 = vld [vmem:[#allocation20 + $0x168] sm:$0xf]
    %v4707 = vld [vmem:[#allocation20 + $0x16c] sm:$0xf]
    %v4708 = vld [vmem:[#allocation20 + $0x170] sm:$0xf]
    %v4709 = vld [vmem:[#allocation20 + $0x174] sm:$0xf]
    %v4710 = vld [vmem:[#allocation20 + $0x178] sm:$0xf]
    %v4711 = vld [vmem:[#allocation20 + $0x17c] sm:$0xf]
    %v4712 = vld [vmem:[#allocation20 + $0x180] sm:$0xf]
    %v4713 = vld [vmem:[#allocation20 + $0x184] sm:$0xf]
    %v4714 = vld [vmem:[#allocation20 + $0x188] sm:$0xf]
    %v4715 = vld [vmem:[#allocation20 + $0x18c] sm:$0xf]
    %v4716 = vld [vmem:[#allocation20 + $0x190] sm:$0xf]
    %v4717 = vld [vmem:[#allocation20 + $0x194] sm:$0xf]
    %v4718 = vld [vmem:[#allocation20 + $0x198] sm:$0xf]
    %v4719 = vld [vmem:[#allocation20 + $0x19c] sm:$0xf]
    %v4720 = vld [vmem:[#allocation20 + $0x1a0] sm:$0xf]
    %v4721 = vld [vmem:[#allocation20 + $0x1a4] sm:$0xf]
    %v4722 = vld [vmem:[#allocation20 + $0x1a8] sm:$0xf]
    %v4723 = vld [vmem:[#allocation20 + $0x1ac] sm:$0xf]
    %v4724 = vld [vmem:[#allocation20 + $0x1b0] sm:$0xf]
    %v4725 = vld [vmem:[#allocation20 + $0x1b4] sm:$0xf]
    %v4726 = vld [vmem:[#allocation20 + $0x1b8] sm:$0xf]
    %v4727 = vld [vmem:[#allocation20 + $0x1bc] sm:$0xf]
    %v4728 = vld [vmem:[#allocation20 + $0x1c0] sm:$0xf]
    %v4729 = vld [vmem:[#allocation20 + $0x1c4] sm:$0xf]
    %v4730 = vld [vmem:[#allocation20 + $0x1c8] sm:$0xf]
    %v4731 = vld [vmem:[#allocation20 + $0x1cc] sm:$0xf]
    %v4732 = vld [vmem:[#allocation20 + $0x1d0] sm:$0xf]
    %v4733 = vld [vmem:[#allocation20 + $0x1d4] sm:$0xf]
    %v4734 = vld [vmem:[#allocation20 + $0x1d8] sm:$0xf]
    %v4735 = vld [vmem:[#allocation20 + $0x1dc] sm:$0xf]
    %v4736 = vld [vmem:[#allocation20 + $0x1e0] sm:$0xf]
    %v4737 = vld [vmem:[#allocation20 + $0x1e4] sm:$0xf]
    %v4738 = vld [vmem:[#allocation20 + $0x1e8] sm:$0xf]
    %v4739 = vld [vmem:[#allocation20 + $0x1ec] sm:$0xf]
    %v4740 = vld [vmem:[#allocation20 + $0x1f0] sm:$0xf]
    %v4741 = vld [vmem:[#allocation20 + $0x1f4] sm:$0xf]
    %v4742 = vld [vmem:[#allocation20 + $0x1f8] sm:$0xf]
    %v4743 = vld [vmem:[#allocation20 + $0x1fc] sm:$0xf]
    %v4744 = vld [vmem:[#allocation21] sm:$0x1]
    %v4746 = vperm.slane %v4744, 0
    %v4812 = vunpack.c.l.b16 %v4552
    %v4813 = vunpack.c.h.b16 %v4552
    %v4814 = vunpack.c.l.b16 %v4553
    %v4815 = vunpack.c.h.b16 %v4553
    %v4816 = vunpack.c.l.b16 %v4554
    %v4817 = vunpack.c.h.b16 %v4554
    %v4818 = vunpack.c.l.b16 %v4555
    %v4819 = vunpack.c.h.b16 %v4555
    %v4820 = vunpack.c.l.b16 %v4556
    %v4821 = vunpack.c.h.b16 %v4556
    %v4822 = vunpack.c.l.b16 %v4557
    %v4823 = vunpack.c.h.b16 %v4557
    %v4824 = vunpack.c.l.b16 %v4558
    %v4825 = vunpack.c.h.b16 %v4558
    %v4826 = vunpack.c.l.b16 %v4559
    %v4827 = vunpack.c.h.b16 %v4559
    %v4828 = vunpack.c.l.b16 %v4560
    %v4829 = vunpack.c.h.b16 %v4560
    %v4830 = vunpack.c.l.b16 %v4561
    %v4831 = vunpack.c.h.b16 %v4561
    %v4832 = vunpack.c.l.b16 %v4562
    %v4833 = vunpack.c.h.b16 %v4562
    %v4834 = vunpack.c.l.b16 %v4563
    %v4835 = vunpack.c.h.b16 %v4563
    %v4836 = vunpack.c.l.b16 %v4564
    %v4837 = vunpack.c.h.b16 %v4564
    %v4838 = vunpack.c.l.b16 %v4565
    %v4839 = vunpack.c.h.b16 %v4565
    %v4840 = vunpack.c.l.b16 %v4566
    %v4841 = vunpack.c.h.b16 %v4566
    %v4842 = vunpack.c.l.b16 %v4567
    %v4843 = vunpack.c.h.b16 %v4567
    %v4844 = vunpack.c.l.b16 %v4568
    %v4845 = vunpack.c.h.b16 %v4568
    %v4846 = vunpack.c.l.b16 %v4569
    %v4847 = vunpack.c.h.b16 %v4569
    %v4848 = vunpack.c.l.b16 %v4570
    %v4849 = vunpack.c.h.b16 %v4570
    %v4850 = vunpack.c.l.b16 %v4571
    %v4851 = vunpack.c.h.b16 %v4571
    %v4852 = vunpack.c.l.b16 %v4572
    %v4853 = vunpack.c.h.b16 %v4572
    %v4854 = vunpack.c.l.b16 %v4573
    %v4855 = vunpack.c.h.b16 %v4573
    %v4856 = vunpack.c.l.b16 %v4574
    %v4857 = vunpack.c.h.b16 %v4574
    %v4858 = vunpack.c.l.b16 %v4575
    %v4859 = vunpack.c.h.b16 %v4575
    %v4860 = vunpack.c.l.b16 %v4576
    %v4861 = vunpack.c.h.b16 %v4576
    %v4862 = vunpack.c.l.b16 %v4577
    %v4863 = vunpack.c.h.b16 %v4577
    %v4864 = vunpack.c.l.b16 %v4578
    %v4865 = vunpack.c.h.b16 %v4578
    %v4866 = vunpack.c.l.b16 %v4579
    %v4867 = vunpack.c.h.b16 %v4579
    %v4868 = vunpack.c.l.b16 %v4580
    %v4869 = vunpack.c.h.b16 %v4580
    %v4870 = vunpack.c.l.b16 %v4581
    %v4871 = vunpack.c.h.b16 %v4581
    %v4872 = vunpack.c.l.b16 %v4582
    %v4873 = vunpack.c.h.b16 %v4582
    %v4874 = vunpack.c.l.b16 %v4583
    %v4875 = vunpack.c.h.b16 %v4583
    %v4876 = vunpack.c.l.b16 %v4584
    %v4877 = vunpack.c.h.b16 %v4584
    %v4878 = vunpack.c.l.b16 %v4585
    %v4879 = vunpack.c.h.b16 %v4585
    %v4880 = vunpack.c.l.b16 %v4586
    %v4881 = vunpack.c.h.b16 %v4586
    %v4882 = vunpack.c.l.b16 %v4587
    %v4883 = vunpack.c.h.b16 %v4587
    %v4884 = vunpack.c.l.b16 %v4588
    %v4885 = vunpack.c.h.b16 %v4588
    %v4886 = vunpack.c.l.b16 %v4589
    %v4887 = vunpack.c.h.b16 %v4589
    %v4888 = vunpack.c.l.b16 %v4590
    %v4889 = vunpack.c.h.b16 %v4590
    %v4890 = vunpack.c.l.b16 %v4591
    %v4891 = vunpack.c.h.b16 %v4591
    %v4892 = vunpack.c.l.b16 %v4592
    %v4893 = vunpack.c.h.b16 %v4592
    %v4894 = vunpack.c.l.b16 %v4593
    %v4895 = vunpack.c.h.b16 %v4593
    %v4896 = vunpack.c.l.b16 %v4594
    %v4897 = vunpack.c.h.b16 %v4594
    %v4898 = vunpack.c.l.b16 %v4595
    %v4899 = vunpack.c.h.b16 %v4595
    %v4900 = vunpack.c.l.b16 %v4596
    %v4901 = vunpack.c.h.b16 %v4596
    %v4902 = vunpack.c.l.b16 %v4597
    %v4903 = vunpack.c.h.b16 %v4597
    %v4904 = vunpack.c.l.b16 %v4598
    %v4905 = vunpack.c.h.b16 %v4598
    %v4906 = vunpack.c.l.b16 %v4599
    %v4907 = vunpack.c.h.b16 %v4599
    %v4908 = vunpack.c.l.b16 %v4600
    %v4909 = vunpack.c.h.b16 %v4600
    %v4910 = vunpack.c.l.b16 %v4601
    %v4911 = vunpack.c.h.b16 %v4601
    %v4912 = vunpack.c.l.b16 %v4602
    %v4913 = vunpack.c.h.b16 %v4602
    %v4914 = vunpack.c.l.b16 %v4603
    %v4915 = vunpack.c.h.b16 %v4603
    %v4916 = vunpack.c.l.b16 %v4604
    %v4917 = vunpack.c.h.b16 %v4604
    %v4918 = vunpack.c.l.b16 %v4605
    %v4919 = vunpack.c.h.b16 %v4605
    %v4920 = vunpack.c.l.b16 %v4606
    %v4921 = vunpack.c.h.b16 %v4606
    %v4922 = vunpack.c.l.b16 %v4607
    %v4923 = vunpack.c.h.b16 %v4607
    %v4924 = vunpack.c.l.b16 %v4608
    %v4925 = vunpack.c.h.b16 %v4608
    %v4926 = vunpack.c.l.b16 %v4609
    %v4927 = vunpack.c.h.b16 %v4609
    %v4928 = vunpack.c.l.b16 %v4610
    %v4929 = vunpack.c.h.b16 %v4610
    %v4930 = vunpack.c.l.b16 %v4611
    %v4931 = vunpack.c.h.b16 %v4611
    %v4932 = vunpack.c.l.b16 %v4612
    %v4933 = vunpack.c.h.b16 %v4612
    %v4934 = vunpack.c.l.b16 %v4613
    %v4935 = vunpack.c.h.b16 %v4613
    %v4936 = vunpack.c.l.b16 %v4614
    %v4937 = vunpack.c.h.b16 %v4614
    %v4938 = vunpack.c.l.b16 %v4615
    %v4939 = vunpack.c.h.b16 %v4615
    %v4940 = vpack.c.b16 %v4820, %v4812
    %v4941 = vpack.c.b16 %v4821, %v4813
    %v4942 = vpack.c.b16 %v4822, %v4814
    %v4943 = vpack.c.b16 %v4823, %v4815
    %v4944 = vpack.c.b16 %v4824, %v4816
    %v4945 = vpack.c.b16 %v4825, %v4817
    %v4946 = vpack.c.b16 %v4826, %v4818
    %v4947 = vpack.c.b16 %v4827, %v4819
    %v4948 = vpack.c.b16 %v4836, %v4828
    %v4949 = vpack.c.b16 %v4837, %v4829
    %v4950 = vpack.c.b16 %v4838, %v4830
    %v4951 = vpack.c.b16 %v4839, %v4831
    %v4952 = vpack.c.b16 %v4840, %v4832
    %v4953 = vpack.c.b16 %v4841, %v4833
    %v4954 = vpack.c.b16 %v4842, %v4834
    %v4955 = vpack.c.b16 %v4843, %v4835
    %v4956 = vpack.c.b16 %v4852, %v4844
    %v4957 = vpack.c.b16 %v4853, %v4845
    %v4958 = vpack.c.b16 %v4854, %v4846
    %v4959 = vpack.c.b16 %v4855, %v4847
    %v4960 = vpack.c.b16 %v4856, %v4848
    %v4961 = vpack.c.b16 %v4857, %v4849
    %v4962 = vpack.c.b16 %v4858, %v4850
    %v4963 = vpack.c.b16 %v4859, %v4851
    %v4964 = vpack.c.b16 %v4868, %v4860
    %v4965 = vpack.c.b16 %v4869, %v4861
    %v4966 = vpack.c.b16 %v4870, %v4862
    %v4967 = vpack.c.b16 %v4871, %v4863
    %v4968 = vpack.c.b16 %v4872, %v4864
    %v4969 = vpack.c.b16 %v4873, %v4865
    %v4970 = vpack.c.b16 %v4874, %v4866
    %v4971 = vpack.c.b16 %v4875, %v4867
    %v4972 = vpack.c.b16 %v4884, %v4876
    %v4973 = vpack.c.b16 %v4885, %v4877
    %v4974 = vpack.c.b16 %v4886, %v4878
    %v4975 = vpack.c.b16 %v4887, %v4879
    %v4976 = vpack.c.b16 %v4888, %v4880
    %v4977 = vpack.c.b16 %v4889, %v4881
    %v4978 = vpack.c.b16 %v4890, %v4882
    %v4979 = vpack.c.b16 %v4891, %v4883
    %v4980 = vpack.c.b16 %v4900, %v4892
    %v4981 = vpack.c.b16 %v4901, %v4893
    %v4982 = vpack.c.b16 %v4902, %v4894
    %v4983 = vpack.c.b16 %v4903, %v4895
    %v4984 = vpack.c.b16 %v4904, %v4896
    %v4985 = vpack.c.b16 %v4905, %v4897
    %v4986 = vpack.c.b16 %v4906, %v4898
    %v4987 = vpack.c.b16 %v4907, %v4899
    %v4988 = vpack.c.b16 %v4916, %v4908
    %v4989 = vpack.c.b16 %v4917, %v4909
    %v4990 = vpack.c.b16 %v4918, %v4910
    %v4991 = vpack.c.b16 %v4919, %v4911
    %v4992 = vpack.c.b16 %v4920, %v4912
    %v4993 = vpack.c.b16 %v4921, %v4913
    %v4994 = vpack.c.b16 %v4922, %v4914
    %v4995 = vpack.c.b16 %v4923, %v4915
    %v4996 = vpack.c.b16 %v4932, %v4924
    %v4997 = vpack.c.b16 %v4933, %v4925
    %v4998 = vpack.c.b16 %v4934, %v4926
    %v4999 = vpack.c.b16 %v4935, %v4927
    %v5000 = vpack.c.b16 %v4936, %v4928
    %v5001 = vpack.c.b16 %v4937, %v4929
    %v5002 = vpack.c.b16 %v4938, %v4930
    %v5003 = vpack.c.b16 %v4939, %v4931
    %v5196 = vunpack.c.l.b16 %v4616
    %v5197 = vunpack.c.l.b16 %v4617
    %v5198 = vunpack.c.l.b16 %v4618
    %v5199 = vunpack.c.l.b16 %v4619
    %v5200 = vunpack.c.l.b16 %v4620
    %v5201 = vunpack.c.l.b16 %v4621
    %v5202 = vunpack.c.l.b16 %v4622
    %v5203 = vunpack.c.l.b16 %v4623
    %v5204 = vunpack.c.l.b16 %v4624
    %v5205 = vunpack.c.l.b16 %v4625
    %v5206 = vunpack.c.l.b16 %v4626
    %v5207 = vunpack.c.l.b16 %v4627
    %v5208 = vunpack.c.l.b16 %v4628
    %v5209 = vunpack.c.l.b16 %v4629
    %v5210 = vunpack.c.l.b16 %v4630
    %v5211 = vunpack.c.l.b16 %v4631
    %v5212 = vunpack.c.l.b16 %v4632
    %v5213 = vunpack.c.l.b16 %v4633
    %v5214 = vunpack.c.l.b16 %v4634
    %v5215 = vunpack.c.l.b16 %v4635
    %v5216 = vunpack.c.l.b16 %v4636
    %v5217 = vunpack.c.l.b16 %v4637
    %v5218 = vunpack.c.l.b16 %v4638
    %v5219 = vunpack.c.l.b16 %v4639
    %v5220 = vunpack.c.l.b16 %v4640
    %v5221 = vunpack.c.l.b16 %v4641
    %v5222 = vunpack.c.l.b16 %v4642
    %v5223 = vunpack.c.l.b16 %v4643
    %v5224 = vunpack.c.l.b16 %v4644
    %v5225 = vunpack.c.l.b16 %v4645
    %v5226 = vunpack.c.l.b16 %v4646
    %v5227 = vunpack.c.l.b16 %v4647
    %v5228 = vunpack.c.l.b16 %v4648
    %v5229 = vunpack.c.l.b16 %v4649
    %v5230 = vunpack.c.l.b16 %v4650
    %v5231 = vunpack.c.l.b16 %v4651
    %v5232 = vunpack.c.l.b16 %v4652
    %v5233 = vunpack.c.l.b16 %v4653
    %v5234 = vunpack.c.l.b16 %v4654
    %v5235 = vunpack.c.l.b16 %v4655
    %v5236 = vunpack.c.l.b16 %v4656
    %v5237 = vunpack.c.l.b16 %v4657
    %v5238 = vunpack.c.l.b16 %v4658
    %v5239 = vunpack.c.l.b16 %v4659
    %v5240 = vunpack.c.l.b16 %v4660
    %v5241 = vunpack.c.l.b16 %v4661
    %v5242 = vunpack.c.l.b16 %v4662
    %v5243 = vunpack.c.l.b16 %v4663
    %v5244 = vunpack.c.l.b16 %v4664
    %v5245 = vunpack.c.l.b16 %v4665
    %v5246 = vunpack.c.l.b16 %v4666
    %v5247 = vunpack.c.l.b16 %v4667
    %v5248 = vunpack.c.l.b16 %v4668
    %v5249 = vunpack.c.l.b16 %v4669
    %v5250 = vunpack.c.l.b16 %v4670
    %v5251 = vunpack.c.l.b16 %v4671
    %v5252 = vunpack.c.l.b16 %v4672
    %v5253 = vunpack.c.l.b16 %v4673
    %v5254 = vunpack.c.l.b16 %v4674
    %v5255 = vunpack.c.l.b16 %v4675
    %v5256 = vunpack.c.l.b16 %v4676
    %v5257 = vunpack.c.l.b16 %v4677
    %v5258 = vunpack.c.l.b16 %v4678
    %v5259 = vunpack.c.l.b16 %v4679
    %v5260 = vunpack.c.l.b16 %v4680
    %v5261 = vunpack.c.l.b16 %v4681
    %v5262 = vunpack.c.l.b16 %v4682
    %v5263 = vunpack.c.l.b16 %v4683
    %v5264 = vunpack.c.l.b16 %v4684
    %v5265 = vunpack.c.l.b16 %v4685
    %v5266 = vunpack.c.l.b16 %v4686
    %v5267 = vunpack.c.l.b16 %v4687
    %v5268 = vunpack.c.l.b16 %v4688
    %v5269 = vunpack.c.l.b16 %v4689
    %v5270 = vunpack.c.l.b16 %v4690
    %v5271 = vunpack.c.l.b16 %v4691
    %v5272 = vunpack.c.l.b16 %v4692
    %v5273 = vunpack.c.l.b16 %v4693
    %v5274 = vunpack.c.l.b16 %v4694
    %v5275 = vunpack.c.l.b16 %v4695
    %v5276 = vunpack.c.l.b16 %v4696
    %v5277 = vunpack.c.l.b16 %v4697
    %v5278 = vunpack.c.l.b16 %v4698
    %v5279 = vunpack.c.l.b16 %v4699
    %v5280 = vunpack.c.l.b16 %v4700
    %v5281 = vunpack.c.l.b16 %v4701
    %v5282 = vunpack.c.l.b16 %v4702
    %v5283 = vunpack.c.l.b16 %v4703
    %v5284 = vunpack.c.l.b16 %v4704
    %v5285 = vunpack.c.l.b16 %v4705
    %v5286 = vunpack.c.l.b16 %v4706
    %v5287 = vunpack.c.l.b16 %v4707
    %v5288 = vunpack.c.l.b16 %v4708
    %v5289 = vunpack.c.l.b16 %v4709
    %v5290 = vunpack.c.l.b16 %v4710
    %v5291 = vunpack.c.l.b16 %v4711
    %v5292 = vunpack.c.l.b16 %v4712
    %v5293 = vunpack.c.l.b16 %v4713
    %v5294 = vunpack.c.l.b16 %v4714
    %v5295 = vunpack.c.l.b16 %v4715
    %v5296 = vunpack.c.l.b16 %v4716
    %v5297 = vunpack.c.l.b16 %v4717
    %v5298 = vunpack.c.l.b16 %v4718
    %v5299 = vunpack.c.l.b16 %v4719
    %v5300 = vunpack.c.l.b16 %v4720
    %v5301 = vunpack.c.l.b16 %v4721
    %v5302 = vunpack.c.l.b16 %v4722
    %v5303 = vunpack.c.l.b16 %v4723
    %v5304 = vunpack.c.l.b16 %v4724
    %v5305 = vunpack.c.l.b16 %v4725
    %v5306 = vunpack.c.l.b16 %v4726
    %v5307 = vunpack.c.l.b16 %v4727
    %v5308 = vunpack.c.l.b16 %v4728
    %v5309 = vunpack.c.l.b16 %v4729
    %v5310 = vunpack.c.l.b16 %v4730
    %v5311 = vunpack.c.l.b16 %v4731
    %v5312 = vunpack.c.l.b16 %v4732
    %v5313 = vunpack.c.l.b16 %v4733
    %v5314 = vunpack.c.l.b16 %v4734
    %v5315 = vunpack.c.l.b16 %v4735
    %v5316 = vunpack.c.l.b16 %v4736
    %v5317 = vunpack.c.l.b16 %v4737
    %v5318 = vunpack.c.l.b16 %v4738
    %v5319 = vunpack.c.l.b16 %v4739
    %v5320 = vunpack.c.l.b16 %v4740
    %v5321 = vunpack.c.l.b16 %v4741
    %v5322 = vunpack.c.l.b16 %v4742
    %v5323 = vunpack.c.l.b16 %v4743
    %v5324 = vpack.c.b16 %v5197, %v5196
    %v5325 = vpack.c.b16 %v5199, %v5198
    %v5326 = vpack.c.b16 %v5201, %v5200
    %v5327 = vpack.c.b16 %v5203, %v5202
    %v5328 = vpack.c.b16 %v5205, %v5204
    %v5329 = vpack.c.b16 %v5207, %v5206
    %v5330 = vpack.c.b16 %v5209, %v5208
    %v5331 = vpack.c.b16 %v5211, %v5210
    %v5332 = vpack.c.b16 %v5213, %v5212
    %v5333 = vpack.c.b16 %v5215, %v5214
    %v5334 = vpack.c.b16 %v5217, %v5216
    %v5335 = vpack.c.b16 %v5219, %v5218
    %v5336 = vpack.c.b16 %v5221, %v5220
    %v5337 = vpack.c.b16 %v5223, %v5222
    %v5338 = vpack.c.b16 %v5225, %v5224
    %v5339 = vpack.c.b16 %v5227, %v5226
    %v5340 = vpack.c.b16 %v5229, %v5228
    %v5341 = vpack.c.b16 %v5231, %v5230
    %v5342 = vpack.c.b16 %v5233, %v5232
    %v5343 = vpack.c.b16 %v5235, %v5234
    %v5344 = vpack.c.b16 %v5237, %v5236
    %v5345 = vpack.c.b16 %v5239, %v5238
    %v5346 = vpack.c.b16 %v5241, %v5240
    %v5347 = vpack.c.b16 %v5243, %v5242
    %v5348 = vpack.c.b16 %v5245, %v5244
    %v5349 = vpack.c.b16 %v5247, %v5246
    %v5350 = vpack.c.b16 %v5249, %v5248
    %v5351 = vpack.c.b16 %v5251, %v5250
    %v5352 = vpack.c.b16 %v5253, %v5252
    %v5353 = vpack.c.b16 %v5255, %v5254
    %v5354 = vpack.c.b16 %v5257, %v5256
    %v5355 = vpack.c.b16 %v5259, %v5258
    %v5356 = vpack.c.b16 %v5261, %v5260
    %v5357 = vpack.c.b16 %v5263, %v5262
    %v5358 = vpack.c.b16 %v5265, %v5264
    %v5359 = vpack.c.b16 %v5267, %v5266
    %v5360 = vpack.c.b16 %v5269, %v5268
    %v5361 = vpack.c.b16 %v5271, %v5270
    %v5362 = vpack.c.b16 %v5273, %v5272
    %v5363 = vpack.c.b16 %v5275, %v5274
    %v5364 = vpack.c.b16 %v5277, %v5276
    %v5365 = vpack.c.b16 %v5279, %v5278
    %v5366 = vpack.c.b16 %v5281, %v5280
    %v5367 = vpack.c.b16 %v5283, %v5282
    %v5368 = vpack.c.b16 %v5285, %v5284
    %v5369 = vpack.c.b16 %v5287, %v5286
    %v5370 = vpack.c.b16 %v5289, %v5288
    %v5371 = vpack.c.b16 %v5291, %v5290
    %v5372 = vpack.c.b16 %v5293, %v5292
    %v5373 = vpack.c.b16 %v5295, %v5294
    %v5374 = vpack.c.b16 %v5297, %v5296
    %v5375 = vpack.c.b16 %v5299, %v5298
    %v5376 = vpack.c.b16 %v5301, %v5300
    %v5377 = vpack.c.b16 %v5303, %v5302
    %v5378 = vpack.c.b16 %v5305, %v5304
    %v5379 = vpack.c.b16 %v5307, %v5306
    %v5380 = vpack.c.b16 %v5309, %v5308
    %v5381 = vpack.c.b16 %v5311, %v5310
    %v5382 = vpack.c.b16 %v5313, %v5312
    %v5383 = vpack.c.b16 %v5315, %v5314
    %v5384 = vpack.c.b16 %v5317, %v5316
    %v5385 = vpack.c.b16 %v5319, %v5318
    %v5386 = vpack.c.b16 %v5321, %v5320
    %v5387 = vpack.c.b16 %v5323, %v5322
    %5452 = vmatpush.bf16.msra.mxu0 %v5331
    %5453 = vmatpush.bf16.msra.mxu0 %v5330
    %5454 = vmatpush.bf16.msra.mxu0 %v5329
    %5455 = vmatpush.bf16.msra.mxu0 %v5328
    %5456 = vmatpush.bf16.msra.mxu0 %v5327
    %5457 = vmatpush.bf16.msra.mxu0 %v5326
    %5458 = vmatpush.bf16.msra.mxu0 %v5325
    %5459 = vmatpush.bf16.msra.mxu0 %v5324
    %5460 = vmatmul.bf16.gmra.mxu0 %v4940
    %v5461 = vpop.f32.mrf.mxu0
    %v5462 = vadd.f32 %v4746, %v5461
    %v5463 = vpop.f32.mrf.mxu0
    %v5464 = vadd.f32 %v4746, %v5463
    %5465 = vmatmul.bf16.gmra.mxu0 %v4948
    %v5466 = vpop.f32.mrf.mxu0
    %v5467 = vadd.f32 %v4746, %v5466
    %v5468 = vpop.f32.mrf.mxu0
    %v5469 = vadd.f32 %v4746, %v5468
    %5470 = vmatmul.bf16.gmra.mxu0 %v4956
    %v5471 = vpop.f32.mrf.mxu0
    %v5472 = vadd.f32 %v4746, %v5471
    %v5473 = vpop.f32.mrf.mxu0
    %v5474 = vadd.f32 %v4746, %v5473
    %5475 = vmatmul.bf16.gmra.mxu0 %v4964
    %v5476 = vpop.f32.mrf.mxu0
    %v5477 = vadd.f32 %v4746, %v5476
    %v5478 = vpop.f32.mrf.mxu0
    %v5479 = vadd.f32 %v4746, %v5478
    %5480 = vmatmul.bf16.gmra.mxu0 %v4972
    %v5481 = vpop.f32.mrf.mxu0
    %v5482 = vadd.f32 %v4746, %v5481
    %v5483 = vpop.f32.mrf.mxu0
    %v5484 = vadd.f32 %v4746, %v5483
    %5485 = vmatmul.bf16.gmra.mxu0 %v4980
    %v5486 = vpop.f32.mrf.mxu0
    %v5487 = vadd.f32 %v4746, %v5486
    %v5488 = vpop.f32.mrf.mxu0
    %v5489 = vadd.f32 %v4746, %v5488
    %5490 = vmatmul.bf16.gmra.mxu0 %v4988
    %v5491 = vpop.f32.mrf.mxu0
    %v5492 = vadd.f32 %v4746, %v5491
    %v5493 = vpop.f32.mrf.mxu0
    %v5494 = vadd.f32 %v4746, %v5493
    %5495 = vmatmul.bf16.gmra.mxu0 %v4996
    %v5496 = vpop.f32.mrf.mxu0
    %v5497 = vadd.f32 %v4746, %v5496
    %v5498 = vpop.f32.mrf.mxu0
    %v5499 = vadd.f32 %v4746, %v5498
    %5500 = vdwg.mxu0
    %5501 = vmatpush.bf16.msra.mxu0 %v5339
    %5502 = vmatpush.bf16.msra.mxu0 %v5338
    %5503 = vmatpush.bf16.msra.mxu0 %v5337
    %5504 = vmatpush.bf16.msra.mxu0 %v5336
    %5505 = vmatpush.bf16.msra.mxu0 %v5335
    %5506 = vmatpush.bf16.msra.mxu0 %v5334
    %5507 = vmatpush.bf16.msra.mxu0 %v5333
    %5508 = vmatpush.bf16.msra.mxu0 %v5332
    %5509 = vmatmul.bf16.gmra.mxu0 %v4941
    %v5510 = vpop.f32.mrf.mxu0
    %v5511 = vadd.f32 %v5462, %v5510
    %v5512 = vpop.f32.mrf.mxu0
    %v5513 = vadd.f32 %v5464, %v5512
    %5514 = vmatmul.bf16.gmra.mxu0 %v4949
    %v5515 = vpop.f32.mrf.mxu0
    %v5516 = vadd.f32 %v5467, %v5515
    %v5517 = vpop.f32.mrf.mxu0
    %v5518 = vadd.f32 %v5469, %v5517
    %5519 = vmatmul.bf16.gmra.mxu0 %v4957
    %v5520 = vpop.f32.mrf.mxu0
    %v5521 = vadd.f32 %v5472, %v5520
    %v5522 = vpop.f32.mrf.mxu0
    %v5523 = vadd.f32 %v5474, %v5522
    %5524 = vmatmul.bf16.gmra.mxu0 %v4965
    %v5525 = vpop.f32.mrf.mxu0
    %v5526 = vadd.f32 %v5477, %v5525
    %v5527 = vpop.f32.mrf.mxu0
    %v5528 = vadd.f32 %v5479, %v5527
    %5529 = vmatmul.bf16.gmra.mxu0 %v4973
    %v5530 = vpop.f32.mrf.mxu0
    %v5531 = vadd.f32 %v5482, %v5530
    %v5532 = vpop.f32.mrf.mxu0
    %v5533 = vadd.f32 %v5484, %v5532
    %5534 = vmatmul.bf16.gmra.mxu0 %v4981
    %v5535 = vpop.f32.mrf.mxu0
    %v5536 = vadd.f32 %v5487, %v5535
    %v5537 = vpop.f32.mrf.mxu0
    %v5538 = vadd.f32 %v5489, %v5537
    %5539 = vmatmul.bf16.gmra.mxu0 %v4989
    %v5540 = vpop.f32.mrf.mxu0
    %v5541 = vadd.f32 %v5492, %v5540
    %v5542 = vpop.f32.mrf.mxu0
    %v5543 = vadd.f32 %v5494, %v5542
    %5544 = vmatmul.bf16.gmra.mxu0 %v4997
    %v5545 = vpop.f32.mrf.mxu0
    %v5546 = vadd.f32 %v5497, %v5545
    %v5547 = vpop.f32.mrf.mxu0
    %v5548 = vadd.f32 %v5499, %v5547
    %5549 = vdwg.mxu0
    %5550 = vmatpush.bf16.msra.mxu0 %v5347
    %5551 = vmatpush.bf16.msra.mxu0 %v5346
    %5552 = vmatpush.bf16.msra.mxu0 %v5345
    %5553 = vmatpush.bf16.msra.mxu0 %v5344
    %5554 = vmatpush.bf16.msra.mxu0 %v5343
    %5555 = vmatpush.bf16.msra.mxu0 %v5342
    %5556 = vmatpush.bf16.msra.mxu0 %v5341
    %5557 = vmatpush.bf16.msra.mxu0 %v5340
    %5558 = vmatmul.bf16.gmra.mxu0 %v4942
    %v5559 = vpop.f32.mrf.mxu0
    %v5560 = vadd.f32 %v5511, %v5559
    %v5561 = vpop.f32.mrf.mxu0
    %v5562 = vadd.f32 %v5513, %v5561
    %5563 = vmatmul.bf16.gmra.mxu0 %v4950
    %v5564 = vpop.f32.mrf.mxu0
    %v5565 = vadd.f32 %v5516, %v5564
    %v5566 = vpop.f32.mrf.mxu0
    %v5567 = vadd.f32 %v5518, %v5566
    %5568 = vmatmul.bf16.gmra.mxu0 %v4958
    %v5569 = vpop.f32.mrf.mxu0
    %v5570 = vadd.f32 %v5521, %v5569
    %v5571 = vpop.f32.mrf.mxu0
    %v5572 = vadd.f32 %v5523, %v5571
    %5573 = vmatmul.bf16.gmra.mxu0 %v4966
    %v5574 = vpop.f32.mrf.mxu0
    %v5575 = vadd.f32 %v5526, %v5574
    %v5576 = vpop.f32.mrf.mxu0
    %v5577 = vadd.f32 %v5528, %v5576
    %5578 = vmatmul.bf16.gmra.mxu0 %v4974
    %v5579 = vpop.f32.mrf.mxu0
    %v5580 = vadd.f32 %v5531, %v5579
    %v5581 = vpop.f32.mrf.mxu0
    %v5582 = vadd.f32 %v5533, %v5581
    %5583 = vmatmul.bf16.gmra.mxu0 %v4982
    %v5584 = vpop.f32.mrf.mxu0
    %v5585 = vadd.f32 %v5536, %v5584
    %v5586 = vpop.f32.mrf.mxu0
    %v5587 = vadd.f32 %v5538, %v5586
    %5588 = vmatmul.bf16.gmra.mxu0 %v4990
    %v5589 = vpop.f32.mrf.mxu0
    %v5590 = vadd.f32 %v5541, %v5589
    %v5591 = vpop.f32.mrf.mxu0
    %v5592 = vadd.f32 %v5543, %v5591
    %5593 = vmatmul.bf16.gmra.mxu0 %v4998
    %v5594 = vpop.f32.mrf.mxu0
    %v5595 = vadd.f32 %v5546, %v5594
    %v5596 = vpop.f32.mrf.mxu0
    %v5597 = vadd.f32 %v5548, %v5596
    %5598 = vdwg.mxu0
    %5599 = vmatpush.bf16.msra.mxu0 %v5355
    %5600 = vmatpush.bf16.msra.mxu0 %v5354
    %5601 = vmatpush.bf16.msra.mxu0 %v5353
    %5602 = vmatpush.bf16.msra.mxu0 %v5352
    %5603 = vmatpush.bf16.msra.mxu0 %v5351
    %5604 = vmatpush.bf16.msra.mxu0 %v5350
    %5605 = vmatpush.bf16.msra.mxu0 %v5349
    %5606 = vmatpush.bf16.msra.mxu0 %v5348
    %5607 = vmatmul.bf16.gmra.mxu0 %v4943
    %v5608 = vpop.f32.mrf.mxu0
    %v5609 = vadd.f32 %v5560, %v5608
    %v5610 = vpop.f32.mrf.mxu0
    %v5611 = vadd.f32 %v5562, %v5610
    %5612 = vmatmul.bf16.gmra.mxu0 %v4951
    %v5613 = vpop.f32.mrf.mxu0
    %v5614 = vadd.f32 %v5565, %v5613
    %v5615 = vpop.f32.mrf.mxu0
    %v5616 = vadd.f32 %v5567, %v5615
    %5617 = vmatmul.bf16.gmra.mxu0 %v4959
    %v5618 = vpop.f32.mrf.mxu0
    %v5619 = vadd.f32 %v5570, %v5618
    %v5620 = vpop.f32.mrf.mxu0
    %v5621 = vadd.f32 %v5572, %v5620
    %5622 = vmatmul.bf16.gmra.mxu0 %v4967
    %v5623 = vpop.f32.mrf.mxu0
    %v5624 = vadd.f32 %v5575, %v5623
    %v5625 = vpop.f32.mrf.mxu0
    %v5626 = vadd.f32 %v5577, %v5625
    %5627 = vmatmul.bf16.gmra.mxu0 %v4975
    %v5628 = vpop.f32.mrf.mxu0
    %v5629 = vadd.f32 %v5580, %v5628
    %v5630 = vpop.f32.mrf.mxu0
    %v5631 = vadd.f32 %v5582, %v5630
    %5632 = vmatmul.bf16.gmra.mxu0 %v4983
    %v5633 = vpop.f32.mrf.mxu0
    %v5634 = vadd.f32 %v5585, %v5633
    %v5635 = vpop.f32.mrf.mxu0
    %v5636 = vadd.f32 %v5587, %v5635
    %5637 = vmatmul.bf16.gmra.mxu0 %v4991
    %v5638 = vpop.f32.mrf.mxu0
    %v5639 = vadd.f32 %v5590, %v5638
    %v5640 = vpop.f32.mrf.mxu0
    %v5641 = vadd.f32 %v5592, %v5640
    %5642 = vmatmul.bf16.gmra.mxu0 %v4999
    %v5643 = vpop.f32.mrf.mxu0
    %v5644 = vadd.f32 %v5595, %v5643
    %v5645 = vpop.f32.mrf.mxu0
    %v5646 = vadd.f32 %v5597, %v5645
    %5647 = vdwg.mxu0
    %5648 = vmatpush.bf16.msra.mxu0 %v5363
    %5649 = vmatpush.bf16.msra.mxu0 %v5362
    %5650 = vmatpush.bf16.msra.mxu0 %v5361
    %5651 = vmatpush.bf16.msra.mxu0 %v5360
    %5652 = vmatpush.bf16.msra.mxu0 %v5359
    %5653 = vmatpush.bf16.msra.mxu0 %v5358
    %5654 = vmatpush.bf16.msra.mxu0 %v5357
    %5655 = vmatpush.bf16.msra.mxu0 %v5356
    %5656 = vmatmul.bf16.gmra.mxu0 %v4944
    %v5657 = vpop.f32.mrf.mxu0
    %v5658 = vadd.f32 %v5609, %v5657
    %v5659 = vpop.f32.mrf.mxu0
    %v5660 = vadd.f32 %v5611, %v5659
    %5661 = vmatmul.bf16.gmra.mxu0 %v4952
    %v5662 = vpop.f32.mrf.mxu0
    %v5663 = vadd.f32 %v5614, %v5662
    %v5664 = vpop.f32.mrf.mxu0
    %v5665 = vadd.f32 %v5616, %v5664
    %5666 = vmatmul.bf16.gmra.mxu0 %v4960
    %v5667 = vpop.f32.mrf.mxu0
    %v5668 = vadd.f32 %v5619, %v5667
    %v5669 = vpop.f32.mrf.mxu0
    %v5670 = vadd.f32 %v5621, %v5669
    %5671 = vmatmul.bf16.gmra.mxu0 %v4968
    %v5672 = vpop.f32.mrf.mxu0
    %v5673 = vadd.f32 %v5624, %v5672
    %v5674 = vpop.f32.mrf.mxu0
    %v5675 = vadd.f32 %v5626, %v5674
    %5676 = vmatmul.bf16.gmra.mxu0 %v4976
    %v5677 = vpop.f32.mrf.mxu0
    %v5678 = vadd.f32 %v5629, %v5677
    %v5679 = vpop.f32.mrf.mxu0
    %v5680 = vadd.f32 %v5631, %v5679
    %5681 = vmatmul.bf16.gmra.mxu0 %v4984
    %v5682 = vpop.f32.mrf.mxu0
    %v5683 = vadd.f32 %v5634, %v5682
    %v5684 = vpop.f32.mrf.mxu0
    %v5685 = vadd.f32 %v5636, %v5684
    %5686 = vmatmul.bf16.gmra.mxu0 %v4992
    %v5687 = vpop.f32.mrf.mxu0
    %v5688 = vadd.f32 %v5639, %v5687
    %v5689 = vpop.f32.mrf.mxu0
    %v5690 = vadd.f32 %v5641, %v5689
    %5691 = vmatmul.bf16.gmra.mxu0 %v5000
    %v5692 = vpop.f32.mrf.mxu0
    %v5693 = vadd.f32 %v5644, %v5692
    %v5694 = vpop.f32.mrf.mxu0
    %v5695 = vadd.f32 %v5646, %v5694
    %5696 = vdwg.mxu0
    %5697 = vmatpush.bf16.msra.mxu0 %v5371
    %5698 = vmatpush.bf16.msra.mxu0 %v5370
    %5699 = vmatpush.bf16.msra.mxu0 %v5369
    %5700 = vmatpush.bf16.msra.mxu0 %v5368
    %5701 = vmatpush.bf16.msra.mxu0 %v5367
    %5702 = vmatpush.bf16.msra.mxu0 %v5366
    %5703 = vmatpush.bf16.msra.mxu0 %v5365
    %5704 = vmatpush.bf16.msra.mxu0 %v5364
    %5705 = vmatmul.bf16.gmra.mxu0 %v4945
    %v5706 = vpop.f32.mrf.mxu0
    %v5707 = vadd.f32 %v5658, %v5706
    %v5708 = vpop.f32.mrf.mxu0
    %v5709 = vadd.f32 %v5660, %v5708
    %5710 = vmatmul.bf16.gmra.mxu0 %v4953
    %v5711 = vpop.f32.mrf.mxu0
    %v5712 = vadd.f32 %v5663, %v5711
    %v5713 = vpop.f32.mrf.mxu0
    %v5714 = vadd.f32 %v5665, %v5713
    %5715 = vmatmul.bf16.gmra.mxu0 %v4961
    %v5716 = vpop.f32.mrf.mxu0
    %v5717 = vadd.f32 %v5668, %v5716
    %v5718 = vpop.f32.mrf.mxu0
    %v5719 = vadd.f32 %v5670, %v5718
    %5720 = vmatmul.bf16.gmra.mxu0 %v4969
    %v5721 = vpop.f32.mrf.mxu0
    %v5722 = vadd.f32 %v5673, %v5721
    %v5723 = vpop.f32.mrf.mxu0
    %v5724 = vadd.f32 %v5675, %v5723
    %5725 = vmatmul.bf16.gmra.mxu0 %v4977
    %v5726 = vpop.f32.mrf.mxu0
    %v5727 = vadd.f32 %v5678, %v5726
    %v5728 = vpop.f32.mrf.mxu0
    %v5729 = vadd.f32 %v5680, %v5728
    %5730 = vmatmul.bf16.gmra.mxu0 %v4985
    %v5731 = vpop.f32.mrf.mxu0
    %v5732 = vadd.f32 %v5683, %v5731
    %v5733 = vpop.f32.mrf.mxu0
    %v5734 = vadd.f32 %v5685, %v5733
    %5735 = vmatmul.bf16.gmra.mxu0 %v4993
    %v5736 = vpop.f32.mrf.mxu0
    %v5737 = vadd.f32 %v5688, %v5736
    %v5738 = vpop.f32.mrf.mxu0
    %v5739 = vadd.f32 %v5690, %v5738
    %5740 = vmatmul.bf16.gmra.mxu0 %v5001
    %v5741 = vpop.f32.mrf.mxu0
    %v5742 = vadd.f32 %v5693, %v5741
    %v5743 = vpop.f32.mrf.mxu0
    %v5744 = vadd.f32 %v5695, %v5743
    %5745 = vdwg.mxu0
    %5746 = vmatpush.bf16.msra.mxu0 %v5379
    %5747 = vmatpush.bf16.msra.mxu0 %v5378
    %5748 = vmatpush.bf16.msra.mxu0 %v5377
    %5749 = vmatpush.bf16.msra.mxu0 %v5376
    %5750 = vmatpush.bf16.msra.mxu0 %v5375
    %5751 = vmatpush.bf16.msra.mxu0 %v5374
    %5752 = vmatpush.bf16.msra.mxu0 %v5373
    %5753 = vmatpush.bf16.msra.mxu0 %v5372
    %5754 = vmatmul.bf16.gmra.mxu0 %v4946
    %v5755 = vpop.f32.mrf.mxu0
    %v5756 = vadd.f32 %v5707, %v5755
    %v5757 = vpop.f32.mrf.mxu0
    %v5758 = vadd.f32 %v5709, %v5757
    %5759 = vmatmul.bf16.gmra.mxu0 %v4954
    %v5760 = vpop.f32.mrf.mxu0
    %v5761 = vadd.f32 %v5712, %v5760
    %v5762 = vpop.f32.mrf.mxu0
    %v5763 = vadd.f32 %v5714, %v5762
    %5764 = vmatmul.bf16.gmra.mxu0 %v4962
    %v5765 = vpop.f32.mrf.mxu0
    %v5766 = vadd.f32 %v5717, %v5765
    %v5767 = vpop.f32.mrf.mxu0
    %v5768 = vadd.f32 %v5719, %v5767
    %5769 = vmatmul.bf16.gmra.mxu0 %v4970
    %v5770 = vpop.f32.mrf.mxu0
    %v5771 = vadd.f32 %v5722, %v5770
    %v5772 = vpop.f32.mrf.mxu0
    %v5773 = vadd.f32 %v5724, %v5772
    %5774 = vmatmul.bf16.gmra.mxu0 %v4978
    %v5775 = vpop.f32.mrf.mxu0
    %v5776 = vadd.f32 %v5727, %v5775
    %v5777 = vpop.f32.mrf.mxu0
    %v5778 = vadd.f32 %v5729, %v5777
    %5779 = vmatmul.bf16.gmra.mxu0 %v4986
    %v5780 = vpop.f32.mrf.mxu0
    %v5781 = vadd.f32 %v5732, %v5780
    %v5782 = vpop.f32.mrf.mxu0
    %v5783 = vadd.f32 %v5734, %v5782
    %5784 = vmatmul.bf16.gmra.mxu0 %v4994
    %v5785 = vpop.f32.mrf.mxu0
    %v5786 = vadd.f32 %v5737, %v5785
    %v5787 = vpop.f32.mrf.mxu0
    %v5788 = vadd.f32 %v5739, %v5787
    %5789 = vmatmul.bf16.gmra.mxu0 %v5002
    %v5790 = vpop.f32.mrf.mxu0
    %v5791 = vadd.f32 %v5742, %v5790
    %v5792 = vpop.f32.mrf.mxu0
    %v5793 = vadd.f32 %v5744, %v5792
    %5794 = vdwg.mxu0
    %5795 = vmatpush.bf16.msra.mxu0 %v5387
    %5796 = vmatpush.bf16.msra.mxu0 %v5386
    %5797 = vmatpush.bf16.msra.mxu0 %v5385
    %5798 = vmatpush.bf16.msra.mxu0 %v5384
    %5799 = vmatpush.bf16.msra.mxu0 %v5383
    %5800 = vmatpush.bf16.msra.mxu0 %v5382
    %5801 = vmatpush.bf16.msra.mxu0 %v5381
    %5802 = vmatpush.bf16.msra.mxu0 %v5380
    %5803 = vmatmul.bf16.gmra.mxu0 %v4947
    %v5804 = vpop.f32.mrf.mxu0
    %v5805 = vadd.f32 %v5756, %v5804
    %v5806 = vpop.f32.mrf.mxu0
    %v5807 = vadd.f32 %v5758, %v5806
    %5808 = vmatmul.bf16.gmra.mxu0 %v4955
    %v5809 = vpop.f32.mrf.mxu0
    %v5810 = vadd.f32 %v5761, %v5809
    %v5811 = vpop.f32.mrf.mxu0
    %v5812 = vadd.f32 %v5763, %v5811
    %5813 = vmatmul.bf16.gmra.mxu0 %v4963
    %v5814 = vpop.f32.mrf.mxu0
    %v5815 = vadd.f32 %v5766, %v5814
    %v5816 = vpop.f32.mrf.mxu0
    %v5817 = vadd.f32 %v5768, %v5816
    %5818 = vmatmul.bf16.gmra.mxu0 %v4971
    %v5819 = vpop.f32.mrf.mxu0
    %v5820 = vadd.f32 %v5771, %v5819
    %v5821 = vpop.f32.mrf.mxu0
    %v5822 = vadd.f32 %v5773, %v5821
    %5823 = vmatmul.bf16.gmra.mxu0 %v4979
    %v5824 = vpop.f32.mrf.mxu0
    %v5825 = vadd.f32 %v5776, %v5824
    %v5826 = vpop.f32.mrf.mxu0
    %v5827 = vadd.f32 %v5778, %v5826
    %5828 = vmatmul.bf16.gmra.mxu0 %v4987
    %v5829 = vpop.f32.mrf.mxu0
    %v5830 = vadd.f32 %v5781, %v5829
    %v5831 = vpop.f32.mrf.mxu0
    %v5832 = vadd.f32 %v5783, %v5831
    %5833 = vmatmul.bf16.gmra.mxu0 %v4995
    %v5834 = vpop.f32.mrf.mxu0
    %v5835 = vadd.f32 %v5786, %v5834
    %v5836 = vpop.f32.mrf.mxu0
    %v5837 = vadd.f32 %v5788, %v5836
    %5838 = vmatmul.bf16.gmra.mxu0 %v5003
    %v5839 = vpop.f32.mrf.mxu0
    %v5840 = vadd.f32 %v5791, %v5839
    %v5841 = vpop.f32.mrf.mxu0
    %v5842 = vadd.f32 %v5793, %v5841
    %5843 = vdwg.mxu0
    %v5844 = vmax.f32 %v5805, 0.0
    %v5845 = vmax.f32 %v5807, 0.0
    %v5846 = vmax.f32 %v5810, 0.0
    %v5847 = vmax.f32 %v5812, 0.0
    %v5848 = vmax.f32 %v5815, 0.0
    %v5849 = vmax.f32 %v5817, 0.0
    %v5850 = vmax.f32 %v5820, 0.0
    %v5851 = vmax.f32 %v5822, 0.0
    %v5852 = vmax.f32 %v5825, 0.0
    %v5853 = vmax.f32 %v5827, 0.0
    %v5854 = vmax.f32 %v5830, 0.0
    %v5855 = vmax.f32 %v5832, 0.0
    %v5856 = vmax.f32 %v5835, 0.0
    %v5857 = vmax.f32 %v5837, 0.0
    %v5858 = vmax.f32 %v5840, 0.0
    %v5859 = vmax.f32 %v5842, 0.0
    %5860 = vst [vmem:[#allocation17] sm:$0xff] %v5844
    %5861 = vst [vmem:[#allocation17 + $0x8] sm:$0xff] %v5845
    %5862 = vst [vmem:[#allocation17 + $0x10] sm:$0xff] %v5846
    %5863 = vst [vmem:[#allocation17 + $0x18] sm:$0xff] %v5847
    %5864 = vst [vmem:[#allocation17 + $0x20] sm:$0xff] %v5848
    %5865 = vst [vmem:[#allocation17 + $0x28] sm:$0xff] %v5849
    %5866 = vst [vmem:[#allocation17 + $0x30] sm:$0xff] %v5850
    %5867 = vst [vmem:[#allocation17 + $0x38] sm:$0xff] %v5851
    %5868 = vst [vmem:[#allocation17 + $0x40] sm:$0xff] %v5852
    %5869 = vst [vmem:[#allocation17 + $0x48] sm:$0xff] %v5853
    %5870 = vst [vmem:[#allocation17 + $0x50] sm:$0xff] %v5854
    %5871 = vst [vmem:[#allocation17 + $0x58] sm:$0xff] %v5855
    %5872 = vst [vmem:[#allocation17 + $0x60] sm:$0xff] %v5856
    %5873 = vst [vmem:[#allocation17 + $0x68] sm:$0xff] %v5857
    %5874 = vst [vmem:[#allocation17 + $0x70] sm:$0xff] %v5858
    %5875 = vst [vmem:[#allocation17 + $0x78] sm:$0xff] %v5859
    // Predicated region
    $region14: #{cat_fuse_forward.2} parent=1 // pred_check
      _
    $region15: #{cat_fuse_forward.2} parent=1 // pred_check_branch
      %5877 = sbr.rel (0) target = $region17
    $region16: #{cat_fuse_forward.2} parent=1 // pred_region
      %5879 = vsyncadd [#allocation18], 0
      %s5880 = sshll.u32 [#allocation17], 4
      %s5881 = int_to_ptr.vmem [resolvable:$true] %s5880
      %s5882 = sshll.u32 %s5, 4
      %s5883 = int_to_ptr.hbm [resolvable:$true] %s5882
      %5888 = dma.vmem_to_hbm [thread:$0]  %s5881, 2048, %s5883, [#allocation18], 128, 128, 8
    $region17: #{cat_fuse_forward.2} parent=1 // pred_fallthru
      _
    // Predicated region
    $region18: #{cat_fuse_forward.2} parent=1 // pred_check
      _
    $region19: #{cat_fuse_forward.2} parent=1 // pred_check_branch
      %5890 = sbr.rel (0) target = $region21
    $region20: #{cat_fuse_forward.2} parent=1 // pred_region
      %5892 = dma.done [#allocation18], 2048
    $region21: #{cat_fuse_forward.2} parent=1 // pred_fallthru
      _
    %5893 = vsyncpa [#allocation18], 1

</llo_original>
